<compile_context>
chip_gen: v5e
topology: v5e:2x2
jax: 0.10.0
libtpu: 0.0.40
codegen_flags: <defaults>
</compile_context>

<pallas_src>
import functools

import jax
import jax.numpy as jnp
from jax.experimental import pallas as pl
from jax.experimental.pallas import tpu as pltpu


def _ecg_kernel(x_ref, w1_ref, b1_ref, w2_ref, b2_ref,
                fw1_ref, fb1_ref, fw2_ref, fb2_ref, pool_ref,
                o_ref, taps_ref, *, L):
  # x_ref:   (1, 1, N)   batch block folded into lanes, N = Bblk * L
  # w1_ref:  (16, 8)     conv1 weight (out, k) zero-padded 5 -> 8
  # b1_ref:  (16, 1)
  # w2_ref:  (3, 32, 16) conv2 weight, tap-major (k, out, in)
  # b2_ref:  (32, 1)
  # fw1_ref: (64, 32)  fb1_ref: (64, 1)
  # fw2_ref: (1, 64)   fb2_ref: (1, 1)
  # pool_ref:(N, Bblk)   bf16 0/1 even-lane selection matrix (resident)
  # o_ref:   (1, 1, Bblk)
  # taps_ref:(8, N)      f32 VMEM scratch holding the 5 conv1 taps
  f32 = jnp.float32
  N = x_ref.shape[2]
  Bblk = o_ref.shape[2]
  Lh = L // 2
  x = x_ref[...].reshape(1, N)                            # (1, N)

  # Position of each lane inside its length-L row; boundary masks are computed
  # once and reused by conv1 (shifts +-1, +-2) and conv2 (shifts +-2).
  pos = jax.lax.broadcasted_iota(jnp.int32, (1, N), 1) % L
  m_ge1 = pos >= 1
  m_ge2 = pos >= 2
  m_lt1 = pos < L - 1
  m_lt2 = pos < L - 2

  def shifted(v, s, mask):
    """shifted[m] = v[m + s] within a length-L row, 0 outside (roll + mask)."""
    t = pltpu.roll(v, (-s) % N, axis=1)
    return jnp.where(mask, t, 0.0)

  # ---- Conv1d(1 -> 16, k=5, pad=2) + ReLU on the MXU ------------------------
  # Stage the 5 taps into the (8, N) scratch; zero rows 5..7 every step so the
  # padded weight columns never hit uninitialized VMEM (megacore-safe).
  taps_ref[pl.ds(0, 1), :] = shifted(x, -2, m_ge2)
  taps_ref[pl.ds(1, 1), :] = shifted(x, -1, m_ge1)
  taps_ref[pl.ds(2, 1), :] = x
  taps_ref[pl.ds(3, 1), :] = shifted(x, 1, m_lt1)
  taps_ref[pl.ds(4, 1), :] = shifted(x, 2, m_lt2)
  taps_ref[pl.ds(5, 3), :] = jnp.zeros((3, N), f32)
  h1 = jnp.dot(w1_ref[...], taps_ref[...], preferred_element_type=f32)  # (16,N)
  h1 = jnp.maximum(h1 + b1_ref[...], 0.0)

  # ---- MaxPool1d(2): pairwise max; valid at even lanes (no compaction) ------
  p1 = jnp.maximum(h1, pltpu.roll(h1, N - 1, axis=1))     # p1[2j] = pooled[j]

  # ---- Conv1d(16 -> 32, k=3, pad=1) + ReLU: 3 accumulated MXU matmuls -------
  left = shifted(p1, -2, m_ge2)                           # pooled[j-1] @ even lanes
  right = shifted(p1, 2, m_lt2)                           # pooled[j+1] @ even lanes
  w2 = w2_ref[...]                                        # (3, 32, 16)
  h2 = jnp.dot(w2[0], left, preferred_element_type=f32)
  h2 = h2 + jnp.dot(w2[1], p1, preferred_element_type=f32)
  h2 = h2 + jnp.dot(w2[2], right, preferred_element_type=f32)
  h2 = jnp.maximum(h2 + b2_ref[...], 0.0)                 # (32, N); odd lanes unused
  # Odd lanes hold garbage-but-finite ReLU outputs; they are multiplied by
  # exact bf16 zeros in the pooling matmul below, which is safe because no
  # inf/NaN can appear upstream.

  # ---- AdaptiveAvgPool1d(1): bf16 even-lane selection matmul + f32 scale ----
  g = jnp.dot(h2.astype(jnp.bfloat16), pool_ref[...],
              preferred_element_type=f32)                 # (32, Bblk)
  g = g * f32(1.0 / Lh)

  # ---- Linear(32->64) + ReLU, Linear(64->1) + Sigmoid (batch on lanes) ------
  z1 = jnp.dot(fw1_ref[...], g, preferred_element_type=f32) + fb1_ref[...]
  z1 = jnp.maximum(z1, 0.0)                               # (64, Bblk)
  z2 = jnp.dot(fw2_ref[...], z1, preferred_element_type=f32) + fb2_ref[...]
  o_ref[...] = jax.nn.sigmoid(z2).reshape(1, 1, Bblk)


def _round_up(v, m):
  return ((v + m - 1) // m) * m


@functools.lru_cache(maxsize=8)
def _pool_matrix(L, Bblk):
  """bf16 0/1 matrix: pool[m, b] = 1 iff (m // L == b) and (m % 2 == 0).

  Built once per (L, Bblk) outside the jitted forward and cached, so the
  multi-MiB constant is not regenerated (and re-written to HBM) every call.
  The 1/Lh scaling is applied in f32 inside the kernel so bf16 entries stay
  exactly representable.
  """
  m = jnp.arange(Bblk * L)
  sel = ((m % 2) == 0)[:, None] & ((m // L)[:, None] == jnp.arange(Bblk)[None, :])
  return sel.astype(jnp.bfloat16)                         # (N, Bblk)


@functools.partial(jax.jit, static_argnames=("block_batch",))
def _ecg_forward_impl(x, w1, b1, w2, b2, fw1, fb1, fw2, fb2, pool, *, block_batch):
  B, _, L = x.shape
  Bblk = block_batch
  Bpad = _round_up(B, Bblk)
  G = Bpad // Bblk
  N = Bblk * L

  x2 = x[:, 0, :].astype(jnp.float32)                     # (B, L)
  if Bpad != B:
    x2 = jnp.concatenate([x2, jnp.zeros((Bpad - B, L), jnp.float32)], axis=0)
  xf = x2.reshape(G, 1, N)                                # lane-dense blocks

  w1p = jnp.pad(w1[:, 0, :].astype(jnp.float32), ((0, 0), (0, 3)))  # (16, 8)
  w2k = jnp.transpose(w2, (2, 0, 1)).astype(jnp.float32)            # (3, 32, 16)

  const2 = lambda i: (0, 0)
  const3 = lambda i: (0, 0, 0)
  out = pl.pallas_call(
      functools.partial(_ecg_kernel, L=L),
      out_shape=jax.ShapeDtypeStruct((G, 1, Bblk), jnp.float32),
      grid=(G,),
      in_specs=[
          pl.BlockSpec((1, 1, N), lambda i: (i, 0, 0)),    # x block (per step)
          pl.BlockSpec((16, 8), const2),                   # conv1 w (resident)
          pl.BlockSpec((16, 1), const2),                   # conv1 b
          pl.BlockSpec((3, 32, 16), const3),               # conv2 w
          pl.BlockSpec((32, 1), const2),                   # conv2 b
          pl.BlockSpec((64, 32), const2),                  # fc1 w
          pl.BlockSpec((64, 1), const2),                   # fc1 b
          pl.BlockSpec((1, 64), const2),                   # fc2 w
          pl.BlockSpec((1, 1), const2),                    # fc2 b
          pl.BlockSpec((N, Bblk), const2),                 # bf16 pooling matrix
      ],
      out_specs=pl.BlockSpec((1, 1, Bblk), lambda i: (i, 0, 0)),
      scratch_shapes=[pltpu.VMEM((8, N), jnp.float32)],    # conv1 tap staging
      compiler_params=pltpu.CompilerParams(
          dimension_semantics=("parallel",),
          vmem_limit_bytes=48 * 1024 * 1024),
  )(xf, w1p, b1.reshape(16, 1).astype(jnp.float32),
    w2k, b2.reshape(32, 1).astype(jnp.float32),
    fw1.astype(jnp.float32), fb1.reshape(64, 1).astype(jnp.float32),
    fw2.astype(jnp.float32), fb2.reshape(1, 1).astype(jnp.float32),
    pool)
  return out.reshape(Bpad, 1)[:B]


def ecg1dcnn_forward(x, w1, b1, w2, b2, fw1, fb1, fw2, fb2, *, block_batch=None):
  """x: (B, 1, L) float32, like PyTorch NCL input. Returns (B, 1)."""
  B, cin, L = x.shape
  assert cin == 1 and L % 2 == 0
  if block_batch is None:
    # Keep Bblk <= 128 (pool matrix grows as Bblk^2*L, its FLOPs linearly with
    # Bblk) and aim for G >= 2 grid steps so both v7x TensorCores get work.
    block_batch = min(128, _round_up(max((B + 1) // 2, 1), 8))
  pool = _pool_matrix(L, block_batch)
  return _ecg_forward_impl(x, w1, b1, w2, b2, fw1, fb1, fw2, fb2, pool,
                           block_batch=block_batch)


def ref_forward(x, w1, b1, w2, b2, fw1, fb1, fw2, fb2):
  """Pure-JAX reference mirroring the PyTorch forward (sanity check)."""
  B, _, L = x.shape
  Lh = L // 2
  xs = x[:, 0, :]
  xp = jnp.pad(xs, ((0, 0), (2, 2)))
  taps1 = jnp.stack([xp[:, k:k + L] for k in range(5)], axis=1)      # (B,5,L)
  h1 = jnp.einsum('ck,bkl->bcl', w1[:, 0, :], taps1) + b1[None, :, None]
  h1 = jnp.maximum(h1, 0.0)
  p1 = jnp.max(h1.reshape(B, 16, Lh, 2), axis=-1)                    # (B,16,Lh)
  pp = jnp.pad(p1, ((0, 0), (0, 0), (1, 1)))
  taps2 = jnp.stack([pp[:, :, k:k + Lh] for k in range(3)], axis=2)  # (B,16,3,Lh)
  h2 = jnp.einsum('ock,bckl->bol', w2, taps2) + b2[None, :, None]
  h2 = jnp.maximum(h2, 0.0)
  g = jnp.mean(h2, axis=-1)                                          # (B,32)
  z1 = jnp.maximum(g @ fw1.T + fb1, 0.0)
  z2 = z1 @ fw2.T + fb2
  return jax.nn.sigmoid(z2)                                          # (B,1)


if __name__ == "__main__":
  B, L = 20, 128
  key = jax.random.PRNGKey(0)
  ks = jax.random.split(key, 9)

  # Deterministic synthetic parameters (PyTorch parameter shapes).
  w1 = 0.3 * jax.random.normal(ks[0], (16, 1, 5), jnp.float32)    # Conv1d(1,16,5)
  b1 = 0.1 * jax.random.normal(ks[1], (16,), jnp.float32)
  w2 = 0.15 * jax.random.normal(ks[2], (32, 16, 3), jnp.float32)  # Conv1d(16,32,3)
  b2 = 0.1 * jax.random.normal(ks[3], (32,), jnp.float32)
  fw1 = 0.2 * jax.random.normal(ks[4], (64, 32), jnp.float32)     # Linear(32,64)
  fb1 = 0.1 * jax.random.normal(ks[5], (64,), jnp.float32)
  fw2 = 0.2 * jax.random.normal(ks[6], (1, 64), jnp.float32)      # Linear(64,1)
  fb2 = 0.1 * jax.random.normal(ks[7], (1,), jnp.float32)

  x = jax.random.normal(ks[8], (B, 1, L), jnp.float32)

  # Default block_batch -> Bblk=16, G=2: exercises the grid, pipelining,
  # "parallel" dimension semantics and the batch-padding path at demo size.
  out = ecg1dcnn_forward(x, w1, b1, w2, b2, fw1, fb1, fw2, fb2)
  out = jax.block_until_ready(out)

  ref = jax.block_until_ready(ref_forward(x, w1, b1, w2, b2, fw1, fb1, fw2, fb2))
  assert out.shape == (B, 1), out.shape
  # Tolerance loosened (bf16 pooling matmul with f32 accumulation).
  assert jnp.allclose(out, ref, rtol=2e-2, atol=2e-2), (out, ref)

  print("KERNEL_OK")
</pallas_src>

<mosaic_0001>
module attributes {stable_mosaic.version = 11 : i64} {
  func.func @_ecg_kernel(%arg0: i32, %arg1: memref<1x1x2048xf32, #tpu.memory_space<vmem>>, %arg2: memref<16x8xf32, #tpu.memory_space<vmem>>, %arg3: memref<16x1xf32, #tpu.memory_space<vmem>>, %arg4: memref<3x32x16xf32, #tpu.memory_space<vmem>>, %arg5: memref<32x1xf32, #tpu.memory_space<vmem>>, %arg6: memref<64x32xf32, #tpu.memory_space<vmem>>, %arg7: memref<64x1xf32, #tpu.memory_space<vmem>>, %arg8: memref<1x64xf32, #tpu.memory_space<vmem>>, %arg9: memref<1x1xf32, #tpu.memory_space<vmem>>, %arg10: memref<2048x16xbf16, #tpu.memory_space<vmem>>, %arg11: memref<1x1x16xf32, #tpu.memory_space<vmem>>, %arg12: memref<8x2048xf32, #tpu.memory_space<vmem>>) attributes {dimension_semantics = [#tpu.dimension_semantics<parallel>], iteration_bounds = array<i64: 2>, scalar_prefetch = 0 : i64, scratch_operands = 1 : i64, tpu.core_type = #tpu.core_type<tc>, window_params = [{transform_indices = @transform_0, window_bounds = array<i64: 1, 1, 2048>}, {pipeline_mode = #tpu.pipeline_mode<synchronous>, transform_indices = @transform_1, window_bounds = array<i64: 16, 8>}, {pipeline_mode = #tpu.pipeline_mode<synchronous>, transform_indices = @transform_2, window_bounds = array<i64: 16, 1>}, {pipeline_mode = #tpu.pipeline_mode<synchronous>, transform_indices = @transform_3, window_bounds = array<i64: 3, 32, 16>}, {pipeline_mode = #tpu.pipeline_mode<synchronous>, transform_indices = @transform_4, window_bounds = array<i64: 32, 1>}, {pipeline_mode = #tpu.pipeline_mode<synchronous>, transform_indices = @transform_5, window_bounds = array<i64: 64, 32>}, {pipeline_mode = #tpu.pipeline_mode<synchronous>, transform_indices = @transform_6, window_bounds = array<i64: 64, 1>}, {pipeline_mode = #tpu.pipeline_mode<synchronous>, transform_indices = @transform_7, window_bounds = array<i64: 1, 64>}, {pipeline_mode = #tpu.pipeline_mode<synchronous>, transform_indices = @transform_8, window_bounds = array<i64: 1, 1>}, {pipeline_mode = #tpu.pipeline_mode<synchronous>, transform_indices = @transform_9, window_bounds = array<i64: 2048, 16>}, {transform_indices = @transform_10, window_bounds = array<i64: 1, 1, 16>}]} {
    %c0 = arith.constant 0 : index
    %c0_0 = arith.constant 0 : index
    %c0_1 = arith.constant 0 : index
    %0 = vector.load %arg1[%c0, %c0_0, %c0_1] : memref<1x1x2048xf32, #tpu.memory_space<vmem>>, vector<1x1x2048xf32>
    %1 = vector.shape_cast %0 : vector<1x1x2048xf32> to vector<1x2048xf32>
    %2 = tpu.iota {dimensions = array<i32: 1>} : vector<1x2048xi32>
    %c128_i32 = arith.constant 128 : i32
    %c0_i32 = arith.constant 0 : i32
    %3 = arith.cmpi eq, %c128_i32, %c0_i32 : i32
    %c1_i32 = arith.constant 1 : i32
    %4 = arith.select %3, %c1_i32, %c128_i32 : i32
    %5 = vector.broadcast %4 : i32 to vector<1x2048xi32>
    %6 = arith.remsi %2, %5 : vector<1x2048xi32>
    %c0_i32_2 = arith.constant 0 : i32
    %7 = vector.broadcast %c0_i32_2 : i32 to vector<1x2048xi32>
    %8 = arith.cmpi ne, %6, %7 : vector<1x2048xi32>
    %c0_i32_3 = arith.constant 0 : i32
    %9 = vector.broadcast %c0_i32_3 : i32 to vector<1x2048xi32>
    %10 = arith.cmpi slt, %6, %9 : vector<1x2048xi32>
    %c0_i32_4 = arith.constant 0 : i32
    %11 = arith.cmpi slt, %4, %c0_i32_4 : i32
    %12 = vector.broadcast %11 : i1 to vector<1x2048xi1>
    %13 = vector.broadcast %12 : vector<1x2048xi1> to vector<1x2048xi1>
    %14 = arith.xori %10, %13 : vector<1x2048xi1>
    %15 = arith.andi %14, %8 : vector<1x2048xi1>
    %16 = vector.broadcast %4 : i32 to vector<1x2048xi32>
    %17 = arith.addi %6, %16 : vector<1x2048xi32>
    %18 = arith.select %15, %17, %6 : vector<1x2048xi1>, vector<1x2048xi32>
    %c1_i32_5 = arith.constant 1 : i32
    %19 = vector.broadcast %c1_i32_5 : i32 to vector<1x2048xi32>
    %20 = arith.cmpi sge, %18, %19 : vector<1x2048xi32>
    %c2_i32 = arith.constant 2 : i32
    %21 = vector.broadcast %c2_i32 : i32 to vector<1x2048xi32>
    %22 = arith.cmpi sge, %18, %21 : vector<1x2048xi32>
    %c127_i32 = arith.constant 127 : i32
    %23 = vector.broadcast %c127_i32 : i32 to vector<1x2048xi32>
    %24 = arith.cmpi slt, %18, %23 : vector<1x2048xi32>
    %c126_i32 = arith.constant 126 : i32
    %25 = vector.broadcast %c126_i32 : i32 to vector<1x2048xi32>
    %26 = arith.cmpi slt, %18, %25 : vector<1x2048xi32>
    %c2_i32_6 = arith.constant 2 : i32
    %27 = tpu.dynamic_rotate %1 by %c2_i32_6 dim 1 : vector<1x2048xf32>, i32 -> vector<1x2048xf32>
    %cst = arith.constant 0.000000e+00 : f32
    %28 = vector.broadcast %cst : f32 to vector<1x2048xf32>
    %29 = arith.select %22, %27, %28 : vector<1x2048xi1>, vector<1x2048xf32>
    %c0_7 = arith.constant 0 : index
    %c0_8 = arith.constant 0 : index
    %30 = vector.load %arg12[%c0_7, %c0_8] : memref<8x2048xf32, #tpu.memory_space<vmem>>, vector<1x2048xf32>
    tpu.vector_store %arg12[%c0_7, %c0_8], %29 {strides = array<i32>} : memref<8x2048xf32, #tpu.memory_space<vmem>>, vector<1x2048xf32>,
    %c1_i32_9 = arith.constant 1 : i32
    %31 = tpu.dynamic_rotate %1 by %c1_i32_9 dim 1 : vector<1x2048xf32>, i32 -> vector<1x2048xf32>
    %cst_10 = arith.constant 0.000000e+00 : f32
    %32 = vector.broadcast %cst_10 : f32 to vector<1x2048xf32>
    %33 = arith.select %20, %31, %32 : vector<1x2048xi1>, vector<1x2048xf32>
    %c1 = arith.constant 1 : index
    %c0_11 = arith.constant 0 : index
    %34 = vector.load %arg12[%c1, %c0_11] : memref<8x2048xf32, #tpu.memory_space<vmem>>, vector<1x2048xf32>
    tpu.vector_store %arg12[%c1, %c0_11], %33 {strides = array<i32>} : memref<8x2048xf32, #tpu.memory_space<vmem>>, vector<1x2048xf32>,
    %c2 = arith.constant 2 : index
    %c0_12 = arith.constant 0 : index
    %35 = vector.load %arg12[%c2, %c0_12] : memref<8x2048xf32, #tpu.memory_space<vmem>>, vector<1x2048xf32>
    tpu.vector_store %arg12[%c2, %c0_12], %1 {strides = array<i32>} : memref<8x2048xf32, #tpu.memory_space<vmem>>, vector<1x2048xf32>,
    %c2047_i32 = arith.constant 2047 : i32
    %36 = tpu.dynamic_rotate %1 by %c2047_i32 dim 1 : vector<1x2048xf32>, i32 -> vector<1x2048xf32>
    %cst_13 = arith.constant 0.000000e+00 : f32
    %37 = vector.broadcast %cst_13 : f32 to vector<1x2048xf32>
    %38 = arith.select %24, %36, %37 : vector<1x2048xi1>, vector<1x2048xf32>
    %c3 = arith.constant 3 : index
    %c0_14 = arith.constant 0 : index
    %39 = vector.load %arg12[%c3, %c0_14] : memref<8x2048xf32, #tpu.memory_space<vmem>>, vector<1x2048xf32>
    tpu.vector_store %arg12[%c3, %c0_14], %38 {strides = array<i32>} : memref<8x2048xf32, #tpu.memory_space<vmem>>, vector<1x2048xf32>,
    %c2046_i32 = arith.constant 2046 : i32
    %40 = tpu.dynamic_rotate %1 by %c2046_i32 dim 1 : vector<1x2048xf32>, i32 -> vector<1x2048xf32>
    %cst_15 = arith.constant 0.000000e+00 : f32
    %41 = vector.broadcast %cst_15 : f32 to vector<1x2048xf32>
    %42 = arith.select %26, %40, %41 : vector<1x2048xi1>, vector<1x2048xf32>
    %c4 = arith.constant 4 : index
    %c0_16 = arith.constant 0 : index
    %43 = vector.load %arg12[%c4, %c0_16] : memref<8x2048xf32, #tpu.memory_space<vmem>>, vector<1x2048xf32>
    tpu.vector_store %arg12[%c4, %c0_16], %42 {strides = array<i32>} : memref<8x2048xf32, #tpu.memory_space<vmem>>, vector<1x2048xf32>,
    %cst_17 = arith.constant 0.000000e+00 : f32
    %44 = vector.broadcast %cst_17 : f32 to vector<3x2048xf32>
    %c5 = arith.constant 5 : index
    %c0_18 = arith.constant 0 : index
    %45 = vector.load %arg12[%c5, %c0_18] : memref<8x2048xf32, #tpu.memory_space<vmem>>, vector<3x2048xf32>
    tpu.vector_store %arg12[%c5, %c0_18], %44 {strides = array<i32>} : memref<8x2048xf32, #tpu.memory_space<vmem>>, vector<3x2048xf32>,
    %c0_19 = arith.constant 0 : index
    %c0_20 = arith.constant 0 : index
    %46 = vector.load %arg2[%c0_19, %c0_20] : memref<16x8xf32, #tpu.memory_space<vmem>>, vector<16x8xf32>
    %c0_21 = arith.constant 0 : index
    %c0_22 = arith.constant 0 : index
    %47 = vector.load %arg12[%c0_21, %c0_22] : memref<8x2048xf32, #tpu.memory_space<vmem>>, vector<8x2048xf32>
    %cst_23 = arith.constant dense<0.000000e+00> : vector<16x2048xf32>
    %48 = tpu.matmul %46, %47, %cst_23 {dimension_numbers = #tpu.dot_dimension_numbers<[1], [0], [0], [1], [0, 0, 1, 1], [], []>} : vector<16x8xf32>, vector<8x2048xf32>, vector<16x2048xf32> -> vector<16x2048xf32>
    %c0_24 = arith.constant 0 : index
    %c0_25 = arith.constant 0 : index
    %49 = vector.load %arg3[%c0_24, %c0_25] : memref<16x1xf32, #tpu.memory_space<vmem>>, vector<16x1xf32>
    %50 = vector.broadcast %49 : vector<16x1xf32> to vector<16x2048xf32>
    %51 = arith.addf %48, %50 : vector<16x2048xf32>
    %cst_26 = arith.constant 0.000000e+00 : f32
    %52 = vector.broadcast %cst_26 : f32 to vector<16x2048xf32>
    %53 = arith.maximumf %51, %52 : vector<16x2048xf32>
    %c2047_i32_27 = arith.constant 2047 : i32
    %54 = tpu.dynamic_rotate %53 by %c2047_i32_27 dim 1 : vector<16x2048xf32>, i32 -> vector<16x2048xf32>
    %55 = arith.maximumf %53, %54 : vector<16x2048xf32>
    %c2_i32_28 = arith.constant 2 : i32
    %56 = tpu.dynamic_rotate %55 by %c2_i32_28 dim 1 : vector<16x2048xf32>, i32 -> vector<16x2048xf32>
    %cst_29 = arith.constant 0.000000e+00 : f32
    %57 = vector.shape_cast %22 : vector<1x2048xi1> to vector<1x2048xi1>
    %58 = vector.broadcast %57 : vector<1x2048xi1> to vector<16x2048xi1>
    %59 = vector.broadcast %cst_29 : f32 to vector<16x2048xf32>
    %60 = arith.select %58, %56, %59 : vector<16x2048xi1>, vector<16x2048xf32>
    %c2046_i32_30 = arith.constant 2046 : i32
    %61 = tpu.dynamic_rotate %55 by %c2046_i32_30 dim 1 : vector<16x2048xf32>, i32 -> vector<16x2048xf32>
    %cst_31 = arith.constant 0.000000e+00 : f32
    %62 = vector.shape_cast %26 : vector<1x2048xi1> to vector<1x2048xi1>
    %63 = vector.broadcast %62 : vector<1x2048xi1> to vector<16x2048xi1>
    %64 = vector.broadcast %cst_31 : f32 to vector<16x2048xf32>
    %65 = arith.select %63, %61, %64 : vector<16x2048xi1>, vector<16x2048xf32>
    %c0_32 = arith.constant 0 : index
    %c0_33 = arith.constant 0 : index
    %c0_34 = arith.constant 0 : index
    %66 = vector.load %arg4[%c0_32, %c0_33, %c0_34] : memref<3x32x16xf32, #tpu.memory_space<vmem>>, vector<3x32x16xf32>
    %67 = vector.extract_strided_slice %66 {offsets = [0, 0, 0], sizes = [1, 32, 16], strides = [1, 1, 1]} : vector<3x32x16xf32> to vector<1x32x16xf32>
    %68 = vector.shape_cast %67 : vector<1x32x16xf32> to vector<32x16xf32>
    %cst_35 = arith.constant dense<0.000000e+00> : vector<32x2048xf32>
    %69 = tpu.matmul %68, %60, %cst_35 {dimension_numbers = #tpu.dot_dimension_numbers<[1], [0], [0], [1], [0, 0, 1, 1], [], []>} : vector<32x16xf32>, vector<16x2048xf32>, vector<32x2048xf32> -> vector<32x2048xf32>
    %70 = vector.extract_strided_slice %66 {offsets = [1, 0, 0], sizes = [1, 32, 16], strides = [1, 1, 1]} : vector<3x32x16xf32> to vector<1x32x16xf32>
    %71 = vector.shape_cast %70 : vector<1x32x16xf32> to vector<32x16xf32>
    %cst_36 = arith.constant dense<0.000000e+00> : vector<32x2048xf32>
    %72 = tpu.matmul %71, %55, %cst_36 {dimension_numbers = #tpu.dot_dimension_numbers<[1], [0], [0], [1], [0, 0, 1, 1], [], []>} : vector<32x16xf32>, vector<16x2048xf32>, vector<32x2048xf32> -> vector<32x2048xf32>
    %73 = arith.addf %69, %72 : vector<32x2048xf32>
    %74 = vector.extract_strided_slice %66 {offsets = [2, 0, 0], sizes = [1, 32, 16], strides = [1, 1, 1]} : vector<3x32x16xf32> to vector<1x32x16xf32>
    %75 = vector.shape_cast %74 : vector<1x32x16xf32> to vector<32x16xf32>
    %cst_37 = arith.constant dense<0.000000e+00> : vector<32x2048xf32>
    %76 = tpu.matmul %75, %65, %cst_37 {dimension_numbers = #tpu.dot_dimension_numbers<[1], [0], [0], [1], [0, 0, 1, 1], [], []>} : vector<32x16xf32>, vector<16x2048xf32>, vector<32x2048xf32> -> vector<32x2048xf32>
    %77 = arith.addf %73, %76 : vector<32x2048xf32>
    %c0_38 = arith.constant 0 : index
    %c0_39 = arith.constant 0 : index
    %78 = vector.load %arg5[%c0_38, %c0_39] : memref<32x1xf32, #tpu.memory_space<vmem>>, vector<32x1xf32>
    %79 = vector.broadcast %78 : vector<32x1xf32> to vector<32x2048xf32>
    %80 = arith.addf %77, %79 : vector<32x2048xf32>
    %cst_40 = arith.constant 0.000000e+00 : f32
    %81 = vector.broadcast %cst_40 : f32 to vector<32x2048xf32>
    %82 = arith.maximumf %80, %81 : vector<32x2048xf32>
    %83 = arith.truncf %82 : vector<32x2048xf32> to vector<32x2048xbf16>
    %c0_41 = arith.constant 0 : index
    %c0_42 = arith.constant 0 : index
    %84 = vector.load %arg10[%c0_41, %c0_42] : memref<2048x16xbf16, #tpu.memory_space<vmem>>, vector<2048x16xbf16>
    %cst_43 = arith.constant dense<0.000000e+00> : vector<32x16xf32>
    %85 = tpu.matmul %83, %84, %cst_43 {dimension_numbers = #tpu.dot_dimension_numbers<[1], [0], [0], [1], [0, 0, 1, 1], [], []>} : vector<32x2048xbf16>, vector<2048x16xbf16>, vector<32x16xf32> -> vector<32x16xf32>
    %cst_44 = arith.constant 1.562500e-02 : f32
    %86 = vector.broadcast %cst_44 : f32 to vector<32x16xf32>
    %87 = arith.mulf %85, %86 : vector<32x16xf32>
    %c0_45 = arith.constant 0 : index
    %c0_46 = arith.constant 0 : index
    %88 = vector.load %arg6[%c0_45, %c0_46] : memref<64x32xf32, #tpu.memory_space<vmem>>, vector<64x32xf32>
    %cst_47 = arith.constant dense<0.000000e+00> : vector<64x16xf32>
    %89 = tpu.matmul %88, %87, %cst_47 {dimension_numbers = #tpu.dot_dimension_numbers<[1], [0], [0], [1], [0, 0, 1, 1], [], []>} : vector<64x32xf32>, vector<32x16xf32>, vector<64x16xf32> -> vector<64x16xf32>
    %c0_48 = arith.constant 0 : index
    %c0_49 = arith.constant 0 : index
    %90 = vector.load %arg7[%c0_48, %c0_49] : memref<64x1xf32, #tpu.memory_space<vmem>>, vector<64x1xf32>
    %91 = vector.broadcast %90 : vector<64x1xf32> to vector<64x16xf32>
    %92 = arith.addf %89, %91 : vector<64x16xf32>
    %cst_50 = arith.constant 0.000000e+00 : f32
    %93 = vector.broadcast %cst_50 : f32 to vector<64x16xf32>
    %94 = arith.maximumf %92, %93 : vector<64x16xf32>
    %c0_51 = arith.constant 0 : index
    %c0_52 = arith.constant 0 : index
    %95 = vector.load %arg8[%c0_51, %c0_52] : memref<1x64xf32, #tpu.memory_space<vmem>>, vector<1x64xf32>
    %cst_53 = arith.constant dense<0.000000e+00> : vector<1x16xf32>
    %96 = tpu.matmul %95, %94, %cst_53 {dimension_numbers = #tpu.dot_dimension_numbers<[1], [0], [0], [1], [0, 0, 1, 1], [], []>} : vector<1x64xf32>, vector<64x16xf32>, vector<1x16xf32> -> vector<1x16xf32>
    %c0_54 = arith.constant 0 : index
    %c0_55 = arith.constant 0 : index
    %97 = vector.load %arg9[%c0_54, %c0_55] : memref<1x1xf32, #tpu.memory_space<vmem>>, vector<1x1xf32>
    %98 = vector.broadcast %97 : vector<1x1xf32> to vector<1x16xf32>
    %99 = arith.addf %96, %98 : vector<1x16xf32>
    %100 = arith.negf %99 : vector<1x16xf32>
    %101 = math.exp %100 : vector<1x16xf32>
    %cst_56 = arith.constant 1.000000e+00 : f32
    %102 = vector.broadcast %cst_56 : f32 to vector<1x16xf32>
    %103 = arith.addf %102, %101 : vector<1x16xf32>
    %104 = arith.divf %102, %103 : vector<1x16xf32>
    %105 = vector.shape_cast %104 : vector<1x16xf32> to vector<1x1x16xf32>
    %c0_57 = arith.constant 0 : index
    %c0_58 = arith.constant 0 : index
    %c0_59 = arith.constant 0 : index
    %106 = vector.load %arg11[%c0_57, %c0_58, %c0_59] : memref<1x1x16xf32, #tpu.memory_space<vmem>>, vector<1x1x16xf32>
    tpu.vector_store %arg11[%c0_57, %c0_58, %c0_59], %105 {strides = array<i32>} : memref<1x1x16xf32, #tpu.memory_space<vmem>>, vector<1x1x16xf32>,
    return
  }
  func.func @transform_0(%arg0: i32) -> (i32, i32, i32) {
    %c0_i32 = arith.constant 0 : i32
    %c0_i32_0 = arith.constant 0 : i32
    %c0_i32_1 = arith.constant 0 : i32
    return %arg0, %c0_i32, %c0_i32_0 : i32, i32, i32
  }
  func.func @transform_1(%arg0: i32) -> (i32, i32) {
    %c0_i32 = arith.constant 0 : i32
    %c0_i32_0 = arith.constant 0 : i32
    %c0_i32_1 = arith.constant 0 : i32
    return %c0_i32, %c0_i32_0 : i32, i32
  }
  func.func @transform_2(%arg0: i32) -> (i32, i32) {
    %c0_i32 = arith.constant 0 : i32
    %c0_i32_0 = arith.constant 0 : i32
    %c0_i32_1 = arith.constant 0 : i32
    return %c0_i32, %c0_i32_0 : i32, i32
  }
  func.func @transform_3(%arg0: i32) -> (i32, i32, i32) {
    %c0_i32 = arith.constant 0 : i32
    %c0_i32_0 = arith.constant 0 : i32
    %c0_i32_1 = arith.constant 0 : i32
    %c0_i32_2 = arith.constant 0 : i32
    return %c0_i32, %c0_i32_0, %c0_i32_1 : i32, i32, i32
  }
  func.func @transform_4(%arg0: i32) -> (i32, i32) {
    %c0_i32 = arith.constant 0 : i32
    %c0_i32_0 = arith.constant 0 : i32
    %c0_i32_1 = arith.constant 0 : i32
    return %c0_i32, %c0_i32_0 : i32, i32
  }
  func.func @transform_5(%arg0: i32) -> (i32, i32) {
    %c0_i32 = arith.constant 0 : i32
    %c0_i32_0 = arith.constant 0 : i32
    %c0_i32_1 = arith.constant 0 : i32
    return %c0_i32, %c0_i32_0 : i32, i32
  }
  func.func @transform_6(%arg0: i32) -> (i32, i32) {
    %c0_i32 = arith.constant 0 : i32
    %c0_i32_0 = arith.constant 0 : i32
    %c0_i32_1 = arith.constant 0 : i32
    return %c0_i32, %c0_i32_0 : i32, i32
  }
  func.func @transform_7(%arg0: i32) -> (i32, i32) {
    %c0_i32 = arith.constant 0 : i32
    %c0_i32_0 = arith.constant 0 : i32
    %c0_i32_1 = arith.constant 0 : i32
    return %c0_i32, %c0_i32_0 : i32, i32
  }
  func.func @transform_8(%arg0: i32) -> (i32, i32) {
    %c0_i32 = arith.constant 0 : i32
    %c0_i32_0 = arith.constant 0 : i32
    %c0_i32_1 = arith.constant 0 : i32
    return %c0_i32, %c0_i32_0 : i32, i32
  }
  func.func @transform_9(%arg0: i32) -> (i32, i32) {
    %c0_i32 = arith.constant 0 : i32
    %c0_i32_0 = arith.constant 0 : i32
    %c0_i32_1 = arith.constant 0 : i32
    return %c0_i32, %c0_i32_0 : i32, i32
  }
  func.func @transform_10(%arg0: i32) -> (i32, i32, i32) {
    %c0_i32 = arith.constant 0 : i32
    %c0_i32_0 = arith.constant 0 : i32
    %c0_i32_1 = arith.constant 0 : i32
    return %arg0, %c0_i32, %c0_i32_0 : i32, i32, i32
  }
}

</mosaic_0001>

<llo_original>
// kernel: _ecg_forward_impl.1
$region0: #{_ecg_forward_impl.1}
  #allocation0 [shape = 'u32[]', space=smem, size = 0x4, offset = 0x4, fixed_abs, tag = 'smem constant byte address 0x4 - core index']
  #allocation1 [shape = 'u32[72,128]{1,0:T(1,128)}', space=vmem, size = 0x9000, scoped, tag = 'internal scratch']
  #allocation2 [shape = 'f32[8,2048]{1,0:T(8,128)}', space=vmem, size = 0x10000, scoped, tag = 'scratch operand']
  #allocation3 [shape = 'f32[1,1]{1,0:T(1,128)S(1)}', space=vmem, size = 0x200, scoped, tag = 'scoped memory for _ecg_forward_impl.1']
  %s0 = inlined_call_operand.vmem [shape: f32[2,1,2048], index: 0, kind: input, shape index: {}]
  %s1 = inlined_call_operand.vmem [shape: f32[16,8], index: 1, kind: input, shape index: {}]
  %s2 = inlined_call_operand.vmem [shape: f32[16,1], index: 2, kind: input, shape index: {}]
  %s3 = inlined_call_operand.vmem [shape: f32[3,32,16], index: 3, kind: input, shape index: {}]
  %s4 = inlined_call_operand.vmem [shape: f32[32,1], index: 4, kind: input, shape index: {}]
  %s5 = inlined_call_operand.vmem [shape: f32[64,32], index: 5, kind: input, shape index: {}]
  %s6 = inlined_call_operand.vmem [shape: f32[64,1], index: 6, kind: input, shape index: {}]
  %s7 = inlined_call_operand.vmem [shape: f32[1,64], index: 7, kind: input, shape index: {}]
  %s8 = inlined_call_operand.<no memory space> [shape: f32[1,1], index: 8, kind: input, shape index: {}]
  %s9 = inlined_call_operand.vmem [shape: bf16[2048,16], index: 9, kind: input, shape index: {}]
  %s10 = inlined_call_operand.vmem [shape: f32[2,1,16], index: 10, kind: output, shape index: {}]
  %s11 = sld [smem:[#allocation0]]
  $region73: #{_ecg_forward_impl.1} parent=0
    _
  %s13 = ssub.s32 1, %s11
  %s14 = scalar_select 0, %s13, %s11
  %v15 = vstv %s8
  %16 = vst [vmem:[#allocation3] sm:$0x1] %v15
  loop: start=0, step=1, limit=4
  $region2: #{_ecg_forward_impl.1} parent=0 // loop_pre_header
    _
  $region3: #{_ecg_forward_impl.1} parent=0 // loop_header
    %s18 = sphi 0, %s22
    %p19 = scmp.ge.s32.totalorder %s18, 4
    %s28 = sphi 0, %s30
    %s31 = sphi 0, %s28
    %s32 = sphi 0, %s31
    %s48 = sphi 0, %s32
    %s52 = sphi 0, %s52
    %s54 = sphi 0, %s52
    %s55 = sphi 0, %s54
    %s69 = sphi 0, %s55
    %s73 = sphi 0, %s73
    %s75 = sphi 0, %s73
    %s76 = sphi 0, %s75
    %s90 = sphi 0, %s76
    %s94 = sphi 0, %s94
    %s96 = sphi 0, %s94
    %s97 = sphi 0, %s96
    %s111 = sphi 0, %s97
    %s115 = sphi 0, %s115
    %s117 = sphi 0, %s115
    %s118 = sphi 0, %s117
    %s132 = sphi 0, %s118
    %s136 = sphi 0, %s136
    %s138 = sphi 0, %s136
    %s139 = sphi 0, %s138
    %s153 = sphi 0, %s139
    %s157 = sphi 0, %s157
    %s159 = sphi 0, %s157
    %s160 = sphi 0, %s159
    %s174 = sphi 0, %s160
    %s178 = sphi 0, %s178
    %s180 = sphi 0, %s178
    %s181 = sphi 0, %s180
    %s195 = sphi 0, %s181
    %s199 = sphi 0, %s199
    %s201 = sphi 0, %s199
    %s202 = sphi 0, %s201
    %s216 = sphi 0, %s202
    %s220 = sphi 0, %s220
    %s222 = sphi 0, %s220
    %s223 = sphi 0, %s222
    %s237 = sphi 0, %s223
    %s243 = sphi 0, %s245
    %s246 = sphi 0, %s243
    %s247 = sphi 0, %s246
    %s263 = sphi 0, %s247
  $region4: #{_ecg_forward_impl.1} parent=0 // loop_header_branch
    %21 = sbr.rel (%p19) target = $region8
  $region5: #{_ecg_forward_impl.1} parent=0 // loop_body
    %s23 = ssub.s32 %s18, 1
    %s24 = ssub.s32 %s18, 2
    %s25 = sadd.s32 %s18, 1
    %s26 = ssub.s32 %s18, %s25
    %p27 = scmp.eq.s32.totalorder %s26, 0
    %s29 = sadd.s32 %s28, 1
    %s30 = scalar_select %p27, %s28, %s29
    %p33 = pneg %p27
    %p34 = scmp.eq.s32.totalorder %s18, 1
    %p35 = por %p33, %p34
    %p36 = scmp.ne.s32.totalorder %s28, %s31
    %p37 = scmp.eq.s32.totalorder %s18, 0
    %p38 = por %p36, %p37
    %p39 = scmp.ne.s32.totalorder %s28, %s31
    %p40 = scmp.eq.s32.totalorder %s23, 1
    %p41 = por %p39, %p40
    %p42 = scmp.ne.s32.totalorder %s31, %s32
    %p43 = scmp.eq.s32.totalorder %s23, 0
    %p44 = por %p42, %p43
    %p45 = scmp.ne.s32.totalorder %s31, %s32
    %p46 = scmp.eq.s32.totalorder %s24, 1
    %p47 = por %p45, %p46
    %p49 = scmp.ne.s32.totalorder %s32, %s48
    %p50 = scmp.eq.s32.totalorder %s24, 0
    %p51 = por %p49, %p50
    %s53 = sadd.s32 %s52, 1
    %p56 = scmp.eq.s32.totalorder %s18, 1
    %p57 = scmp.ne.s32.totalorder %s52, %s54
    %p58 = scmp.eq.s32.totalorder %s18, 0
    %p59 = por %p57, %p58
    %p60 = scmp.ne.s32.totalorder %s52, %s54
    %p61 = scmp.eq.s32.totalorder %s23, 1
    %p62 = por %p60, %p61
    %p63 = scmp.ne.s32.totalorder %s54, %s55
    %p64 = scmp.eq.s32.totalorder %s23, 0
    %p65 = por %p63, %p64
    %p66 = scmp.ne.s32.totalorder %s54, %s55
    %p67 = scmp.eq.s32.totalorder %s24, 1
    %p68 = por %p66, %p67
    %p70 = scmp.ne.s32.totalorder %s55, %s69
    %p71 = scmp.eq.s32.totalorder %s24, 0
    %p72 = por %p70, %p71
    %s74 = sadd.s32 %s73, 1
    %p77 = scmp.eq.s32.totalorder %s18, 1
    %p78 = scmp.ne.s32.totalorder %s73, %s75
    %p79 = scmp.eq.s32.totalorder %s18, 0
    %p80 = por %p78, %p79
    %p81 = scmp.ne.s32.totalorder %s73, %s75
    %p82 = scmp.eq.s32.totalorder %s23, 1
    %p83 = por %p81, %p82
    %p84 = scmp.ne.s32.totalorder %s75, %s76
    %p85 = scmp.eq.s32.totalorder %s23, 0
    %p86 = por %p84, %p85
    %p87 = scmp.ne.s32.totalorder %s75, %s76
    %p88 = scmp.eq.s32.totalorder %s24, 1
    %p89 = por %p87, %p88
    %p91 = scmp.ne.s32.totalorder %s76, %s90
    %p92 = scmp.eq.s32.totalorder %s24, 0
    %p93 = por %p91, %p92
    %s95 = sadd.s32 %s94, 1
    %p98 = scmp.eq.s32.totalorder %s18, 1
    %p99 = scmp.ne.s32.totalorder %s94, %s96
    %p100 = scmp.eq.s32.totalorder %s18, 0
    %p101 = por %p99, %p100
    %p102 = scmp.ne.s32.totalorder %s94, %s96
    %p103 = scmp.eq.s32.totalorder %s23, 1
    %p104 = por %p102, %p103
    %p105 = scmp.ne.s32.totalorder %s96, %s97
    %p106 = scmp.eq.s32.totalorder %s23, 0
    %p107 = por %p105, %p106
    %p108 = scmp.ne.s32.totalorder %s96, %s97
    %p109 = scmp.eq.s32.totalorder %s24, 1
    %p110 = por %p108, %p109
    %p112 = scmp.ne.s32.totalorder %s97, %s111
    %p113 = scmp.eq.s32.totalorder %s24, 0
    %p114 = por %p112, %p113
    %s116 = sadd.s32 %s115, 1
    %p119 = scmp.eq.s32.totalorder %s18, 1
    %p120 = scmp.ne.s32.totalorder %s115, %s117
    %p121 = scmp.eq.s32.totalorder %s18, 0
    %p122 = por %p120, %p121
    %p123 = scmp.ne.s32.totalorder %s115, %s117
    %p124 = scmp.eq.s32.totalorder %s23, 1
    %p125 = por %p123, %p124
    %p126 = scmp.ne.s32.totalorder %s117, %s118
    %p127 = scmp.eq.s32.totalorder %s23, 0
    %p128 = por %p126, %p127
    %p129 = scmp.ne.s32.totalorder %s117, %s118
    %p130 = scmp.eq.s32.totalorder %s24, 1
    %p131 = por %p129, %p130
    %p133 = scmp.ne.s32.totalorder %s118, %s132
    %p134 = scmp.eq.s32.totalorder %s24, 0
    %p135 = por %p133, %p134
    %s137 = sadd.s32 %s136, 1
    %p140 = scmp.eq.s32.totalorder %s18, 1
    %p141 = scmp.ne.s32.totalorder %s136, %s138
    %p142 = scmp.eq.s32.totalorder %s18, 0
    %p143 = por %p141, %p142
    %p144 = scmp.ne.s32.totalorder %s136, %s138
    %p145 = scmp.eq.s32.totalorder %s23, 1
    %p146 = por %p144, %p145
    %p147 = scmp.ne.s32.totalorder %s138, %s139
    %p148 = scmp.eq.s32.totalorder %s23, 0
    %p149 = por %p147, %p148
    %p150 = scmp.ne.s32.totalorder %s138, %s139
    %p151 = scmp.eq.s32.totalorder %s24, 1
    %p152 = por %p150, %p151
    %p154 = scmp.ne.s32.totalorder %s139, %s153
    %p155 = scmp.eq.s32.totalorder %s24, 0
    %p156 = por %p154, %p155
    %s158 = sadd.s32 %s157, 1
    %p161 = scmp.eq.s32.totalorder %s18, 1
    %p162 = scmp.ne.s32.totalorder %s157, %s159
    %p163 = scmp.eq.s32.totalorder %s18, 0
    %p164 = por %p162, %p163
    %p165 = scmp.ne.s32.totalorder %s157, %s159
    %p166 = scmp.eq.s32.totalorder %s23, 1
    %p167 = por %p165, %p166
    %p168 = scmp.ne.s32.totalorder %s159, %s160
    %p169 = scmp.eq.s32.totalorder %s23, 0
    %p170 = por %p168, %p169
    %p171 = scmp.ne.s32.totalorder %s159, %s160
    %p172 = scmp.eq.s32.totalorder %s24, 1
    %p173 = por %p171, %p172
    %p175 = scmp.ne.s32.totalorder %s160, %s174
    %p176 = scmp.eq.s32.totalorder %s24, 0
    %p177 = por %p175, %p176
    %s179 = sadd.s32 %s178, 1
    %p182 = scmp.eq.s32.totalorder %s18, 1
    %p183 = scmp.ne.s32.totalorder %s178, %s180
    %p184 = scmp.eq.s32.totalorder %s18, 0
    %p185 = por %p183, %p184
    %p186 = scmp.ne.s32.totalorder %s178, %s180
    %p187 = scmp.eq.s32.totalorder %s23, 1
    %p188 = por %p186, %p187
    %p189 = scmp.ne.s32.totalorder %s180, %s181
    %p190 = scmp.eq.s32.totalorder %s23, 0
    %p191 = por %p189, %p190
    %p192 = scmp.ne.s32.totalorder %s180, %s181
    %p193 = scmp.eq.s32.totalorder %s24, 1
    %p194 = por %p192, %p193
    %p196 = scmp.ne.s32.totalorder %s181, %s195
    %p197 = scmp.eq.s32.totalorder %s24, 0
    %p198 = por %p196, %p197
    %s200 = sadd.s32 %s199, 1
    %p203 = scmp.eq.s32.totalorder %s18, 1
    %p204 = scmp.ne.s32.totalorder %s199, %s201
    %p205 = scmp.eq.s32.totalorder %s18, 0
    %p206 = por %p204, %p205
    %p207 = scmp.ne.s32.totalorder %s199, %s201
    %p208 = scmp.eq.s32.totalorder %s23, 1
    %p209 = por %p207, %p208
    %p210 = scmp.ne.s32.totalorder %s201, %s202
    %p211 = scmp.eq.s32.totalorder %s23, 0
    %p212 = por %p210, %p211
    %p213 = scmp.ne.s32.totalorder %s201, %s202
    %p214 = scmp.eq.s32.totalorder %s24, 1
    %p215 = por %p213, %p214
    %p217 = scmp.ne.s32.totalorder %s202, %s216
    %p218 = scmp.eq.s32.totalorder %s24, 0
    %p219 = por %p217, %p218
    %s221 = sadd.s32 %s220, 1
    %p224 = scmp.eq.s32.totalorder %s18, 1
    %p225 = scmp.ne.s32.totalorder %s220, %s222
    %p226 = scmp.eq.s32.totalorder %s18, 0
    %p227 = por %p225, %p226
    %p228 = scmp.ne.s32.totalorder %s220, %s222
    %p229 = scmp.eq.s32.totalorder %s23, 1
    %p230 = por %p228, %p229
    %p231 = scmp.ne.s32.totalorder %s222, %s223
    %p232 = scmp.eq.s32.totalorder %s23, 0
    %p233 = por %p231, %p232
    %p234 = scmp.ne.s32.totalorder %s222, %s223
    %p235 = scmp.eq.s32.totalorder %s24, 1
    %p236 = por %p234, %p235
    %p238 = scmp.ne.s32.totalorder %s223, %s237
    %p239 = scmp.eq.s32.totalorder %s24, 0
    %p240 = por %p238, %p239
    %s241 = ssub.s32 %s18, %s25
    %p242 = scmp.eq.s32.totalorder %s241, 0
    %s244 = sadd.s32 %s243, 1
    %s245 = scalar_select %p242, %s243, %s244
    %p248 = pneg %p242
    %p249 = scmp.eq.s32.totalorder %s18, 1
    %p250 = por %p248, %p249
    %p251 = scmp.ne.s32.totalorder %s243, %s246
    %p252 = scmp.eq.s32.totalorder %s18, 0
    %p253 = por %p251, %p252
    %p254 = scmp.ne.s32.totalorder %s243, %s246
    %p255 = scmp.eq.s32.totalorder %s23, 1
    %p256 = por %p254, %p255
    %p257 = scmp.ne.s32.totalorder %s246, %s247
    %p258 = scmp.eq.s32.totalorder %s23, 0
    %p259 = por %p257, %p258
    %p260 = scmp.ne.s32.totalorder %s246, %s247
    %p261 = scmp.eq.s32.totalorder %s24, 1
    %p262 = por %p260, %p261
    %p264 = scmp.ne.s32.totalorder %s247, %s263
    %p265 = scmp.eq.s32.totalorder %s24, 0
    %p266 = por %p264, %p265
    %p267 = scmp.le.s32.totalorder 1, %s18
    %p268 = scmp.lt.s32.totalorder %s18, 3
    %p269 = pnand %p267, %p268
    %p270 = pneg %p269
    // Predicated region
    $region9: #{_ecg_forward_impl.1} parent=5 // pred_check
      _
    $region10: #{_ecg_forward_impl.1} parent=5 // pred_check_branch
      %272 = sbr.rel (%p269) target = $region12
    $region11: #{_ecg_forward_impl.1} parent=5 // pred_region
      %s273 = ssub.s32 %s18, 1
      // Predicated region
      $region13: #{_ecg_forward_impl.1} parent=11 // pred_check
        %p274 = pneg %p65
      $region14: #{_ecg_forward_impl.1} parent=11 // pred_check_branch
        %276 = sbr.rel (%p274) target = $region16
      $region15: #{_ecg_forward_impl.1} parent=11 // pred_region
        _
      $region16: #{_ecg_forward_impl.1} parent=11 // pred_fallthru
        _
      // Predicated region
      $region17: #{_ecg_forward_impl.1} parent=11 // pred_check
        %p277 = pneg %p86
      $region18: #{_ecg_forward_impl.1} parent=11 // pred_check_branch
        %279 = sbr.rel (%p277) target = $region20
      $region19: #{_ecg_forward_impl.1} parent=11 // pred_region
        _
      $region20: #{_ecg_forward_impl.1} parent=11 // pred_fallthru
        _
      // Predicated region
      $region21: #{_ecg_forward_impl.1} parent=11 // pred_check
        %p280 = pneg %p107
      $region22: #{_ecg_forward_impl.1} parent=11 // pred_check_branch
        %282 = sbr.rel (%p280) target = $region24
      $region23: #{_ecg_forward_impl.1} parent=11 // pred_region
        _
      $region24: #{_ecg_forward_impl.1} parent=11 // pred_fallthru
        _
      // Predicated region
      $region25: #{_ecg_forward_impl.1} parent=11 // pred_check
        %p283 = pneg %p128
      $region26: #{_ecg_forward_impl.1} parent=11 // pred_check_branch
        %285 = sbr.rel (%p283) target = $region28
      $region27: #{_ecg_forward_impl.1} parent=11 // pred_region
        _
      $region28: #{_ecg_forward_impl.1} parent=11 // pred_fallthru
        _
      // Predicated region
      $region29: #{_ecg_forward_impl.1} parent=11 // pred_check
        %p286 = pneg %p149
      $region30: #{_ecg_forward_impl.1} parent=11 // pred_check_branch
        %288 = sbr.rel (%p286) target = $region32
      $region31: #{_ecg_forward_impl.1} parent=11 // pred_region
        _
      $region32: #{_ecg_forward_impl.1} parent=11 // pred_fallthru
        _
      // Predicated region
      $region33: #{_ecg_forward_impl.1} parent=11 // pred_check
        %p289 = pneg %p170
      $region34: #{_ecg_forward_impl.1} parent=11 // pred_check_branch
        %291 = sbr.rel (%p289) target = $region36
      $region35: #{_ecg_forward_impl.1} parent=11 // pred_region
        _
      $region36: #{_ecg_forward_impl.1} parent=11 // pred_fallthru
        _
      // Predicated region
      $region37: #{_ecg_forward_impl.1} parent=11 // pred_check
        %p292 = pneg %p191
      $region38: #{_ecg_forward_impl.1} parent=11 // pred_check_branch
        %294 = sbr.rel (%p292) target = $region40
      $region39: #{_ecg_forward_impl.1} parent=11 // pred_region
        _
      $region40: #{_ecg_forward_impl.1} parent=11 // pred_fallthru
        _
      // Predicated region
      $region41: #{_ecg_forward_impl.1} parent=11 // pred_check
        %p295 = pneg %p212
      $region42: #{_ecg_forward_impl.1} parent=11 // pred_check_branch
        %297 = sbr.rel (%p295) target = $region44
      $region43: #{_ecg_forward_impl.1} parent=11 // pred_region
        _
      $region44: #{_ecg_forward_impl.1} parent=11 // pred_fallthru
        _
      // Predicated region
      $region45: #{_ecg_forward_impl.1} parent=11 // pred_check
        %p298 = pneg %p233
      $region46: #{_ecg_forward_impl.1} parent=11 // pred_check_branch
        %300 = sbr.rel (%p298) target = $region48
      $region47: #{_ecg_forward_impl.1} parent=11 // pred_region
        _
      $region48: #{_ecg_forward_impl.1} parent=11 // pred_fallthru
        _
    $region12: #{_ecg_forward_impl.1} parent=5 // pred_fallthru
      _
    %p301 = scmp.lt.s32.totalorder %s18, 2
    // Predicated region
    $region49: #{_ecg_forward_impl.1} parent=5 // pred_check
      %p302 = pneg %p301
    $region50: #{_ecg_forward_impl.1} parent=5 // pred_check_branch
      %304 = sbr.rel (%p302) target = $region52
    $region51: #{_ecg_forward_impl.1} parent=5 // pred_region
      // Predicated region
      $region53: #{_ecg_forward_impl.1} parent=51 // pred_check
        %p305 = pneg %p38
      $region54: #{_ecg_forward_impl.1} parent=51 // pred_check_branch
        %307 = sbr.rel (%p305) target = $region56
      $region55: #{_ecg_forward_impl.1} parent=51 // pred_region
        %p308 = scmp.lt.s32.totalorder %s18, 1
        %s309 = scalar_select %p308, %s18, 1
        %s310 = smul.addr %s309, 16
        %s311 = scalar_lea.vmem %s0, %s310
      $region56: #{_ecg_forward_impl.1} parent=51 // pred_fallthru
        _
    $region52: #{_ecg_forward_impl.1} parent=5 // pred_fallthru
      _
    %p312 = scmp.le.s32.totalorder 1, %s18
    %p313 = scmp.lt.s32.totalorder %s18, 3
    %p314 = pnand %p312, %p313
    %p315 = pneg %p314
    // Predicated region
    $region57: #{_ecg_forward_impl.1} parent=5 // pred_check
      _
    $region58: #{_ecg_forward_impl.1} parent=5 // pred_check_branch
      %317 = sbr.rel (%p314) target = $region60
    $region59: #{_ecg_forward_impl.1} parent=5 // pred_region
      %s318 = ssub.s32 %s18, 1
      %p319 = scmp.lt.s32.totalorder %s23, 1
      %s320 = scalar_select %p319, %s23, 1
      %s321 = smul.addr %s320, 16
      %s322 = scalar_lea.vmem %s0, %s321
      %p323 = pneg %p44
      %p324 = pneg %p41
      %p325 = pneg %p65
      %p326 = pneg %p62
      %p327 = pneg %p86
      %p328 = pneg %p83
      %p329 = pneg %p107
      %p330 = pneg %p104
      %p331 = pneg %p128
      %p332 = pneg %p125
      %p333 = pneg %p149
      %p334 = pneg %p146
      %p335 = pneg %p170
      %p336 = pneg %p167
      %p337 = pneg %p191
      %p338 = pneg %p188
      %p339 = pneg %p212
      %p340 = pneg %p209
      %p341 = pneg %p233
      %p342 = pneg %p230
      %p343 = pneg %p259
      %p344 = pneg %p256
      %p345 = scmp.lt.s32.totalorder %s23, 1
      %s346 = scalar_select %p345, %s23, 1
      %s347 = scalar_lea.vmem %s10, %s346
      %p348 = scmp.lt.s32.totalorder %s23, 1
      %s349 = scalar_select %p348, %s23, 1
      %s350 = smul.addr %s349, 16
      %s351 = scalar_lea.vmem %s0, %s350
      %p352 = scmp.lt.s32.totalorder %s23, 1
      %s353 = scalar_select %p352, %s23, 1
      %s354 = scalar_lea.vmem %s10, %s353
      %v355 = vld [vmem:[%s351] sm:$0xff]
      %v356 = vld [vmem:[%s351 + $0x8] sm:$0xff]
      %v357 = vlaneseq
      %v358 = vand.u32 %v357, 127
      %v359 = vadd.s32 %v358, 128
      %v360 = vadd.s32 %v358, 256
      %v361 = vadd.s32 %v358, 384
      %v362 = vadd.s32 %v358, 512
      %v363 = vadd.s32 %v358, 640
      %v364 = vadd.s32 %v358, 768
      %v365 = vadd.s32 %v358, 896
      %v366 = vadd.s32 %v358, 1024
      %v367 = vadd.s32 %v358, 1152
      %v368 = vadd.s32 %v358, 1280
      %v369 = vadd.s32 %v358, 1408
      %v370 = vadd.s32 %v358, 1536
      %v371 = vadd.s32 %v358, 1664
      %v372 = vadd.s32 %v358, 1792
      %v373 = vadd.s32 %v358, 1920
      %vm374 = vcmp.lt.s32.totalorder %v358, 0
      %v375 = vsub.s32 0, %v358
      %v376 = vsel %vm374, %v375, %v358
      %v377 = vshrl.u32 %v376, 7
      %v378 = vand.u32 %v376, 127
      %v379 = vsub.s32 0, %v378
      %v380 = vsel %vm374, %v379, %v378
      %vm381 = vcmp.lt.s32.totalorder %v359, 0
      %v382 = vsub.s32 0, %v359
      %v383 = vsel %vm381, %v382, %v359
      %v384 = vshrl.u32 %v383, 7
      %v385 = vand.u32 %v383, 127
      %v386 = vsub.s32 0, %v385
      %v387 = vsel %vm381, %v386, %v385
      %vm388 = vcmp.lt.s32.totalorder %v360, 0
      %v389 = vsub.s32 0, %v360
      %v390 = vsel %vm388, %v389, %v360
      %v391 = vshrl.u32 %v390, 7
      %v392 = vand.u32 %v390, 127
      %v393 = vsub.s32 0, %v392
      %v394 = vsel %vm388, %v393, %v392
      %vm395 = vcmp.lt.s32.totalorder %v361, 0
      %v396 = vsub.s32 0, %v361
      %v397 = vsel %vm395, %v396, %v361
      %v398 = vshrl.u32 %v397, 7
      %v399 = vand.u32 %v397, 127
      %v400 = vsub.s32 0, %v399
      %v401 = vsel %vm395, %v400, %v399
      %vm402 = vcmp.lt.s32.totalorder %v362, 0
      %v403 = vsub.s32 0, %v362
      %v404 = vsel %vm402, %v403, %v362
      %v405 = vshrl.u32 %v404, 7
      %v406 = vand.u32 %v404, 127
      %v407 = vsub.s32 0, %v406
      %v408 = vsel %vm402, %v407, %v406
      %vm409 = vcmp.lt.s32.totalorder %v363, 0
      %v410 = vsub.s32 0, %v363
      %v411 = vsel %vm409, %v410, %v363
      %v412 = vshrl.u32 %v411, 7
      %v413 = vand.u32 %v411, 127
      %v414 = vsub.s32 0, %v413
      %v415 = vsel %vm409, %v414, %v413
      %vm416 = vcmp.lt.s32.totalorder %v364, 0
      %v417 = vsub.s32 0, %v364
      %v418 = vsel %vm416, %v417, %v364
      %v419 = vshrl.u32 %v418, 7
      %v420 = vand.u32 %v418, 127
      %v421 = vsub.s32 0, %v420
      %v422 = vsel %vm416, %v421, %v420
      %vm423 = vcmp.lt.s32.totalorder %v365, 0
      %v424 = vsub.s32 0, %v365
      %v425 = vsel %vm423, %v424, %v365
      %v426 = vshrl.u32 %v425, 7
      %v427 = vand.u32 %v425, 127
      %v428 = vsub.s32 0, %v427
      %v429 = vsel %vm423, %v428, %v427
      %vm430 = vcmp.lt.s32.totalorder %v366, 0
      %v431 = vsub.s32 0, %v366
      %v432 = vsel %vm430, %v431, %v366
      %v433 = vshrl.u32 %v432, 7
      %v434 = vand.u32 %v432, 127
      %v435 = vsub.s32 0, %v434
      %v436 = vsel %vm430, %v435, %v434
      %vm437 = vcmp.lt.s32.totalorder %v367, 0
      %v438 = vsub.s32 0, %v367
      %v439 = vsel %vm437, %v438, %v367
      %v440 = vshrl.u32 %v439, 7
      %v441 = vand.u32 %v439, 127
      %v442 = vsub.s32 0, %v441
      %v443 = vsel %vm437, %v442, %v441
      %vm444 = vcmp.lt.s32.totalorder %v368, 0
      %v445 = vsub.s32 0, %v368
      %v446 = vsel %vm444, %v445, %v368
      %v447 = vshrl.u32 %v446, 7
      %v448 = vand.u32 %v446, 127
      %v449 = vsub.s32 0, %v448
      %v450 = vsel %vm444, %v449, %v448
      %vm451 = vcmp.lt.s32.totalorder %v369, 0
      %v452 = vsub.s32 0, %v369
      %v453 = vsel %vm451, %v452, %v369
      %v454 = vshrl.u32 %v453, 7
      %v455 = vand.u32 %v453, 127
      %v456 = vsub.s32 0, %v455
      %v457 = vsel %vm451, %v456, %v455
      %vm458 = vcmp.lt.s32.totalorder %v370, 0
      %v459 = vsub.s32 0, %v370
      %v460 = vsel %vm458, %v459, %v370
      %v461 = vshrl.u32 %v460, 7
      %v462 = vand.u32 %v460, 127
      %v463 = vsub.s32 0, %v462
      %v464 = vsel %vm458, %v463, %v462
      %vm465 = vcmp.lt.s32.totalorder %v371, 0
      %v466 = vsub.s32 0, %v371
      %v467 = vsel %vm465, %v466, %v371
      %v468 = vshrl.u32 %v467, 7
      %v469 = vand.u32 %v467, 127
      %v470 = vsub.s32 0, %v469
      %v471 = vsel %vm465, %v470, %v469
      %vm472 = vcmp.lt.s32.totalorder %v372, 0
      %v473 = vsub.s32 0, %v372
      %v474 = vsel %vm472, %v473, %v372
      %v475 = vshrl.u32 %v474, 7
      %v476 = vand.u32 %v474, 127
      %v477 = vsub.s32 0, %v476
      %v478 = vsel %vm472, %v477, %v476
      %vm479 = vcmp.lt.s32.totalorder %v373, 0
      %v480 = vsub.s32 0, %v373
      %v481 = vsel %vm479, %v480, %v373
      %v482 = vshrl.u32 %v481, 7
      %v483 = vand.u32 %v481, 127
      %v484 = vsub.s32 0, %v483
      %v485 = vsel %vm479, %v484, %v483
      %vm486 = vcmp.ne.s32.totalorder %v380, 0
      %vm487 = vcmp.ne.s32.totalorder %v387, 0
      %vm488 = vcmp.ne.s32.totalorder %v394, 0
      %vm489 = vcmp.ne.s32.totalorder %v401, 0
      %vm490 = vcmp.ne.s32.totalorder %v408, 0
      %vm491 = vcmp.ne.s32.totalorder %v415, 0
      %vm492 = vcmp.ne.s32.totalorder %v422, 0
      %vm493 = vcmp.ne.s32.totalorder %v429, 0
      %vm494 = vcmp.ne.s32.totalorder %v436, 0
      %vm495 = vcmp.ne.s32.totalorder %v443, 0
      %vm496 = vcmp.ne.s32.totalorder %v450, 0
      %vm497 = vcmp.ne.s32.totalorder %v457, 0
      %vm498 = vcmp.ne.s32.totalorder %v464, 0
      %vm499 = vcmp.ne.s32.totalorder %v471, 0
      %vm500 = vcmp.ne.s32.totalorder %v478, 0
      %vm501 = vcmp.ne.s32.totalorder %v485, 0
      %vm502 = vcmp.lt.s32.totalorder %v380, 0
      %vm503 = vcmp.lt.s32.totalorder %v387, 0
      %vm504 = vcmp.lt.s32.totalorder %v394, 0
      %vm505 = vcmp.lt.s32.totalorder %v401, 0
      %vm506 = vcmp.lt.s32.totalorder %v408, 0
      %vm507 = vcmp.lt.s32.totalorder %v415, 0
      %vm508 = vcmp.lt.s32.totalorder %v422, 0
      %vm509 = vcmp.lt.s32.totalorder %v429, 0
      %vm510 = vcmp.lt.s32.totalorder %v436, 0
      %vm511 = vcmp.lt.s32.totalorder %v443, 0
      %vm512 = vcmp.lt.s32.totalorder %v450, 0
      %vm513 = vcmp.lt.s32.totalorder %v457, 0
      %vm514 = vcmp.lt.s32.totalorder %v464, 0
      %vm515 = vcmp.lt.s32.totalorder %v471, 0
      %vm516 = vcmp.lt.s32.totalorder %v478, 0
      %vm517 = vcmp.lt.s32.totalorder %v485, 0
      %vm518 = vmand %vm502, %vm486
      %vm519 = vmand %vm503, %vm487
      %vm520 = vmand %vm504, %vm488
      %vm521 = vmand %vm505, %vm489
      %vm522 = vmand %vm506, %vm490
      %vm523 = vmand %vm507, %vm491
      %vm524 = vmand %vm508, %vm492
      %vm525 = vmand %vm509, %vm493
      %vm526 = vmand %vm510, %vm494
      %vm527 = vmand %vm511, %vm495
      %vm528 = vmand %vm512, %vm496
      %vm529 = vmand %vm513, %vm497
      %vm530 = vmand %vm514, %vm498
      %vm531 = vmand %vm515, %vm499
      %vm532 = vmand %vm516, %vm500
      %vm533 = vmand %vm517, %vm501
      %v534 = vadd.s32 %v380, 128
      %v535 = vadd.s32 %v387, 128
      %v536 = vadd.s32 %v394, 128
      %v537 = vadd.s32 %v401, 128
      %v538 = vadd.s32 %v408, 128
      %v539 = vadd.s32 %v415, 128
      %v540 = vadd.s32 %v422, 128
      %v541 = vadd.s32 %v429, 128
      %v542 = vadd.s32 %v436, 128
      %v543 = vadd.s32 %v443, 128
      %v544 = vadd.s32 %v450, 128
      %v545 = vadd.s32 %v457, 128
      %v546 = vadd.s32 %v464, 128
      %v547 = vadd.s32 %v471, 128
      %v548 = vadd.s32 %v478, 128
      %v549 = vadd.s32 %v485, 128
      %v550 = vsel %vm518, %v534, %v380
      %v551 = vsel %vm519, %v535, %v387
      %v552 = vsel %vm520, %v536, %v394
      %v553 = vsel %vm521, %v537, %v401
      %v554 = vsel %vm522, %v538, %v408
      %v555 = vsel %vm523, %v539, %v415
      %v556 = vsel %vm524, %v540, %v422
      %v557 = vsel %vm525, %v541, %v429
      %v558 = vsel %vm526, %v542, %v436
      %v559 = vsel %vm527, %v543, %v443
      %v560 = vsel %vm528, %v544, %v450
      %v561 = vsel %vm529, %v545, %v457
      %v562 = vsel %vm530, %v546, %v464
      %v563 = vsel %vm531, %v547, %v471
      %v564 = vsel %vm532, %v548, %v478
      %v565 = vsel %vm533, %v549, %v485
      %vm566 = vcmp.ge.s32.totalorder %v550, 1
      %vm567 = vcmp.ge.s32.totalorder %v551, 1
      %vm568 = vcmp.ge.s32.totalorder %v552, 1
      %vm569 = vcmp.ge.s32.totalorder %v553, 1
      %vm570 = vcmp.ge.s32.totalorder %v554, 1
      %vm571 = vcmp.ge.s32.totalorder %v555, 1
      %vm572 = vcmp.ge.s32.totalorder %v556, 1
      %vm573 = vcmp.ge.s32.totalorder %v557, 1
      %vm574 = vcmp.ge.s32.totalorder %v558, 1
      %vm575 = vcmp.ge.s32.totalorder %v559, 1
      %vm576 = vcmp.ge.s32.totalorder %v560, 1
      %vm577 = vcmp.ge.s32.totalorder %v561, 1
      %vm578 = vcmp.ge.s32.totalorder %v562, 1
      %vm579 = vcmp.ge.s32.totalorder %v563, 1
      %vm580 = vcmp.ge.s32.totalorder %v564, 1
      %vm581 = vcmp.ge.s32.totalorder %v565, 1
      %vm582 = vcmp.ge.s32.totalorder %v550, 2
      %vm583 = vcmp.ge.s32.totalorder %v551, 2
      %vm584 = vcmp.ge.s32.totalorder %v552, 2
      %vm585 = vcmp.ge.s32.totalorder %v553, 2
      %vm586 = vcmp.ge.s32.totalorder %v554, 2
      %vm587 = vcmp.ge.s32.totalorder %v555, 2
      %vm588 = vcmp.ge.s32.totalorder %v556, 2
      %vm589 = vcmp.ge.s32.totalorder %v557, 2
      %vm590 = vcmp.ge.s32.totalorder %v558, 2
      %vm591 = vcmp.ge.s32.totalorder %v559, 2
      %vm592 = vcmp.ge.s32.totalorder %v560, 2
      %vm593 = vcmp.ge.s32.totalorder %v561, 2
      %vm594 = vcmp.ge.s32.totalorder %v562, 2
      %vm595 = vcmp.ge.s32.totalorder %v563, 2
      %vm596 = vcmp.ge.s32.totalorder %v564, 2
      %vm597 = vcmp.ge.s32.totalorder %v565, 2
      %vm598 = vcmp.lt.s32.totalorder %v550, 127
      %vm599 = vcmp.lt.s32.totalorder %v551, 127
      %vm600 = vcmp.lt.s32.totalorder %v552, 127
      %vm601 = vcmp.lt.s32.totalorder %v553, 127
      %vm602 = vcmp.lt.s32.totalorder %v554, 127
      %vm603 = vcmp.lt.s32.totalorder %v555, 127
      %vm604 = vcmp.lt.s32.totalorder %v556, 127
      %vm605 = vcmp.lt.s32.totalorder %v557, 127
      %vm606 = vcmp.lt.s32.totalorder %v558, 127
      %vm607 = vcmp.lt.s32.totalorder %v559, 127
      %vm608 = vcmp.lt.s32.totalorder %v560, 127
      %vm609 = vcmp.lt.s32.totalorder %v561, 127
      %vm610 = vcmp.lt.s32.totalorder %v562, 127
      %vm611 = vcmp.lt.s32.totalorder %v563, 127
      %vm612 = vcmp.lt.s32.totalorder %v564, 127
      %vm613 = vcmp.lt.s32.totalorder %v565, 127
      %vm614 = vcmp.lt.s32.totalorder %v550, 126
      %vm615 = vcmp.lt.s32.totalorder %v551, 126
      %vm616 = vcmp.lt.s32.totalorder %v552, 126
      %vm617 = vcmp.lt.s32.totalorder %v553, 126
      %vm618 = vcmp.lt.s32.totalorder %v554, 126
      %vm619 = vcmp.lt.s32.totalorder %v555, 126
      %vm620 = vcmp.lt.s32.totalorder %v556, 126
      %vm621 = vcmp.lt.s32.totalorder %v557, 126
      %vm622 = vcmp.lt.s32.totalorder %v558, 126
      %vm623 = vcmp.lt.s32.totalorder %v559, 126
      %vm624 = vcmp.lt.s32.totalorder %v560, 126
      %vm625 = vcmp.lt.s32.totalorder %v561, 126
      %vm626 = vcmp.lt.s32.totalorder %v562, 126
      %vm627 = vcmp.lt.s32.totalorder %v563, 126
      %vm628 = vcmp.lt.s32.totalorder %v564, 126
      %vm629 = vcmp.lt.s32.totalorder %v565, 126
      %v632 = vperm.slane %v355, 0
      %v633 = vperm.slane %v355, 1
      %v634 = vperm.slane %v355, 2
      %v635 = vperm.slane %v355, 3
      %v636 = vperm.slane %v355, 4
      %v637 = vperm.slane %v355, 5
      %v638 = vperm.slane %v355, 6
      %v639 = vperm.slane %v355, 7
      %v640 = vperm.slane %v356, 0
      %v641 = vperm.slane %v356, 1
      %v642 = vperm.slane %v356, 2
      %v643 = vperm.slane %v356, 3
      %v644 = vperm.slane %v356, 4
      %v645 = vperm.slane %v356, 5
      %v646 = vperm.slane %v356, 6
      %v647 = vperm.slane %v356, 7
      %664 = vrot.lane.b32.xlu0 %v632, 2
      %v665 = vpop.permute.xlu0 %664
      %666 = vrot.lane.b32.xlu0 %v633, 2
      %v667 = vpop.permute.xlu0 %666
      %668 = vrot.lane.b32.xlu0 %v634, 2
      %v669 = vpop.permute.xlu0 %668
      %670 = vrot.lane.b32.xlu0 %v635, 2
      %v671 = vpop.permute.xlu0 %670
      %672 = vrot.lane.b32.xlu0 %v636, 2
      %v673 = vpop.permute.xlu0 %672
      %674 = vrot.lane.b32.xlu0 %v637, 2
      %v675 = vpop.permute.xlu0 %674
      %676 = vrot.lane.b32.xlu0 %v638, 2
      %v677 = vpop.permute.xlu0 %676
      %678 = vrot.lane.b32.xlu0 %v639, 2
      %v679 = vpop.permute.xlu0 %678
      %680 = vrot.lane.b32.xlu0 %v640, 2
      %v681 = vpop.permute.xlu0 %680
      %682 = vrot.lane.b32.xlu0 %v641, 2
      %v683 = vpop.permute.xlu0 %682
      %684 = vrot.lane.b32.xlu0 %v642, 2
      %v685 = vpop.permute.xlu0 %684
      %686 = vrot.lane.b32.xlu0 %v643, 2
      %v687 = vpop.permute.xlu0 %686
      %688 = vrot.lane.b32.xlu0 %v644, 2
      %v689 = vpop.permute.xlu0 %688
      %690 = vrot.lane.b32.xlu0 %v645, 2
      %v691 = vpop.permute.xlu0 %690
      %692 = vrot.lane.b32.xlu0 %v646, 2
      %v693 = vpop.permute.xlu0 %692
      %694 = vrot.lane.b32.xlu0 %v647, 2
      %v695 = vpop.permute.xlu0 %694
      %vm696 = vcmp.lt.s32.totalorder %v358, 2
      %v697 = vsel %vm696, %v693, %v695
      %v698 = vsel %vm696, %v691, %v693
      %v699 = vsel %vm696, %v689, %v691
      %v700 = vsel %vm696, %v687, %v689
      %v701 = vsel %vm696, %v685, %v687
      %v702 = vsel %vm696, %v683, %v685
      %v703 = vsel %vm696, %v681, %v683
      %v704 = vsel %vm696, %v679, %v681
      %v705 = vsel %vm696, %v677, %v679
      %v706 = vsel %vm696, %v675, %v677
      %v707 = vsel %vm696, %v673, %v675
      %v708 = vsel %vm696, %v671, %v673
      %v709 = vsel %vm696, %v669, %v671
      %v710 = vsel %vm696, %v667, %v669
      %v711 = vsel %vm696, %v665, %v667
      %v712 = vsel %vm696, %v695, %v665
      %v713 = vsel %vm582, %v712, 0.0
      %v714 = vsel %vm583, %v711, 0.0
      %v715 = vsel %vm584, %v710, 0.0
      %v716 = vsel %vm585, %v709, 0.0
      %v717 = vsel %vm586, %v708, 0.0
      %v718 = vsel %vm587, %v707, 0.0
      %v719 = vsel %vm588, %v706, 0.0
      %v720 = vsel %vm589, %v705, 0.0
      %v721 = vsel %vm590, %v704, 0.0
      %v722 = vsel %vm591, %v703, 0.0
      %v723 = vsel %vm592, %v702, 0.0
      %v724 = vsel %vm593, %v701, 0.0
      %v725 = vsel %vm594, %v700, 0.0
      %v726 = vsel %vm595, %v699, 0.0
      %v727 = vsel %vm596, %v698, 0.0
      %v728 = vsel %vm597, %v697, 0.0
      %v745 = vrot.slane %v714, 7
      %v746 = vrot.slane %v715, 6
      %v747 = vrot.slane %v716, 5
      %v748 = vrot.slane %v717, 4
      %v749 = vrot.slane %v718, 3
      %v750 = vrot.slane %v719, 2
      %v751 = vrot.slane %v720, 1
      %v752 = vrot.slane %v722, 7
      %v753 = vrot.slane %v723, 6
      %v754 = vrot.slane %v724, 5
      %v755 = vrot.slane %v725, 4
      %v756 = vrot.slane %v726, 3
      %v757 = vrot.slane %v727, 2
      %v758 = vrot.slane %v728, 1
      %vm759 = vcmask 1040384
      %v760 = vsel %vm759, %v713, %v745
      %vm761 = vcmask 1042434
      %v762 = vsel %vm761, %v746, %v747
      %vm763 = vcmask 1041408
      %v764 = vsel %vm763, %v760, %v762
      %vm765 = vcmask 1044484
      %v766 = vsel %vm765, %v748, %v749
      %vm767 = vcmask 1046534
      %v768 = vsel %vm767, %v750, %v751
      %vm769 = vcmask 1045508
      %v770 = vsel %vm769, %v766, %v768
      %vm771 = vcmask 1043456
      %v772 = vsel %vm771, %v764, %v770
      %v773 = vsel %vm759, %v721, %v752
      %v774 = vsel %vm761, %v753, %v754
      %v775 = vsel %vm763, %v773, %v774
      %v776 = vsel %vm765, %v755, %v756
      %v777 = vsel %vm767, %v757, %v758
      %v778 = vsel %vm769, %v776, %v777
      %v779 = vsel %vm771, %v775, %v778
      %782 = vst [vmem:[#allocation2] ss:$8 sm:$0xf] %v772
      %783 = vst [vmem:[#allocation2] ss:$8 sm:$0xf0] %v772
      %s784 = scalar_lea.vmem [#allocation2], 64
      %785 = vst [vmem:[%s784] ss:$8 sm:$0xf] %v779
      %786 = vst [vmem:[%s784] ss:$8 sm:$0xf0] %v779
      %787 = vrot.lane.b32.xlu0 %v632, 1
      %v788 = vpop.permute.xlu0 %787
      %789 = vrot.lane.b32.xlu0 %v633, 1
      %v790 = vpop.permute.xlu0 %789
      %791 = vrot.lane.b32.xlu0 %v634, 1
      %v792 = vpop.permute.xlu0 %791
      %793 = vrot.lane.b32.xlu0 %v635, 1
      %v794 = vpop.permute.xlu0 %793
      %795 = vrot.lane.b32.xlu0 %v636, 1
      %v796 = vpop.permute.xlu0 %795
      %797 = vrot.lane.b32.xlu0 %v637, 1
      %v798 = vpop.permute.xlu0 %797
      %799 = vrot.lane.b32.xlu0 %v638, 1
      %v800 = vpop.permute.xlu0 %799
      %801 = vrot.lane.b32.xlu0 %v639, 1
      %v802 = vpop.permute.xlu0 %801
      %803 = vrot.lane.b32.xlu0 %v640, 1
      %v804 = vpop.permute.xlu0 %803
      %805 = vrot.lane.b32.xlu0 %v641, 1
      %v806 = vpop.permute.xlu0 %805
      %807 = vrot.lane.b32.xlu0 %v642, 1
      %v808 = vpop.permute.xlu0 %807
      %809 = vrot.lane.b32.xlu0 %v643, 1
      %v810 = vpop.permute.xlu0 %809
      %811 = vrot.lane.b32.xlu0 %v644, 1
      %v812 = vpop.permute.xlu0 %811
      %813 = vrot.lane.b32.xlu0 %v645, 1
      %v814 = vpop.permute.xlu0 %813
      %815 = vrot.lane.b32.xlu0 %v646, 1
      %v816 = vpop.permute.xlu0 %815
      %817 = vrot.lane.b32.xlu0 %v647, 1
      %v818 = vpop.permute.xlu0 %817
      %vm819 = vcmp.lt.s32.totalorder %v358, 1
      %v820 = vsel %vm819, %v816, %v818
      %v821 = vsel %vm819, %v814, %v816
      %v822 = vsel %vm819, %v812, %v814
      %v823 = vsel %vm819, %v810, %v812
      %v824 = vsel %vm819, %v808, %v810
      %v825 = vsel %vm819, %v806, %v808
      %v826 = vsel %vm819, %v804, %v806
      %v827 = vsel %vm819, %v802, %v804
      %v828 = vsel %vm819, %v800, %v802
      %v829 = vsel %vm819, %v798, %v800
      %v830 = vsel %vm819, %v796, %v798
      %v831 = vsel %vm819, %v794, %v796
      %v832 = vsel %vm819, %v792, %v794
      %v833 = vsel %vm819, %v790, %v792
      %v834 = vsel %vm819, %v788, %v790
      %v835 = vsel %vm819, %v818, %v788
      %v836 = vsel %vm566, %v835, 0.0
      %v837 = vsel %vm567, %v834, 0.0
      %v838 = vsel %vm568, %v833, 0.0
      %v839 = vsel %vm569, %v832, 0.0
      %v840 = vsel %vm570, %v831, 0.0
      %v841 = vsel %vm571, %v830, 0.0
      %v842 = vsel %vm572, %v829, 0.0
      %v843 = vsel %vm573, %v828, 0.0
      %v844 = vsel %vm574, %v827, 0.0
      %v845 = vsel %vm575, %v826, 0.0
      %v846 = vsel %vm576, %v825, 0.0
      %v847 = vsel %vm577, %v824, 0.0
      %v848 = vsel %vm578, %v823, 0.0
      %v849 = vsel %vm579, %v822, 0.0
      %v850 = vsel %vm580, %v821, 0.0
      %v851 = vsel %vm581, %v820, 0.0
      %v868 = vrot.slane %v837, 7
      %v869 = vrot.slane %v838, 6
      %v870 = vrot.slane %v839, 5
      %v871 = vrot.slane %v840, 4
      %v872 = vrot.slane %v841, 3
      %v873 = vrot.slane %v842, 2
      %v874 = vrot.slane %v843, 1
      %v875 = vrot.slane %v845, 7
      %v876 = vrot.slane %v846, 6
      %v877 = vrot.slane %v847, 5
      %v878 = vrot.slane %v848, 4
      %v879 = vrot.slane %v849, 3
      %v880 = vrot.slane %v850, 2
      %v881 = vrot.slane %v851, 1
      %v882 = vsel %vm759, %v836, %v868
      %v883 = vsel %vm761, %v869, %v870
      %v884 = vsel %vm763, %v882, %v883
      %v885 = vsel %vm765, %v871, %v872
      %v886 = vsel %vm767, %v873, %v874
      %v887 = vsel %vm769, %v885, %v886
      %v888 = vsel %vm771, %v884, %v887
      %v889 = vsel %vm759, %v844, %v875
      %v890 = vsel %vm761, %v876, %v877
      %v891 = vsel %vm763, %v889, %v890
      %v892 = vsel %vm765, %v878, %v879
      %v893 = vsel %vm767, %v880, %v881
      %v894 = vsel %vm769, %v892, %v893
      %v895 = vsel %vm771, %v891, %v894
      %s898 = scalar_lea.vmem [#allocation2], 1
      %899 = vst [vmem:[%s898] ss:$8 sm:$0xf] %v888
      %900 = vst [vmem:[%s898] ss:$8 sm:$0xf0] %v888
      %s901 = scalar_lea.vmem [#allocation2], 65
      %902 = vst [vmem:[%s901] ss:$8 sm:$0xf] %v895
      %903 = vst [vmem:[%s901] ss:$8 sm:$0xf0] %v895
      %s904 = scalar_lea.vmem [#allocation2], 2
      %905 = vst [vmem:[%s904] ss:$8 sm:$0xf] %v355
      %906 = vst [vmem:[%s904] ss:$8 sm:$0xf0] %v355
      %s907 = scalar_lea.vmem [#allocation2], 66
      %908 = vst [vmem:[%s907] ss:$8 sm:$0xf] %v356
      %909 = vst [vmem:[%s907] ss:$8 sm:$0xf0] %v356
      %910 = vrot.lane.b32.xlu0 %v632, 127
      %v911 = vpop.permute.xlu0 %910
      %912 = vrot.lane.b32.xlu0 %v633, 127
      %v913 = vpop.permute.xlu0 %912
      %914 = vrot.lane.b32.xlu0 %v634, 127
      %v915 = vpop.permute.xlu0 %914
      %916 = vrot.lane.b32.xlu0 %v635, 127
      %v917 = vpop.permute.xlu0 %916
      %918 = vrot.lane.b32.xlu0 %v636, 127
      %v919 = vpop.permute.xlu0 %918
      %920 = vrot.lane.b32.xlu0 %v637, 127
      %v921 = vpop.permute.xlu0 %920
      %922 = vrot.lane.b32.xlu0 %v638, 127
      %v923 = vpop.permute.xlu0 %922
      %924 = vrot.lane.b32.xlu0 %v639, 127
      %v925 = vpop.permute.xlu0 %924
      %926 = vrot.lane.b32.xlu0 %v640, 127
      %v927 = vpop.permute.xlu0 %926
      %928 = vrot.lane.b32.xlu0 %v641, 127
      %v929 = vpop.permute.xlu0 %928
      %930 = vrot.lane.b32.xlu0 %v642, 127
      %v931 = vpop.permute.xlu0 %930
      %932 = vrot.lane.b32.xlu0 %v643, 127
      %v933 = vpop.permute.xlu0 %932
      %934 = vrot.lane.b32.xlu0 %v644, 127
      %v935 = vpop.permute.xlu0 %934
      %936 = vrot.lane.b32.xlu0 %v645, 127
      %v937 = vpop.permute.xlu0 %936
      %938 = vrot.lane.b32.xlu0 %v646, 127
      %v939 = vpop.permute.xlu0 %938
      %940 = vrot.lane.b32.xlu0 %v647, 127
      %v941 = vpop.permute.xlu0 %940
      %vm942 = vcmp.lt.s32.totalorder %v358, 127
      %v943 = vsel %vm942, %v939, %v941
      %v944 = vsel %vm942, %v937, %v939
      %v945 = vsel %vm942, %v935, %v937
      %v946 = vsel %vm942, %v933, %v935
      %v947 = vsel %vm942, %v931, %v933
      %v948 = vsel %vm942, %v929, %v931
      %v949 = vsel %vm942, %v927, %v929
      %v950 = vsel %vm942, %v925, %v927
      %v951 = vsel %vm942, %v923, %v925
      %v952 = vsel %vm942, %v921, %v923
      %v953 = vsel %vm942, %v919, %v921
      %v954 = vsel %vm942, %v917, %v919
      %v955 = vsel %vm942, %v915, %v917
      %v956 = vsel %vm942, %v913, %v915
      %v957 = vsel %vm942, %v911, %v913
      %v958 = vsel %vm942, %v941, %v911
      %v959 = vsel %vm598, %v957, 0.0
      %v960 = vsel %vm599, %v956, 0.0
      %v961 = vsel %vm600, %v955, 0.0
      %v962 = vsel %vm601, %v954, 0.0
      %v963 = vsel %vm602, %v953, 0.0
      %v964 = vsel %vm603, %v952, 0.0
      %v965 = vsel %vm604, %v951, 0.0
      %v966 = vsel %vm605, %v950, 0.0
      %v967 = vsel %vm606, %v949, 0.0
      %v968 = vsel %vm607, %v948, 0.0
      %v969 = vsel %vm608, %v947, 0.0
      %v970 = vsel %vm609, %v946, 0.0
      %v971 = vsel %vm610, %v945, 0.0
      %v972 = vsel %vm611, %v944, 0.0
      %v973 = vsel %vm612, %v943, 0.0
      %v974 = vsel %vm613, %v958, 0.0
      %v991 = vrot.slane %v960, 7
      %v992 = vrot.slane %v961, 6
      %v993 = vrot.slane %v962, 5
      %v994 = vrot.slane %v963, 4
      %v995 = vrot.slane %v964, 3
      %v996 = vrot.slane %v965, 2
      %v997 = vrot.slane %v966, 1
      %v998 = vrot.slane %v968, 7
      %v999 = vrot.slane %v969, 6
      %v1000 = vrot.slane %v970, 5
      %v1001 = vrot.slane %v971, 4
      %v1002 = vrot.slane %v972, 3
      %v1003 = vrot.slane %v973, 2
      %v1004 = vrot.slane %v974, 1
      %v1005 = vsel %vm759, %v959, %v991
      %v1006 = vsel %vm761, %v992, %v993
      %v1007 = vsel %vm763, %v1005, %v1006
      %v1008 = vsel %vm765, %v994, %v995
      %v1009 = vsel %vm767, %v996, %v997
      %v1010 = vsel %vm769, %v1008, %v1009
      %v1011 = vsel %vm771, %v1007, %v1010
      %v1012 = vsel %vm759, %v967, %v998
      %v1013 = vsel %vm761, %v999, %v1000
      %v1014 = vsel %vm763, %v1012, %v1013
      %v1015 = vsel %vm765, %v1001, %v1002
      %v1016 = vsel %vm767, %v1003, %v1004
      %v1017 = vsel %vm769, %v1015, %v1016
      %v1018 = vsel %vm771, %v1014, %v1017
      %s1021 = scalar_lea.vmem [#allocation2], 3
      %1022 = vst [vmem:[%s1021] ss:$8 sm:$0xf] %v1011
      %1023 = vst [vmem:[%s1021] ss:$8 sm:$0xf0] %v1011
      %s1024 = scalar_lea.vmem [#allocation2], 67
      %1025 = vst [vmem:[%s1024] ss:$8 sm:$0xf] %v1018
      %1026 = vst [vmem:[%s1024] ss:$8 sm:$0xf0] %v1018
      %1027 = vrot.lane.b32.xlu0 %v632, 126
      %v1028 = vpop.permute.xlu0 %1027
      %1029 = vrot.lane.b32.xlu0 %v633, 126
      %v1030 = vpop.permute.xlu0 %1029
      %1031 = vrot.lane.b32.xlu0 %v634, 126
      %v1032 = vpop.permute.xlu0 %1031
      %1033 = vrot.lane.b32.xlu0 %v635, 126
      %v1034 = vpop.permute.xlu0 %1033
      %1035 = vrot.lane.b32.xlu0 %v636, 126
      %v1036 = vpop.permute.xlu0 %1035
      %1037 = vrot.lane.b32.xlu0 %v637, 126
      %v1038 = vpop.permute.xlu0 %1037
      %1039 = vrot.lane.b32.xlu0 %v638, 126
      %v1040 = vpop.permute.xlu0 %1039
      %1041 = vrot.lane.b32.xlu0 %v639, 126
      %v1042 = vpop.permute.xlu0 %1041
      %1043 = vrot.lane.b32.xlu0 %v640, 126
      %v1044 = vpop.permute.xlu0 %1043
      %1045 = vrot.lane.b32.xlu0 %v641, 126
      %v1046 = vpop.permute.xlu0 %1045
      %1047 = vrot.lane.b32.xlu0 %v642, 126
      %v1048 = vpop.permute.xlu0 %1047
      %1049 = vrot.lane.b32.xlu0 %v643, 126
      %v1050 = vpop.permute.xlu0 %1049
      %1051 = vrot.lane.b32.xlu0 %v644, 126
      %v1052 = vpop.permute.xlu0 %1051
      %1053 = vrot.lane.b32.xlu0 %v645, 126
      %v1054 = vpop.permute.xlu0 %1053
      %1055 = vrot.lane.b32.xlu0 %v646, 126
      %v1056 = vpop.permute.xlu0 %1055
      %1057 = vrot.lane.b32.xlu0 %v647, 126
      %v1058 = vpop.permute.xlu0 %1057
      %vm1059 = vcmp.lt.s32.totalorder %v358, 126
      %v1060 = vsel %vm1059, %v1056, %v1058
      %v1061 = vsel %vm1059, %v1054, %v1056
      %v1062 = vsel %vm1059, %v1052, %v1054
      %v1063 = vsel %vm1059, %v1050, %v1052
      %v1064 = vsel %vm1059, %v1048, %v1050
      %v1065 = vsel %vm1059, %v1046, %v1048
      %v1066 = vsel %vm1059, %v1044, %v1046
      %v1067 = vsel %vm1059, %v1042, %v1044
      %v1068 = vsel %vm1059, %v1040, %v1042
      %v1069 = vsel %vm1059, %v1038, %v1040
      %v1070 = vsel %vm1059, %v1036, %v1038
      %v1071 = vsel %vm1059, %v1034, %v1036
      %v1072 = vsel %vm1059, %v1032, %v1034
      %v1073 = vsel %vm1059, %v1030, %v1032
      %v1074 = vsel %vm1059, %v1028, %v1030
      %v1075 = vsel %vm1059, %v1058, %v1028
      %v1076 = vsel %vm614, %v1074, 0.0
      %v1077 = vsel %vm615, %v1073, 0.0
      %v1078 = vsel %vm616, %v1072, 0.0
      %v1079 = vsel %vm617, %v1071, 0.0
      %v1080 = vsel %vm618, %v1070, 0.0
      %v1081 = vsel %vm619, %v1069, 0.0
      %v1082 = vsel %vm620, %v1068, 0.0
      %v1083 = vsel %vm621, %v1067, 0.0
      %v1084 = vsel %vm622, %v1066, 0.0
      %v1085 = vsel %vm623, %v1065, 0.0
      %v1086 = vsel %vm624, %v1064, 0.0
      %v1087 = vsel %vm625, %v1063, 0.0
      %v1088 = vsel %vm626, %v1062, 0.0
      %v1089 = vsel %vm627, %v1061, 0.0
      %v1090 = vsel %vm628, %v1060, 0.0
      %v1091 = vsel %vm629, %v1075, 0.0
      %v1108 = vrot.slane %v1077, 7
      %v1109 = vrot.slane %v1078, 6
      %v1110 = vrot.slane %v1079, 5
      %v1111 = vrot.slane %v1080, 4
      %v1112 = vrot.slane %v1081, 3
      %v1113 = vrot.slane %v1082, 2
      %v1114 = vrot.slane %v1083, 1
      %v1115 = vrot.slane %v1085, 7
      %v1116 = vrot.slane %v1086, 6
      %v1117 = vrot.slane %v1087, 5
      %v1118 = vrot.slane %v1088, 4
      %v1119 = vrot.slane %v1089, 3
      %v1120 = vrot.slane %v1090, 2
      %v1121 = vrot.slane %v1091, 1
      %v1122 = vsel %vm759, %v1076, %v1108
      %v1123 = vsel %vm761, %v1109, %v1110
      %v1124 = vsel %vm763, %v1122, %v1123
      %v1125 = vsel %vm765, %v1111, %v1112
      %v1126 = vsel %vm767, %v1113, %v1114
      %v1127 = vsel %vm769, %v1125, %v1126
      %v1128 = vsel %vm771, %v1124, %v1127
      %v1129 = vsel %vm759, %v1084, %v1115
      %v1130 = vsel %vm761, %v1116, %v1117
      %v1131 = vsel %vm763, %v1129, %v1130
      %v1132 = vsel %vm765, %v1118, %v1119
      %v1133 = vsel %vm767, %v1120, %v1121
      %v1134 = vsel %vm769, %v1132, %v1133
      %v1135 = vsel %vm771, %v1131, %v1134
      %s1138 = scalar_lea.vmem [#allocation2], 4
      %1139 = vst [vmem:[%s1138] ss:$8 sm:$0xf] %v1128
      %1140 = vst [vmem:[%s1138] ss:$8 sm:$0xf0] %v1128
      %s1141 = scalar_lea.vmem [#allocation2], 68
      %1142 = vst [vmem:[%s1141] ss:$8 sm:$0xf] %v1135
      %1143 = vst [vmem:[%s1141] ss:$8 sm:$0xf0] %v1135
      %1144 = vst [vmem:[#allocation2] sm:$0xe0] 0.0
      %1145 = vst [vmem:[#allocation2 + $0x8] sm:$0xe0] 0.0
      %1146 = vst [vmem:[#allocation2 + $0x10] sm:$0xe0] 0.0
      %1147 = vst [vmem:[#allocation2 + $0x18] sm:$0xe0] 0.0
      %1148 = vst [vmem:[#allocation2 + $0x20] sm:$0xe0] 0.0
      %1149 = vst [vmem:[#allocation2 + $0x28] sm:$0xe0] 0.0
      %1150 = vst [vmem:[#allocation2 + $0x30] sm:$0xe0] 0.0
      %1151 = vst [vmem:[#allocation2 + $0x38] sm:$0xe0] 0.0
      %1152 = vst [vmem:[#allocation2 + $0x40] sm:$0xe0] 0.0
      %1153 = vst [vmem:[#allocation2 + $0x48] sm:$0xe0] 0.0
      %1154 = vst [vmem:[#allocation2 + $0x50] sm:$0xe0] 0.0
      %1155 = vst [vmem:[#allocation2 + $0x58] sm:$0xe0] 0.0
      %1156 = vst [vmem:[#allocation2 + $0x60] sm:$0xe0] 0.0
      %1157 = vst [vmem:[#allocation2 + $0x68] sm:$0xe0] 0.0
      %1158 = vst [vmem:[#allocation2 + $0x70] sm:$0xe0] 0.0
      %1159 = vst [vmem:[#allocation2 + $0x78] sm:$0xe0] 0.0
      %v1160 = vld [vmem:[%s1] sm:$0xff]
      %v1161 = vld [vmem:[%s1 + $0x8] sm:$0xff]
      %v1162 = vld [vmem:[#allocation2] sm:$0xff]
      %v1163 = vld [vmem:[#allocation2 + $0x8] sm:$0xff]
      %v1164 = vld [vmem:[#allocation2 + $0x10] sm:$0xff]
      %v1165 = vld [vmem:[#allocation2 + $0x18] sm:$0xff]
      %v1166 = vld [vmem:[#allocation2 + $0x20] sm:$0xff]
      %v1167 = vld [vmem:[#allocation2 + $0x28] sm:$0xff]
      %v1168 = vld [vmem:[#allocation2 + $0x30] sm:$0xff]
      %v1169 = vld [vmem:[#allocation2 + $0x38] sm:$0xff]
      %v1170 = vld [vmem:[#allocation2 + $0x40] sm:$0xff]
      %v1171 = vld [vmem:[#allocation2 + $0x48] sm:$0xff]
      %v1172 = vld [vmem:[#allocation2 + $0x50] sm:$0xff]
      %v1173 = vld [vmem:[#allocation2 + $0x58] sm:$0xff]
      %v1174 = vld [vmem:[#allocation2 + $0x60] sm:$0xff]
      %v1175 = vld [vmem:[#allocation2 + $0x68] sm:$0xff]
      %v1176 = vld [vmem:[#allocation2 + $0x70] sm:$0xff]
      %v1177 = vld [vmem:[#allocation2 + $0x78] sm:$0xff]
      %v1178 = vld [vmem:[%s2] sm:$0xff]
      %v1179 = vld [vmem:[%s2 + $0x8] sm:$0xff]
      %1181 = vset.pattern.permute.xlu0 0
      %1182 = vperm.xlu0 %1181, %v1178
      %v1183 = vpop.permute.xlu0 %1182
      %1186 = vset.pattern.permute.xlu0 0
      %1187 = vperm.xlu0 %1186, %v1179
      %v1188 = vpop.permute.xlu0 %1187
      %vm1190 = vcmask 64512
      %v1192 = vsel %vm1190, %v1160, 0
      %v1195 = vsel %vm1190, %v1161, 0
      %1197 = vmatpush.msra.mxu0 0.0
      %1198 = vmatpush.msra.mxu0 0.0
      %1199 = vmatpush.msra.mxu0 0.0
      %1200 = vmatpush.msra.mxu0 0.0
      %1201 = vmatpush.msra.mxu0 0.0
      %1202 = vmatpush.msra.mxu0 0.0
      %1203 = vmatpush.msra.mxu0 0.0
      %1204 = vmatpush.msra.mxu0 0.0
      %1205 = vmatpush.msra.mxu0 0.0
      %1206 = vmatpush.msra.mxu0 0.0
      %1207 = vmatpush.msra.mxu0 0.0
      %1208 = vmatpush.msra.mxu0 0.0
      %1209 = vmatpush.msra.mxu0 0.0
      %1210 = vmatpush.msra.mxu0 0.0
      %1211 = vmatpush.msra.mxu0 0.0
      %1212 = vmatpush.msra.mxu0 %v1162
      %1213 = vmatmul.f32.gmra.mxu0 %v1192
      %v1214 = vpop.f32.mrf.mxu0
      %v1215 = vadd.f32 %v1183, %v1214
      %1216 = vmatmul.f32.gmra.mxu0 %v1195
      %v1217 = vpop.f32.mrf.mxu0
      %v1218 = vadd.f32 %v1188, %v1217
      %1219 = vdwg.mxu0
      %1220 = vmatpush.msra.mxu0 0.0
      %1221 = vmatpush.msra.mxu0 0.0
      %1222 = vmatpush.msra.mxu0 0.0
      %1223 = vmatpush.msra.mxu0 0.0
      %1224 = vmatpush.msra.mxu0 0.0
      %1225 = vmatpush.msra.mxu0 0.0
      %1226 = vmatpush.msra.mxu0 0.0
      %1227 = vmatpush.msra.mxu0 0.0
      %1228 = vmatpush.msra.mxu0 0.0
      %1229 = vmatpush.msra.mxu0 0.0
      %1230 = vmatpush.msra.mxu0 0.0
      %1231 = vmatpush.msra.mxu0 0.0
      %1232 = vmatpush.msra.mxu0 0.0
      %1233 = vmatpush.msra.mxu0 0.0
      %1234 = vmatpush.msra.mxu0 0.0
      %1235 = vmatpush.msra.mxu0 %v1163
      %1236 = vmatmul.f32.gmra.mxu0 %v1192
      %v1237 = vpop.f32.mrf.mxu0
      %v1238 = vadd.f32 %v1183, %v1237
      %1239 = vmatmul.f32.gmra.mxu0 %v1195
      %v1240 = vpop.f32.mrf.mxu0
      %v1241 = vadd.f32 %v1188, %v1240
      %1242 = vdwg.mxu0
      %1243 = vmatpush.msra.mxu0 0.0
      %1244 = vmatpush.msra.mxu0 0.0
      %1245 = vmatpush.msra.mxu0 0.0
      %1246 = vmatpush.msra.mxu0 0.0
      %1247 = vmatpush.msra.mxu0 0.0
      %1248 = vmatpush.msra.mxu0 0.0
      %1249 = vmatpush.msra.mxu0 0.0
      %1250 = vmatpush.msra.mxu0 0.0
      %1251 = vmatpush.msra.mxu0 0.0
      %1252 = vmatpush.msra.mxu0 0.0
      %1253 = vmatpush.msra.mxu0 0.0
      %1254 = vmatpush.msra.mxu0 0.0
      %1255 = vmatpush.msra.mxu0 0.0
      %1256 = vmatpush.msra.mxu0 0.0
      %1257 = vmatpush.msra.mxu0 0.0
      %1258 = vmatpush.msra.mxu0 %v1164
      %1259 = vmatmul.f32.gmra.mxu0 %v1192
      %v1260 = vpop.f32.mrf.mxu0
      %v1261 = vadd.f32 %v1183, %v1260
      %1262 = vmatmul.f32.gmra.mxu0 %v1195
      %v1263 = vpop.f32.mrf.mxu0
      %v1264 = vadd.f32 %v1188, %v1263
      %1265 = vdwg.mxu0
      %1266 = vmatpush.msra.mxu0 0.0
      %1267 = vmatpush.msra.mxu0 0.0
      %1268 = vmatpush.msra.mxu0 0.0
      %1269 = vmatpush.msra.mxu0 0.0
      %1270 = vmatpush.msra.mxu0 0.0
      %1271 = vmatpush.msra.mxu0 0.0
      %1272 = vmatpush.msra.mxu0 0.0
      %1273 = vmatpush.msra.mxu0 0.0
      %1274 = vmatpush.msra.mxu0 0.0
      %1275 = vmatpush.msra.mxu0 0.0
      %1276 = vmatpush.msra.mxu0 0.0
      %1277 = vmatpush.msra.mxu0 0.0
      %1278 = vmatpush.msra.mxu0 0.0
      %1279 = vmatpush.msra.mxu0 0.0
      %1280 = vmatpush.msra.mxu0 0.0
      %1281 = vmatpush.msra.mxu0 %v1165
      %1282 = vmatmul.f32.gmra.mxu0 %v1192
      %v1283 = vpop.f32.mrf.mxu0
      %v1284 = vadd.f32 %v1183, %v1283
      %1285 = vmatmul.f32.gmra.mxu0 %v1195
      %v1286 = vpop.f32.mrf.mxu0
      %v1287 = vadd.f32 %v1188, %v1286
      %1288 = vdwg.mxu0
      %1289 = vmatpush.msra.mxu0 0.0
      %1290 = vmatpush.msra.mxu0 0.0
      %1291 = vmatpush.msra.mxu0 0.0
      %1292 = vmatpush.msra.mxu0 0.0
      %1293 = vmatpush.msra.mxu0 0.0
      %1294 = vmatpush.msra.mxu0 0.0
      %1295 = vmatpush.msra.mxu0 0.0
      %1296 = vmatpush.msra.mxu0 0.0
      %1297 = vmatpush.msra.mxu0 0.0
      %1298 = vmatpush.msra.mxu0 0.0
      %1299 = vmatpush.msra.mxu0 0.0
      %1300 = vmatpush.msra.mxu0 0.0
      %1301 = vmatpush.msra.mxu0 0.0
      %1302 = vmatpush.msra.mxu0 0.0
      %1303 = vmatpush.msra.mxu0 0.0
      %1304 = vmatpush.msra.mxu0 %v1166
      %1305 = vmatmul.f32.gmra.mxu0 %v1192
      %v1306 = vpop.f32.mrf.mxu0
      %v1307 = vadd.f32 %v1183, %v1306
      %1308 = vmatmul.f32.gmra.mxu0 %v1195
      %v1309 = vpop.f32.mrf.mxu0
      %v1310 = vadd.f32 %v1188, %v1309
      %1311 = vdwg.mxu0
      %1312 = vmatpush.msra.mxu0 0.0
      %1313 = vmatpush.msra.mxu0 0.0
      %1314 = vmatpush.msra.mxu0 0.0
      %1315 = vmatpush.msra.mxu0 0.0
      %1316 = vmatpush.msra.mxu0 0.0
      %1317 = vmatpush.msra.mxu0 0.0
      %1318 = vmatpush.msra.mxu0 0.0
      %1319 = vmatpush.msra.mxu0 0.0
      %1320 = vmatpush.msra.mxu0 0.0
      %1321 = vmatpush.msra.mxu0 0.0
      %1322 = vmatpush.msra.mxu0 0.0
      %1323 = vmatpush.msra.mxu0 0.0
      %1324 = vmatpush.msra.mxu0 0.0
      %1325 = vmatpush.msra.mxu0 0.0
      %1326 = vmatpush.msra.mxu0 0.0
      %1327 = vmatpush.msra.mxu0 %v1167
      %1328 = vmatmul.f32.gmra.mxu0 %v1192
      %v1329 = vpop.f32.mrf.mxu0
      %v1330 = vadd.f32 %v1183, %v1329
      %1331 = vmatmul.f32.gmra.mxu0 %v1195
      %v1332 = vpop.f32.mrf.mxu0
      %v1333 = vadd.f32 %v1188, %v1332
      %1334 = vdwg.mxu0
      %1335 = vmatpush.msra.mxu0 0.0
      %1336 = vmatpush.msra.mxu0 0.0
      %1337 = vmatpush.msra.mxu0 0.0
      %1338 = vmatpush.msra.mxu0 0.0
      %1339 = vmatpush.msra.mxu0 0.0
      %1340 = vmatpush.msra.mxu0 0.0
      %1341 = vmatpush.msra.mxu0 0.0
      %1342 = vmatpush.msra.mxu0 0.0
      %1343 = vmatpush.msra.mxu0 0.0
      %1344 = vmatpush.msra.mxu0 0.0
      %1345 = vmatpush.msra.mxu0 0.0
      %1346 = vmatpush.msra.mxu0 0.0
      %1347 = vmatpush.msra.mxu0 0.0
      %1348 = vmatpush.msra.mxu0 0.0
      %1349 = vmatpush.msra.mxu0 0.0
      %1350 = vmatpush.msra.mxu0 %v1168
      %1351 = vmatmul.f32.gmra.mxu0 %v1192
      %v1352 = vpop.f32.mrf.mxu0
      %v1353 = vadd.f32 %v1183, %v1352
      %1354 = vmatmul.f32.gmra.mxu0 %v1195
      %v1355 = vpop.f32.mrf.mxu0
      %v1356 = vadd.f32 %v1188, %v1355
      %1357 = vdwg.mxu0
      %1358 = vmatpush.msra.mxu0 0.0
      %1359 = vmatpush.msra.mxu0 0.0
      %1360 = vmatpush.msra.mxu0 0.0
      %1361 = vmatpush.msra.mxu0 0.0
      %1362 = vmatpush.msra.mxu0 0.0
      %1363 = vmatpush.msra.mxu0 0.0
      %1364 = vmatpush.msra.mxu0 0.0
      %1365 = vmatpush.msra.mxu0 0.0
      %1366 = vmatpush.msra.mxu0 0.0
      %1367 = vmatpush.msra.mxu0 0.0
      %1368 = vmatpush.msra.mxu0 0.0
      %1369 = vmatpush.msra.mxu0 0.0
      %1370 = vmatpush.msra.mxu0 0.0
      %1371 = vmatpush.msra.mxu0 0.0
      %1372 = vmatpush.msra.mxu0 0.0
      %1373 = vmatpush.msra.mxu0 %v1169
      %1374 = vmatmul.f32.gmra.mxu0 %v1192
      %v1375 = vpop.f32.mrf.mxu0
      %v1376 = vadd.f32 %v1183, %v1375
      %1377 = vmatmul.f32.gmra.mxu0 %v1195
      %v1378 = vpop.f32.mrf.mxu0
      %v1379 = vadd.f32 %v1188, %v1378
      %1380 = vdwg.mxu0
      %1381 = vmatpush.msra.mxu0 0.0
      %1382 = vmatpush.msra.mxu0 0.0
      %1383 = vmatpush.msra.mxu0 0.0
      %1384 = vmatpush.msra.mxu0 0.0
      %1385 = vmatpush.msra.mxu0 0.0
      %1386 = vmatpush.msra.mxu0 0.0
      %1387 = vmatpush.msra.mxu0 0.0
      %1388 = vmatpush.msra.mxu0 0.0
      %1389 = vmatpush.msra.mxu0 0.0
      %1390 = vmatpush.msra.mxu0 0.0
      %1391 = vmatpush.msra.mxu0 0.0
      %1392 = vmatpush.msra.mxu0 0.0
      %1393 = vmatpush.msra.mxu0 0.0
      %1394 = vmatpush.msra.mxu0 0.0
      %1395 = vmatpush.msra.mxu0 0.0
      %1396 = vmatpush.msra.mxu0 %v1170
      %1397 = vmatmul.f32.gmra.mxu0 %v1192
      %v1398 = vpop.f32.mrf.mxu0
      %v1399 = vadd.f32 %v1183, %v1398
      %1400 = vmatmul.f32.gmra.mxu0 %v1195
      %v1401 = vpop.f32.mrf.mxu0
      %v1402 = vadd.f32 %v1188, %v1401
      %1403 = vdwg.mxu0
      %1404 = vmatpush.msra.mxu0 0.0
      %1405 = vmatpush.msra.mxu0 0.0
      %1406 = vmatpush.msra.mxu0 0.0
      %1407 = vmatpush.msra.mxu0 0.0
      %1408 = vmatpush.msra.mxu0 0.0
      %1409 = vmatpush.msra.mxu0 0.0
      %1410 = vmatpush.msra.mxu0 0.0
      %1411 = vmatpush.msra.mxu0 0.0
      %1412 = vmatpush.msra.mxu0 0.0
      %1413 = vmatpush.msra.mxu0 0.0
      %1414 = vmatpush.msra.mxu0 0.0
      %1415 = vmatpush.msra.mxu0 0.0
      %1416 = vmatpush.msra.mxu0 0.0
      %1417 = vmatpush.msra.mxu0 0.0
      %1418 = vmatpush.msra.mxu0 0.0
      %1419 = vmatpush.msra.mxu0 %v1171
      %1420 = vmatmul.f32.gmra.mxu0 %v1192
      %v1421 = vpop.f32.mrf.mxu0
      %v1422 = vadd.f32 %v1183, %v1421
      %1423 = vmatmul.f32.gmra.mxu0 %v1195
      %v1424 = vpop.f32.mrf.mxu0
      %v1425 = vadd.f32 %v1188, %v1424
      %1426 = vdwg.mxu0
      %1427 = vmatpush.msra.mxu0 0.0
      %1428 = vmatpush.msra.mxu0 0.0
      %1429 = vmatpush.msra.mxu0 0.0
      %1430 = vmatpush.msra.mxu0 0.0
      %1431 = vmatpush.msra.mxu0 0.0
      %1432 = vmatpush.msra.mxu0 0.0
      %1433 = vmatpush.msra.mxu0 0.0
      %1434 = vmatpush.msra.mxu0 0.0
      %1435 = vmatpush.msra.mxu0 0.0
      %1436 = vmatpush.msra.mxu0 0.0
      %1437 = vmatpush.msra.mxu0 0.0
      %1438 = vmatpush.msra.mxu0 0.0
      %1439 = vmatpush.msra.mxu0 0.0
      %1440 = vmatpush.msra.mxu0 0.0
      %1441 = vmatpush.msra.mxu0 0.0
      %1442 = vmatpush.msra.mxu0 %v1172
      %1443 = vmatmul.f32.gmra.mxu0 %v1192
      %v1444 = vpop.f32.mrf.mxu0
      %v1445 = vadd.f32 %v1183, %v1444
      %1446 = vmatmul.f32.gmra.mxu0 %v1195
      %v1447 = vpop.f32.mrf.mxu0
      %v1448 = vadd.f32 %v1188, %v1447
      %1449 = vdwg.mxu0
      %1450 = vmatpush.msra.mxu0 0.0
      %1451 = vmatpush.msra.mxu0 0.0
      %1452 = vmatpush.msra.mxu0 0.0
      %1453 = vmatpush.msra.mxu0 0.0
      %1454 = vmatpush.msra.mxu0 0.0
      %1455 = vmatpush.msra.mxu0 0.0
      %1456 = vmatpush.msra.mxu0 0.0
      %1457 = vmatpush.msra.mxu0 0.0
      %1458 = vmatpush.msra.mxu0 0.0
      %1459 = vmatpush.msra.mxu0 0.0
      %1460 = vmatpush.msra.mxu0 0.0
      %1461 = vmatpush.msra.mxu0 0.0
      %1462 = vmatpush.msra.mxu0 0.0
      %1463 = vmatpush.msra.mxu0 0.0
      %1464 = vmatpush.msra.mxu0 0.0
      %1465 = vmatpush.msra.mxu0 %v1173
      %1466 = vmatmul.f32.gmra.mxu0 %v1192
      %v1467 = vpop.f32.mrf.mxu0
      %v1468 = vadd.f32 %v1183, %v1467
      %1469 = vmatmul.f32.gmra.mxu0 %v1195
      %v1470 = vpop.f32.mrf.mxu0
      %v1471 = vadd.f32 %v1188, %v1470
      %1472 = vdwg.mxu0
      %1473 = vmatpush.msra.mxu0 0.0
      %1474 = vmatpush.msra.mxu0 0.0
      %1475 = vmatpush.msra.mxu0 0.0
      %1476 = vmatpush.msra.mxu0 0.0
      %1477 = vmatpush.msra.mxu0 0.0
      %1478 = vmatpush.msra.mxu0 0.0
      %1479 = vmatpush.msra.mxu0 0.0
      %1480 = vmatpush.msra.mxu0 0.0
      %1481 = vmatpush.msra.mxu0 0.0
      %1482 = vmatpush.msra.mxu0 0.0
      %1483 = vmatpush.msra.mxu0 0.0
      %1484 = vmatpush.msra.mxu0 0.0
      %1485 = vmatpush.msra.mxu0 0.0
      %1486 = vmatpush.msra.mxu0 0.0
      %1487 = vmatpush.msra.mxu0 0.0
      %1488 = vmatpush.msra.mxu0 %v1174
      %1489 = vmatmul.f32.gmra.mxu0 %v1192
      %v1490 = vpop.f32.mrf.mxu0
      %v1491 = vadd.f32 %v1183, %v1490
      %1492 = vmatmul.f32.gmra.mxu0 %v1195
      %v1493 = vpop.f32.mrf.mxu0
      %v1494 = vadd.f32 %v1188, %v1493
      %1495 = vdwg.mxu0
      %1496 = vmatpush.msra.mxu0 0.0
      %1497 = vmatpush.msra.mxu0 0.0
      %1498 = vmatpush.msra.mxu0 0.0
      %1499 = vmatpush.msra.mxu0 0.0
      %1500 = vmatpush.msra.mxu0 0.0
      %1501 = vmatpush.msra.mxu0 0.0
      %1502 = vmatpush.msra.mxu0 0.0
      %1503 = vmatpush.msra.mxu0 0.0
      %1504 = vmatpush.msra.mxu0 0.0
      %1505 = vmatpush.msra.mxu0 0.0
      %1506 = vmatpush.msra.mxu0 0.0
      %1507 = vmatpush.msra.mxu0 0.0
      %1508 = vmatpush.msra.mxu0 0.0
      %1509 = vmatpush.msra.mxu0 0.0
      %1510 = vmatpush.msra.mxu0 0.0
      %1511 = vmatpush.msra.mxu0 %v1175
      %1512 = vmatmul.f32.gmra.mxu0 %v1192
      %v1513 = vpop.f32.mrf.mxu0
      %v1514 = vadd.f32 %v1183, %v1513
      %1515 = vmatmul.f32.gmra.mxu0 %v1195
      %v1516 = vpop.f32.mrf.mxu0
      %v1517 = vadd.f32 %v1188, %v1516
      %1518 = vdwg.mxu0
      %1519 = vmatpush.msra.mxu0 0.0
      %1520 = vmatpush.msra.mxu0 0.0
      %1521 = vmatpush.msra.mxu0 0.0
      %1522 = vmatpush.msra.mxu0 0.0
      %1523 = vmatpush.msra.mxu0 0.0
      %1524 = vmatpush.msra.mxu0 0.0
      %1525 = vmatpush.msra.mxu0 0.0
      %1526 = vmatpush.msra.mxu0 0.0
      %1527 = vmatpush.msra.mxu0 0.0
      %1528 = vmatpush.msra.mxu0 0.0
      %1529 = vmatpush.msra.mxu0 0.0
      %1530 = vmatpush.msra.mxu0 0.0
      %1531 = vmatpush.msra.mxu0 0.0
      %1532 = vmatpush.msra.mxu0 0.0
      %1533 = vmatpush.msra.mxu0 0.0
      %1534 = vmatpush.msra.mxu0 %v1176
      %1535 = vmatmul.f32.gmra.mxu0 %v1192
      %v1536 = vpop.f32.mrf.mxu0
      %v1537 = vadd.f32 %v1183, %v1536
      %1538 = vmatmul.f32.gmra.mxu0 %v1195
      %v1539 = vpop.f32.mrf.mxu0
      %v1540 = vadd.f32 %v1188, %v1539
      %1541 = vdwg.mxu0
      %1542 = vmatpush.msra.mxu0 0.0
      %1543 = vmatpush.msra.mxu0 0.0
      %1544 = vmatpush.msra.mxu0 0.0
      %1545 = vmatpush.msra.mxu0 0.0
      %1546 = vmatpush.msra.mxu0 0.0
      %1547 = vmatpush.msra.mxu0 0.0
      %1548 = vmatpush.msra.mxu0 0.0
      %1549 = vmatpush.msra.mxu0 0.0
      %1550 = vmatpush.msra.mxu0 0.0
      %1551 = vmatpush.msra.mxu0 0.0
      %1552 = vmatpush.msra.mxu0 0.0
      %1553 = vmatpush.msra.mxu0 0.0
      %1554 = vmatpush.msra.mxu0 0.0
      %1555 = vmatpush.msra.mxu0 0.0
      %1556 = vmatpush.msra.mxu0 0.0
      %1557 = vmatpush.msra.mxu0 %v1177
      %1558 = vmatmul.f32.gmra.mxu0 %v1192
      %v1559 = vpop.f32.mrf.mxu0
      %v1560 = vadd.f32 %v1183, %v1559
      %1561 = vmatmul.f32.gmra.mxu0 %v1195
      %v1562 = vpop.f32.mrf.mxu0
      %v1563 = vadd.f32 %v1188, %v1562
      %1564 = vdwg.mxu0
      %v1565 = vmax.f32 %v1215, 0.0
      %v1566 = vmax.f32 %v1238, 0.0
      %v1567 = vmax.f32 %v1261, 0.0
      %v1568 = vmax.f32 %v1284, 0.0
      %v1569 = vmax.f32 %v1307, 0.0
      %v1570 = vmax.f32 %v1330, 0.0
      %v1571 = vmax.f32 %v1353, 0.0
      %v1572 = vmax.f32 %v1376, 0.0
      %v1573 = vmax.f32 %v1399, 0.0
      %v1574 = vmax.f32 %v1422, 0.0
      %v1575 = vmax.f32 %v1445, 0.0
      %v1576 = vmax.f32 %v1468, 0.0
      %v1577 = vmax.f32 %v1491, 0.0
      %v1578 = vmax.f32 %v1514, 0.0
      %v1579 = vmax.f32 %v1537, 0.0
      %v1580 = vmax.f32 %v1560, 0.0
      %v1581 = vmax.f32 %v1218, 0.0
      %v1582 = vmax.f32 %v1241, 0.0
      %v1583 = vmax.f32 %v1264, 0.0
      %v1584 = vmax.f32 %v1287, 0.0
      %v1585 = vmax.f32 %v1310, 0.0
      %v1586 = vmax.f32 %v1333, 0.0
      %v1587 = vmax.f32 %v1356, 0.0
      %v1588 = vmax.f32 %v1379, 0.0
      %v1589 = vmax.f32 %v1402, 0.0
      %v1590 = vmax.f32 %v1425, 0.0
      %v1591 = vmax.f32 %v1448, 0.0
      %v1592 = vmax.f32 %v1471, 0.0
      %v1593 = vmax.f32 %v1494, 0.0
      %v1594 = vmax.f32 %v1517, 0.0
      %v1595 = vmax.f32 %v1540, 0.0
      %v1596 = vmax.f32 %v1563, 0.0
      %1597 = vrot.lane.b32.xlu0 %v1565, 127
      %v1598 = vpop.permute.xlu0 %1597
      %1599 = vrot.lane.b32.xlu0 %v1581, 127
      %v1600 = vpop.permute.xlu0 %1599
      %1601 = vrot.lane.b32.xlu0 %v1566, 127
      %v1602 = vpop.permute.xlu0 %1601
      %1603 = vrot.lane.b32.xlu0 %v1582, 127
      %v1604 = vpop.permute.xlu0 %1603
      %1605 = vrot.lane.b32.xlu0 %v1567, 127
      %v1606 = vpop.permute.xlu0 %1605
      %1607 = vrot.lane.b32.xlu0 %v1583, 127
      %v1608 = vpop.permute.xlu0 %1607
      %1609 = vrot.lane.b32.xlu0 %v1568, 127
      %v1610 = vpop.permute.xlu0 %1609
      %1611 = vrot.lane.b32.xlu0 %v1584, 127
      %v1612 = vpop.permute.xlu0 %1611
      %1613 = vrot.lane.b32.xlu0 %v1569, 127
      %v1614 = vpop.permute.xlu0 %1613
      %1615 = vrot.lane.b32.xlu0 %v1585, 127
      %v1616 = vpop.permute.xlu0 %1615
      %1617 = vrot.lane.b32.xlu0 %v1570, 127
      %v1618 = vpop.permute.xlu0 %1617
      %1619 = vrot.lane.b32.xlu0 %v1586, 127
      %v1620 = vpop.permute.xlu0 %1619
      %1621 = vrot.lane.b32.xlu0 %v1571, 127
      %v1622 = vpop.permute.xlu0 %1621
      %1623 = vrot.lane.b32.xlu0 %v1587, 127
      %v1624 = vpop.permute.xlu0 %1623
      %1625 = vrot.lane.b32.xlu0 %v1572, 127
      %v1626 = vpop.permute.xlu0 %1625
      %1627 = vrot.lane.b32.xlu0 %v1588, 127
      %v1628 = vpop.permute.xlu0 %1627
      %1629 = vrot.lane.b32.xlu0 %v1573, 127
      %v1630 = vpop.permute.xlu0 %1629
      %1631 = vrot.lane.b32.xlu0 %v1589, 127
      %v1632 = vpop.permute.xlu0 %1631
      %1633 = vrot.lane.b32.xlu0 %v1574, 127
      %v1634 = vpop.permute.xlu0 %1633
      %1635 = vrot.lane.b32.xlu0 %v1590, 127
      %v1636 = vpop.permute.xlu0 %1635
      %1637 = vrot.lane.b32.xlu0 %v1575, 127
      %v1638 = vpop.permute.xlu0 %1637
      %1639 = vrot.lane.b32.xlu0 %v1591, 127
      %v1640 = vpop.permute.xlu0 %1639
      %1641 = vrot.lane.b32.xlu0 %v1576, 127
      %v1642 = vpop.permute.xlu0 %1641
      %1643 = vrot.lane.b32.xlu0 %v1592, 127
      %v1644 = vpop.permute.xlu0 %1643
      %1645 = vrot.lane.b32.xlu0 %v1577, 127
      %v1646 = vpop.permute.xlu0 %1645
      %1647 = vrot.lane.b32.xlu0 %v1593, 127
      %v1648 = vpop.permute.xlu0 %1647
      %1649 = vrot.lane.b32.xlu0 %v1578, 127
      %v1650 = vpop.permute.xlu0 %1649
      %1651 = vrot.lane.b32.xlu0 %v1594, 127
      %v1652 = vpop.permute.xlu0 %1651
      %1653 = vrot.lane.b32.xlu0 %v1579, 127
      %v1654 = vpop.permute.xlu0 %1653
      %1655 = vrot.lane.b32.xlu0 %v1595, 127
      %v1656 = vpop.permute.xlu0 %1655
      %1657 = vrot.lane.b32.xlu0 %v1580, 127
      %v1658 = vpop.permute.xlu0 %1657
      %1659 = vrot.lane.b32.xlu0 %v1596, 127
      %v1660 = vpop.permute.xlu0 %1659
      %v1661 = vsel %vm942, %v1654, %v1658
      %v1662 = vsel %vm942, %v1656, %v1660
      %v1663 = vsel %vm942, %v1650, %v1654
      %v1664 = vsel %vm942, %v1652, %v1656
      %v1665 = vsel %vm942, %v1646, %v1650
      %v1666 = vsel %vm942, %v1648, %v1652
      %v1667 = vsel %vm942, %v1642, %v1646
      %v1668 = vsel %vm942, %v1644, %v1648
      %v1669 = vsel %vm942, %v1638, %v1642
      %v1670 = vsel %vm942, %v1640, %v1644
      %v1671 = vsel %vm942, %v1634, %v1638
      %v1672 = vsel %vm942, %v1636, %v1640
      %v1673 = vsel %vm942, %v1630, %v1634
      %v1674 = vsel %vm942, %v1632, %v1636
      %v1675 = vsel %vm942, %v1626, %v1630
      %v1676 = vsel %vm942, %v1628, %v1632
      %v1677 = vsel %vm942, %v1622, %v1626
      %v1678 = vsel %vm942, %v1624, %v1628
      %v1679 = vsel %vm942, %v1618, %v1622
      %v1680 = vsel %vm942, %v1620, %v1624
      %v1681 = vsel %vm942, %v1614, %v1618
      %v1682 = vsel %vm942, %v1616, %v1620
      %v1683 = vsel %vm942, %v1610, %v1614
      %v1684 = vsel %vm942, %v1612, %v1616
      %v1685 = vsel %vm942, %v1606, %v1610
      %v1686 = vsel %vm942, %v1608, %v1612
      %v1687 = vsel %vm942, %v1602, %v1606
      %v1688 = vsel %vm942, %v1604, %v1608
      %v1689 = vsel %vm942, %v1598, %v1602
      %v1690 = vsel %vm942, %v1600, %v1604
      %v1691 = vsel %vm942, %v1658, %v1598
      %v1692 = vsel %vm942, %v1660, %v1600
      %v1693 = vmax.f32 %v1565, %v1689
      %v1694 = vmax.f32 %v1566, %v1687
      %v1695 = vmax.f32 %v1567, %v1685
      %v1696 = vmax.f32 %v1568, %v1683
      %v1697 = vmax.f32 %v1569, %v1681
      %v1698 = vmax.f32 %v1570, %v1679
      %v1699 = vmax.f32 %v1571, %v1677
      %v1700 = vmax.f32 %v1572, %v1675
      %v1701 = vmax.f32 %v1573, %v1673
      %v1702 = vmax.f32 %v1574, %v1671
      %v1703 = vmax.f32 %v1575, %v1669
      %v1704 = vmax.f32 %v1576, %v1667
      %v1705 = vmax.f32 %v1577, %v1665
      %v1706 = vmax.f32 %v1578, %v1663
      %v1707 = vmax.f32 %v1579, %v1661
      %v1708 = vmax.f32 %v1580, %v1691
      %v1709 = vmax.f32 %v1581, %v1690
      %v1710 = vmax.f32 %v1582, %v1688
      %v1711 = vmax.f32 %v1583, %v1686
      %v1712 = vmax.f32 %v1584, %v1684
      %v1713 = vmax.f32 %v1585, %v1682
      %v1714 = vmax.f32 %v1586, %v1680
      %v1715 = vmax.f32 %v1587, %v1678
      %v1716 = vmax.f32 %v1588, %v1676
      %v1717 = vmax.f32 %v1589, %v1674
      %v1718 = vmax.f32 %v1590, %v1672
      %v1719 = vmax.f32 %v1591, %v1670
      %v1720 = vmax.f32 %v1592, %v1668
      %v1721 = vmax.f32 %v1593, %v1666
      %v1722 = vmax.f32 %v1594, %v1664
      %v1723 = vmax.f32 %v1595, %v1662
      %v1724 = vmax.f32 %v1596, %v1692
      %1725 = vrot.lane.b32.xlu0 %v1693, 2
      %v1726 = vpop.permute.xlu0 %1725
      %1727 = vrot.lane.b32.xlu0 %v1709, 2
      %v1728 = vpop.permute.xlu0 %1727
      %1729 = vrot.lane.b32.xlu0 %v1694, 2
      %v1730 = vpop.permute.xlu0 %1729
      %1731 = vrot.lane.b32.xlu0 %v1710, 2
      %v1732 = vpop.permute.xlu0 %1731
      %1733 = vrot.lane.b32.xlu0 %v1695, 2
      %v1734 = vpop.permute.xlu0 %1733
      %1735 = vrot.lane.b32.xlu0 %v1711, 2
      %v1736 = vpop.permute.xlu0 %1735
      %1737 = vrot.lane.b32.xlu0 %v1696, 2
      %v1738 = vpop.permute.xlu0 %1737
      %1739 = vrot.lane.b32.xlu0 %v1712, 2
      %v1740 = vpop.permute.xlu0 %1739
      %1741 = vrot.lane.b32.xlu0 %v1697, 2
      %v1742 = vpop.permute.xlu0 %1741
      %1743 = vrot.lane.b32.xlu0 %v1713, 2
      %v1744 = vpop.permute.xlu0 %1743
      %1745 = vrot.lane.b32.xlu0 %v1698, 2
      %v1746 = vpop.permute.xlu0 %1745
      %1747 = vrot.lane.b32.xlu0 %v1714, 2
      %v1748 = vpop.permute.xlu0 %1747
      %1749 = vrot.lane.b32.xlu0 %v1699, 2
      %v1750 = vpop.permute.xlu0 %1749
      %1751 = vrot.lane.b32.xlu0 %v1715, 2
      %v1752 = vpop.permute.xlu0 %1751
      %1753 = vrot.lane.b32.xlu0 %v1700, 2
      %v1754 = vpop.permute.xlu0 %1753
      %1755 = vrot.lane.b32.xlu0 %v1716, 2
      %v1756 = vpop.permute.xlu0 %1755
      %1757 = vrot.lane.b32.xlu0 %v1701, 2
      %v1758 = vpop.permute.xlu0 %1757
      %1759 = vrot.lane.b32.xlu0 %v1717, 2
      %v1760 = vpop.permute.xlu0 %1759
      %1761 = vrot.lane.b32.xlu0 %v1702, 2
      %v1762 = vpop.permute.xlu0 %1761
      %1763 = vrot.lane.b32.xlu0 %v1718, 2
      %v1764 = vpop.permute.xlu0 %1763
      %1765 = vrot.lane.b32.xlu0 %v1703, 2
      %v1766 = vpop.permute.xlu0 %1765
      %1767 = vrot.lane.b32.xlu0 %v1719, 2
      %v1768 = vpop.permute.xlu0 %1767
      %1769 = vrot.lane.b32.xlu0 %v1704, 2
      %v1770 = vpop.permute.xlu0 %1769
      %1771 = vrot.lane.b32.xlu0 %v1720, 2
      %v1772 = vpop.permute.xlu0 %1771
      %1773 = vrot.lane.b32.xlu0 %v1705, 2
      %v1774 = vpop.permute.xlu0 %1773
      %1775 = vrot.lane.b32.xlu0 %v1721, 2
      %v1776 = vpop.permute.xlu0 %1775
      %1777 = vrot.lane.b32.xlu0 %v1706, 2
      %v1778 = vpop.permute.xlu0 %1777
      %1779 = vrot.lane.b32.xlu0 %v1722, 2
      %v1780 = vpop.permute.xlu0 %1779
      %1781 = vrot.lane.b32.xlu0 %v1707, 2
      %v1782 = vpop.permute.xlu0 %1781
      %1783 = vrot.lane.b32.xlu0 %v1723, 2
      %v1784 = vpop.permute.xlu0 %1783
      %1785 = vrot.lane.b32.xlu0 %v1708, 2
      %v1786 = vpop.permute.xlu0 %1785
      %1787 = vrot.lane.b32.xlu0 %v1724, 2
      %v1788 = vpop.permute.xlu0 %1787
      %v1789 = vsel %vm696, %v1782, %v1786
      %v1790 = vsel %vm696, %v1784, %v1788
      %v1791 = vsel %vm696, %v1778, %v1782
      %v1792 = vsel %vm696, %v1780, %v1784
      %v1793 = vsel %vm696, %v1774, %v1778
      %v1794 = vsel %vm696, %v1776, %v1780
      %v1795 = vsel %vm696, %v1770, %v1774
      %v1796 = vsel %vm696, %v1772, %v1776
      %v1797 = vsel %vm696, %v1766, %v1770
      %v1798 = vsel %vm696, %v1768, %v1772
      %v1799 = vsel %vm696, %v1762, %v1766
      %v1800 = vsel %vm696, %v1764, %v1768
      %v1801 = vsel %vm696, %v1758, %v1762
      %v1802 = vsel %vm696, %v1760, %v1764
      %v1803 = vsel %vm696, %v1754, %v1758
      %v1804 = vsel %vm696, %v1756, %v1760
      %v1805 = vsel %vm696, %v1750, %v1754
      %v1806 = vsel %vm696, %v1752, %v1756
      %v1807 = vsel %vm696, %v1746, %v1750
      %v1808 = vsel %vm696, %v1748, %v1752
      %v1809 = vsel %vm696, %v1742, %v1746
      %v1810 = vsel %vm696, %v1744, %v1748
      %v1811 = vsel %vm696, %v1738, %v1742
      %v1812 = vsel %vm696, %v1740, %v1744
      %v1813 = vsel %vm696, %v1734, %v1738
      %v1814 = vsel %vm696, %v1736, %v1740
      %v1815 = vsel %vm696, %v1730, %v1734
      %v1816 = vsel %vm696, %v1732, %v1736
      %v1817 = vsel %vm696, %v1726, %v1730
      %v1818 = vsel %vm696, %v1728, %v1732
      %v1819 = vsel %vm696, %v1786, %v1726
      %v1820 = vsel %vm696, %v1788, %v1728
      %v1821 = vsel %vm582, 1, 0
      %v1822 = vsel %vm583, 1, 0
      %v1823 = vsel %vm584, 1, 0
      %v1824 = vsel %vm585, 1, 0
      %v1825 = vsel %vm586, 1, 0
      %v1826 = vsel %vm587, 1, 0
      %v1827 = vsel %vm588, 1, 0
      %v1828 = vsel %vm589, 1, 0
      %v1829 = vsel %vm590, 1, 0
      %v1830 = vsel %vm591, 1, 0
      %v1831 = vsel %vm592, 1, 0
      %v1832 = vsel %vm593, 1, 0
      %v1833 = vsel %vm594, 1, 0
      %v1834 = vsel %vm595, 1, 0
      %v1835 = vsel %vm596, 1, 0
      %v1836 = vsel %vm597, 1, 0
      %vm1837 = vcmp.eq.s32.totalorder %v1821, 1
      %vm1838 = vcmp.eq.s32.totalorder %v1822, 1
      %vm1839 = vcmp.eq.s32.totalorder %v1823, 1
      %vm1840 = vcmp.eq.s32.totalorder %v1824, 1
      %vm1841 = vcmp.eq.s32.totalorder %v1825, 1
      %vm1842 = vcmp.eq.s32.totalorder %v1826, 1
      %vm1843 = vcmp.eq.s32.totalorder %v1827, 1
      %vm1844 = vcmp.eq.s32.totalorder %v1828, 1
      %vm1845 = vcmp.eq.s32.totalorder %v1829, 1
      %vm1846 = vcmp.eq.s32.totalorder %v1830, 1
      %vm1847 = vcmp.eq.s32.totalorder %v1831, 1
      %vm1848 = vcmp.eq.s32.totalorder %v1832, 1
      %vm1849 = vcmp.eq.s32.totalorder %v1833, 1
      %vm1850 = vcmp.eq.s32.totalorder %v1834, 1
      %vm1851 = vcmp.eq.s32.totalorder %v1835, 1
      %vm1852 = vcmp.eq.s32.totalorder %v1836, 1
      %v1853 = vsel %vm1837, %v1819, 0.0
      %v1854 = vsel %vm1838, %v1817, 0.0
      %v1855 = vsel %vm1839, %v1815, 0.0
      %v1856 = vsel %vm1840, %v1813, 0.0
      %v1857 = vsel %vm1841, %v1811, 0.0
      %v1858 = vsel %vm1842, %v1809, 0.0
      %v1859 = vsel %vm1843, %v1807, 0.0
      %v1860 = vsel %vm1844, %v1805, 0.0
      %v1861 = vsel %vm1845, %v1803, 0.0
      %v1862 = vsel %vm1846, %v1801, 0.0
      %v1863 = vsel %vm1847, %v1799, 0.0
      %v1864 = vsel %vm1848, %v1797, 0.0
      %v1865 = vsel %vm1849, %v1795, 0.0
      %v1866 = vsel %vm1850, %v1793, 0.0
      %v1867 = vsel %vm1851, %v1791, 0.0
      %v1868 = vsel %vm1852, %v1789, 0.0
      %v1869 = vsel %vm1837, %v1820, 0.0
      %v1870 = vsel %vm1838, %v1818, 0.0
      %v1871 = vsel %vm1839, %v1816, 0.0
      %v1872 = vsel %vm1840, %v1814, 0.0
      %v1873 = vsel %vm1841, %v1812, 0.0
      %v1874 = vsel %vm1842, %v1810, 0.0
      %v1875 = vsel %vm1843, %v1808, 0.0
      %v1876 = vsel %vm1844, %v1806, 0.0
      %v1877 = vsel %vm1845, %v1804, 0.0
      %v1878 = vsel %vm1846, %v1802, 0.0
      %v1879 = vsel %vm1847, %v1800, 0.0
      %v1880 = vsel %vm1848, %v1798, 0.0
      %v1881 = vsel %vm1849, %v1796, 0.0
      %v1882 = vsel %vm1850, %v1794, 0.0
      %v1883 = vsel %vm1851, %v1792, 0.0
      %v1884 = vsel %vm1852, %v1790, 0.0
      %1885 = vrot.lane.b32.xlu0 %v1693, 126
      %v1886 = vpop.permute.xlu0 %1885
      %1887 = vrot.lane.b32.xlu0 %v1709, 126
      %v1888 = vpop.permute.xlu0 %1887
      %1889 = vrot.lane.b32.xlu0 %v1694, 126
      %v1890 = vpop.permute.xlu0 %1889
      %1891 = vrot.lane.b32.xlu0 %v1710, 126
      %v1892 = vpop.permute.xlu0 %1891
      %1893 = vrot.lane.b32.xlu0 %v1695, 126
      %v1894 = vpop.permute.xlu0 %1893
      %1895 = vrot.lane.b32.xlu0 %v1711, 126
      %v1896 = vpop.permute.xlu0 %1895
      %1897 = vrot.lane.b32.xlu0 %v1696, 126
      %v1898 = vpop.permute.xlu0 %1897
      %1899 = vrot.lane.b32.xlu0 %v1712, 126
      %v1900 = vpop.permute.xlu0 %1899
      %1901 = vrot.lane.b32.xlu0 %v1697, 126
      %v1902 = vpop.permute.xlu0 %1901
      %1903 = vrot.lane.b32.xlu0 %v1713, 126
      %v1904 = vpop.permute.xlu0 %1903
      %1905 = vrot.lane.b32.xlu0 %v1698, 126
      %v1906 = vpop.permute.xlu0 %1905
      %1907 = vrot.lane.b32.xlu0 %v1714, 126
      %v1908 = vpop.permute.xlu0 %1907
      %1909 = vrot.lane.b32.xlu0 %v1699, 126
      %v1910 = vpop.permute.xlu0 %1909
      %1911 = vrot.lane.b32.xlu0 %v1715, 126
      %v1912 = vpop.permute.xlu0 %1911
      %1913 = vrot.lane.b32.xlu0 %v1700, 126
      %v1914 = vpop.permute.xlu0 %1913
      %1915 = vrot.lane.b32.xlu0 %v1716, 126
      %v1916 = vpop.permute.xlu0 %1915
      %1917 = vrot.lane.b32.xlu0 %v1701, 126
      %v1918 = vpop.permute.xlu0 %1917
      %1919 = vrot.lane.b32.xlu0 %v1717, 126
      %v1920 = vpop.permute.xlu0 %1919
      %1921 = vrot.lane.b32.xlu0 %v1702, 126
      %v1922 = vpop.permute.xlu0 %1921
      %1923 = vrot.lane.b32.xlu0 %v1718, 126
      %v1924 = vpop.permute.xlu0 %1923
      %1925 = vrot.lane.b32.xlu0 %v1703, 126
      %v1926 = vpop.permute.xlu0 %1925
      %1927 = vrot.lane.b32.xlu0 %v1719, 126
      %v1928 = vpop.permute.xlu0 %1927
      %1929 = vrot.lane.b32.xlu0 %v1704, 126
      %v1930 = vpop.permute.xlu0 %1929
      %1931 = vrot.lane.b32.xlu0 %v1720, 126
      %v1932 = vpop.permute.xlu0 %1931
      %1933 = vrot.lane.b32.xlu0 %v1705, 126
      %v1934 = vpop.permute.xlu0 %1933
      %1935 = vrot.lane.b32.xlu0 %v1721, 126
      %v1936 = vpop.permute.xlu0 %1935
      %1937 = vrot.lane.b32.xlu0 %v1706, 126
      %v1938 = vpop.permute.xlu0 %1937
      %1939 = vrot.lane.b32.xlu0 %v1722, 126
      %v1940 = vpop.permute.xlu0 %1939
      %1941 = vrot.lane.b32.xlu0 %v1707, 126
      %v1942 = vpop.permute.xlu0 %1941
      %1943 = vrot.lane.b32.xlu0 %v1723, 126
      %v1944 = vpop.permute.xlu0 %1943
      %1945 = vrot.lane.b32.xlu0 %v1708, 126
      %v1946 = vpop.permute.xlu0 %1945
      %1947 = vrot.lane.b32.xlu0 %v1724, 126
      %v1948 = vpop.permute.xlu0 %1947
      %v1949 = vsel %vm1059, %v1942, %v1946
      %v1950 = vsel %vm1059, %v1944, %v1948
      %v1951 = vsel %vm1059, %v1938, %v1942
      %v1952 = vsel %vm1059, %v1940, %v1944
      %v1953 = vsel %vm1059, %v1934, %v1938
      %v1954 = vsel %vm1059, %v1936, %v1940
      %v1955 = vsel %vm1059, %v1930, %v1934
      %v1956 = vsel %vm1059, %v1932, %v1936
      %v1957 = vsel %vm1059, %v1926, %v1930
      %v1958 = vsel %vm1059, %v1928, %v1932
      %v1959 = vsel %vm1059, %v1922, %v1926
      %v1960 = vsel %vm1059, %v1924, %v1928
      %v1961 = vsel %vm1059, %v1918, %v1922
      %v1962 = vsel %vm1059, %v1920, %v1924
      %v1963 = vsel %vm1059, %v1914, %v1918
      %v1964 = vsel %vm1059, %v1916, %v1920
      %v1965 = vsel %vm1059, %v1910, %v1914
      %v1966 = vsel %vm1059, %v1912, %v1916
      %v1967 = vsel %vm1059, %v1906, %v1910
      %v1968 = vsel %vm1059, %v1908, %v1912
      %v1969 = vsel %vm1059, %v1902, %v1906
      %v1970 = vsel %vm1059, %v1904, %v1908
      %v1971 = vsel %vm1059, %v1898, %v1902
      %v1972 = vsel %vm1059, %v1900, %v1904
      %v1973 = vsel %vm1059, %v1894, %v1898
      %v1974 = vsel %vm1059, %v1896, %v1900
      %v1975 = vsel %vm1059, %v1890, %v1894
      %v1976 = vsel %vm1059, %v1892, %v1896
      %v1977 = vsel %vm1059, %v1886, %v1890
      %v1978 = vsel %vm1059, %v1888, %v1892
      %v1979 = vsel %vm1059, %v1946, %v1886
      %v1980 = vsel %vm1059, %v1948, %v1888
      %v1981 = vsel %vm614, 1, 0
      %v1982 = vsel %vm615, 1, 0
      %v1983 = vsel %vm616, 1, 0
      %v1984 = vsel %vm617, 1, 0
      %v1985 = vsel %vm618, 1, 0
      %v1986 = vsel %vm619, 1, 0
      %v1987 = vsel %vm620, 1, 0
      %v1988 = vsel %vm621, 1, 0
      %v1989 = vsel %vm622, 1, 0
      %v1990 = vsel %vm623, 1, 0
      %v1991 = vsel %vm624, 1, 0
      %v1992 = vsel %vm625, 1, 0
      %v1993 = vsel %vm626, 1, 0
      %v1994 = vsel %vm627, 1, 0
      %v1995 = vsel %vm628, 1, 0
      %v1996 = vsel %vm629, 1, 0
      %vm1997 = vcmp.eq.s32.totalorder %v1981, 1
      %vm1998 = vcmp.eq.s32.totalorder %v1982, 1
      %vm1999 = vcmp.eq.s32.totalorder %v1983, 1
      %vm2000 = vcmp.eq.s32.totalorder %v1984, 1
      %vm2001 = vcmp.eq.s32.totalorder %v1985, 1
      %vm2002 = vcmp.eq.s32.totalorder %v1986, 1
      %vm2003 = vcmp.eq.s32.totalorder %v1987, 1
      %vm2004 = vcmp.eq.s32.totalorder %v1988, 1
      %vm2005 = vcmp.eq.s32.totalorder %v1989, 1
      %vm2006 = vcmp.eq.s32.totalorder %v1990, 1
      %vm2007 = vcmp.eq.s32.totalorder %v1991, 1
      %vm2008 = vcmp.eq.s32.totalorder %v1992, 1
      %vm2009 = vcmp.eq.s32.totalorder %v1993, 1
      %vm2010 = vcmp.eq.s32.totalorder %v1994, 1
      %vm2011 = vcmp.eq.s32.totalorder %v1995, 1
      %vm2012 = vcmp.eq.s32.totalorder %v1996, 1
      %v2013 = vsel %vm1997, %v1977, 0.0
      %v2014 = vsel %vm1998, %v1975, 0.0
      %v2015 = vsel %vm1999, %v1973, 0.0
      %v2016 = vsel %vm2000, %v1971, 0.0
      %v2017 = vsel %vm2001, %v1969, 0.0
      %v2018 = vsel %vm2002, %v1967, 0.0
      %v2019 = vsel %vm2003, %v1965, 0.0
      %v2020 = vsel %vm2004, %v1963, 0.0
      %v2021 = vsel %vm2005, %v1961, 0.0
      %v2022 = vsel %vm2006, %v1959, 0.0
      %v2023 = vsel %vm2007, %v1957, 0.0
      %v2024 = vsel %vm2008, %v1955, 0.0
      %v2025 = vsel %vm2009, %v1953, 0.0
      %v2026 = vsel %vm2010, %v1951, 0.0
      %v2027 = vsel %vm2011, %v1949, 0.0
      %v2028 = vsel %vm2012, %v1979, 0.0
      %v2029 = vsel %vm1997, %v1978, 0.0
      %v2030 = vsel %vm1998, %v1976, 0.0
      %v2031 = vsel %vm1999, %v1974, 0.0
      %v2032 = vsel %vm2000, %v1972, 0.0
      %v2033 = vsel %vm2001, %v1970, 0.0
      %v2034 = vsel %vm2002, %v1968, 0.0
      %v2035 = vsel %vm2003, %v1966, 0.0
      %v2036 = vsel %vm2004, %v1964, 0.0
      %v2037 = vsel %vm2005, %v1962, 0.0
      %v2038 = vsel %vm2006, %v1960, 0.0
      %v2039 = vsel %vm2007, %v1958, 0.0
      %v2040 = vsel %vm2008, %v1956, 0.0
      %v2041 = vsel %vm2009, %v1954, 0.0
      %v2042 = vsel %vm2010, %v1952, 0.0
      %v2043 = vsel %vm2011, %v1950, 0.0
      %v2044 = vsel %vm2012, %v1980, 0.0
      %v2045 = vld [vmem:[%s3] sm:$0xff]
      %v2046 = vld [vmem:[%s3 + $0x8] sm:$0xff]
      %v2047 = vld [vmem:[%s3 + $0x10] sm:$0xff]
      %v2048 = vld [vmem:[%s3 + $0x18] sm:$0xff]
      %v2049 = vld [vmem:[%s3 + $0x20] sm:$0xff]
      %v2050 = vld [vmem:[%s3 + $0x28] sm:$0xff]
      %v2051 = vld [vmem:[%s3 + $0x30] sm:$0xff]
      %v2052 = vld [vmem:[%s3 + $0x38] sm:$0xff]
      %v2053 = vld [vmem:[%s3 + $0x40] sm:$0xff]
      %v2054 = vld [vmem:[%s3 + $0x48] sm:$0xff]
      %v2055 = vld [vmem:[%s3 + $0x50] sm:$0xff]
      %v2056 = vld [vmem:[%s3 + $0x58] sm:$0xff]
      %vm2057 = vcmask 130048
      %v2059 = vsel %vm2057, %v2049, 0
      %v2062 = vsel %vm2057, %v2050, 0
      %v2065 = vsel %vm2057, %v2051, 0
      %v2068 = vsel %vm2057, %v2052, 0
      %2070 = vmatpush.msra.mxu0 0.0
      %2071 = vmatpush.msra.mxu0 0.0
      %2072 = vmatpush.msra.mxu0 0.0
      %2073 = vmatpush.msra.mxu0 0.0
      %2074 = vmatpush.msra.mxu0 0.0
      %2075 = vmatpush.msra.mxu0 0.0
      %2076 = vmatpush.msra.mxu0 0.0
      %2077 = vmatpush.msra.mxu0 0.0
      %2078 = vmatpush.msra.mxu0 0.0
      %2079 = vmatpush.msra.mxu0 0.0
      %2080 = vmatpush.msra.mxu0 0.0
      %2081 = vmatpush.msra.mxu0 0.0
      %2082 = vmatpush.msra.mxu0 0.0
      %2083 = vmatpush.msra.mxu0 0.0
      %2084 = vmatpush.msra.mxu0 %v1709
      %2085 = vmatpush.msra.mxu0 %v1693
      %2086 = vmatmul.f32.gmra.mxu0 %v2059
      %v2087 = vpop.f32.mrf.mxu0
      %v2088 = vadd.f32 0.0, %v2087
      %2089 = vmatmul.f32.gmra.mxu0 %v2062
      %v2090 = vpop.f32.mrf.mxu0
      %v2091 = vadd.f32 0.0, %v2090
      %2092 = vmatmul.f32.gmra.mxu0 %v2065
      %v2093 = vpop.f32.mrf.mxu0
      %v2094 = vadd.f32 0.0, %v2093
      %2095 = vmatmul.f32.gmra.mxu0 %v2068
      %v2096 = vpop.f32.mrf.mxu0
      %v2097 = vadd.f32 0.0, %v2096
      %2098 = vdwg.mxu0
      %2099 = vmatpush.msra.mxu0 0.0
      %2100 = vmatpush.msra.mxu0 0.0
      %2101 = vmatpush.msra.mxu0 0.0
      %2102 = vmatpush.msra.mxu0 0.0
      %2103 = vmatpush.msra.mxu0 0.0
      %2104 = vmatpush.msra.mxu0 0.0
      %2105 = vmatpush.msra.mxu0 0.0
      %2106 = vmatpush.msra.mxu0 0.0
      %2107 = vmatpush.msra.mxu0 0.0
      %2108 = vmatpush.msra.mxu0 0.0
      %2109 = vmatpush.msra.mxu0 0.0
      %2110 = vmatpush.msra.mxu0 0.0
      %2111 = vmatpush.msra.mxu0 0.0
      %2112 = vmatpush.msra.mxu0 0.0
      %2113 = vmatpush.msra.mxu0 %v1710
      %2114 = vmatpush.msra.mxu0 %v1694
      %2115 = vmatmul.f32.gmra.mxu0 %v2059
      %v2116 = vpop.f32.mrf.mxu0
      %v2117 = vadd.f32 0.0, %v2116
      %2118 = vmatmul.f32.gmra.mxu0 %v2062
      %v2119 = vpop.f32.mrf.mxu0
      %v2120 = vadd.f32 0.0, %v2119
      %2121 = vmatmul.f32.gmra.mxu0 %v2065
      %v2122 = vpop.f32.mrf.mxu0
      %v2123 = vadd.f32 0.0, %v2122
      %2124 = vmatmul.f32.gmra.mxu0 %v2068
      %v2125 = vpop.f32.mrf.mxu0
      %v2126 = vadd.f32 0.0, %v2125
      %2127 = vdwg.mxu0
      %2128 = vmatpush.msra.mxu0 0.0
      %2129 = vmatpush.msra.mxu0 0.0
      %2130 = vmatpush.msra.mxu0 0.0
      %2131 = vmatpush.msra.mxu0 0.0
      %2132 = vmatpush.msra.mxu0 0.0
      %2133 = vmatpush.msra.mxu0 0.0
      %2134 = vmatpush.msra.mxu0 0.0
      %2135 = vmatpush.msra.mxu0 0.0
      %2136 = vmatpush.msra.mxu0 0.0
      %2137 = vmatpush.msra.mxu0 0.0
      %2138 = vmatpush.msra.mxu0 0.0
      %2139 = vmatpush.msra.mxu0 0.0
      %2140 = vmatpush.msra.mxu0 0.0
      %2141 = vmatpush.msra.mxu0 0.0
      %2142 = vmatpush.msra.mxu0 %v1711
      %2143 = vmatpush.msra.mxu0 %v1695
      %2144 = vmatmul.f32.gmra.mxu0 %v2059
      %v2145 = vpop.f32.mrf.mxu0
      %v2146 = vadd.f32 0.0, %v2145
      %2147 = vmatmul.f32.gmra.mxu0 %v2062
      %v2148 = vpop.f32.mrf.mxu0
      %v2149 = vadd.f32 0.0, %v2148
      %2150 = vmatmul.f32.gmra.mxu0 %v2065
      %v2151 = vpop.f32.mrf.mxu0
      %v2152 = vadd.f32 0.0, %v2151
      %2153 = vmatmul.f32.gmra.mxu0 %v2068
      %v2154 = vpop.f32.mrf.mxu0
      %v2155 = vadd.f32 0.0, %v2154
      %2156 = vdwg.mxu0
      %2157 = vmatpush.msra.mxu0 0.0
      %2158 = vmatpush.msra.mxu0 0.0
      %2159 = vmatpush.msra.mxu0 0.0
      %2160 = vmatpush.msra.mxu0 0.0
      %2161 = vmatpush.msra.mxu0 0.0
      %2162 = vmatpush.msra.mxu0 0.0
      %2163 = vmatpush.msra.mxu0 0.0
      %2164 = vmatpush.msra.mxu0 0.0
      %2165 = vmatpush.msra.mxu0 0.0
      %2166 = vmatpush.msra.mxu0 0.0
      %2167 = vmatpush.msra.mxu0 0.0
      %2168 = vmatpush.msra.mxu0 0.0
      %2169 = vmatpush.msra.mxu0 0.0
      %2170 = vmatpush.msra.mxu0 0.0
      %2171 = vmatpush.msra.mxu0 %v1712
      %2172 = vmatpush.msra.mxu0 %v1696
      %2173 = vmatmul.f32.gmra.mxu0 %v2059
      %v2174 = vpop.f32.mrf.mxu0
      %v2175 = vadd.f32 0.0, %v2174
      %2176 = vmatmul.f32.gmra.mxu0 %v2062
      %v2177 = vpop.f32.mrf.mxu0
      %v2178 = vadd.f32 0.0, %v2177
      %2179 = vmatmul.f32.gmra.mxu0 %v2065
      %v2180 = vpop.f32.mrf.mxu0
      %v2181 = vadd.f32 0.0, %v2180
      %2182 = vmatmul.f32.gmra.mxu0 %v2068
      %v2183 = vpop.f32.mrf.mxu0
      %v2184 = vadd.f32 0.0, %v2183
      %2185 = vdwg.mxu0
      %2186 = vmatpush.msra.mxu0 0.0
      %2187 = vmatpush.msra.mxu0 0.0
      %2188 = vmatpush.msra.mxu0 0.0
      %2189 = vmatpush.msra.mxu0 0.0
      %2190 = vmatpush.msra.mxu0 0.0
      %2191 = vmatpush.msra.mxu0 0.0
      %2192 = vmatpush.msra.mxu0 0.0
      %2193 = vmatpush.msra.mxu0 0.0
      %2194 = vmatpush.msra.mxu0 0.0
      %2195 = vmatpush.msra.mxu0 0.0
      %2196 = vmatpush.msra.mxu0 0.0
      %2197 = vmatpush.msra.mxu0 0.0
      %2198 = vmatpush.msra.mxu0 0.0
      %2199 = vmatpush.msra.mxu0 0.0
      %2200 = vmatpush.msra.mxu0 %v1713
      %2201 = vmatpush.msra.mxu0 %v1697
      %2202 = vmatmul.f32.gmra.mxu0 %v2059
      %v2203 = vpop.f32.mrf.mxu0
      %v2204 = vadd.f32 0.0, %v2203
      %2205 = vmatmul.f32.gmra.mxu0 %v2062
      %v2206 = vpop.f32.mrf.mxu0
      %v2207 = vadd.f32 0.0, %v2206
      %2208 = vmatmul.f32.gmra.mxu0 %v2065
      %v2209 = vpop.f32.mrf.mxu0
      %v2210 = vadd.f32 0.0, %v2209
      %2211 = vmatmul.f32.gmra.mxu0 %v2068
      %v2212 = vpop.f32.mrf.mxu0
      %v2213 = vadd.f32 0.0, %v2212
      %2214 = vdwg.mxu0
      %2215 = vmatpush.msra.mxu0 0.0
      %2216 = vmatpush.msra.mxu0 0.0
      %2217 = vmatpush.msra.mxu0 0.0
      %2218 = vmatpush.msra.mxu0 0.0
      %2219 = vmatpush.msra.mxu0 0.0
      %2220 = vmatpush.msra.mxu0 0.0
      %2221 = vmatpush.msra.mxu0 0.0
      %2222 = vmatpush.msra.mxu0 0.0
      %2223 = vmatpush.msra.mxu0 0.0
      %2224 = vmatpush.msra.mxu0 0.0
      %2225 = vmatpush.msra.mxu0 0.0
      %2226 = vmatpush.msra.mxu0 0.0
      %2227 = vmatpush.msra.mxu0 0.0
      %2228 = vmatpush.msra.mxu0 0.0
      %2229 = vmatpush.msra.mxu0 %v1714
      %2230 = vmatpush.msra.mxu0 %v1698
      %2231 = vmatmul.f32.gmra.mxu0 %v2059
      %v2232 = vpop.f32.mrf.mxu0
      %v2233 = vadd.f32 0.0, %v2232
      %2234 = vmatmul.f32.gmra.mxu0 %v2062
      %v2235 = vpop.f32.mrf.mxu0
      %v2236 = vadd.f32 0.0, %v2235
      %2237 = vmatmul.f32.gmra.mxu0 %v2065
      %v2238 = vpop.f32.mrf.mxu0
      %v2239 = vadd.f32 0.0, %v2238
      %2240 = vmatmul.f32.gmra.mxu0 %v2068
      %v2241 = vpop.f32.mrf.mxu0
      %v2242 = vadd.f32 0.0, %v2241
      %2243 = vdwg.mxu0
      %2244 = vmatpush.msra.mxu0 0.0
      %2245 = vmatpush.msra.mxu0 0.0
      %2246 = vmatpush.msra.mxu0 0.0
      %2247 = vmatpush.msra.mxu0 0.0
      %2248 = vmatpush.msra.mxu0 0.0
      %2249 = vmatpush.msra.mxu0 0.0
      %2250 = vmatpush.msra.mxu0 0.0
      %2251 = vmatpush.msra.mxu0 0.0
      %2252 = vmatpush.msra.mxu0 0.0
      %2253 = vmatpush.msra.mxu0 0.0
      %2254 = vmatpush.msra.mxu0 0.0
      %2255 = vmatpush.msra.mxu0 0.0
      %2256 = vmatpush.msra.mxu0 0.0
      %2257 = vmatpush.msra.mxu0 0.0
      %2258 = vmatpush.msra.mxu0 %v1715
      %2259 = vmatpush.msra.mxu0 %v1699
      %2260 = vmatmul.f32.gmra.mxu0 %v2059
      %v2261 = vpop.f32.mrf.mxu0
      %v2262 = vadd.f32 0.0, %v2261
      %2263 = vmatmul.f32.gmra.mxu0 %v2062
      %v2264 = vpop.f32.mrf.mxu0
      %v2265 = vadd.f32 0.0, %v2264
      %2266 = vmatmul.f32.gmra.mxu0 %v2065
      %v2267 = vpop.f32.mrf.mxu0
      %v2268 = vadd.f32 0.0, %v2267
      %2269 = vmatmul.f32.gmra.mxu0 %v2068
      %v2270 = vpop.f32.mrf.mxu0
      %v2271 = vadd.f32 0.0, %v2270
      %2272 = vdwg.mxu0
      %2273 = vmatpush.msra.mxu0 0.0
      %2274 = vmatpush.msra.mxu0 0.0
      %2275 = vmatpush.msra.mxu0 0.0
      %2276 = vmatpush.msra.mxu0 0.0
      %2277 = vmatpush.msra.mxu0 0.0
      %2278 = vmatpush.msra.mxu0 0.0
      %2279 = vmatpush.msra.mxu0 0.0
      %2280 = vmatpush.msra.mxu0 0.0
      %2281 = vmatpush.msra.mxu0 0.0
      %2282 = vmatpush.msra.mxu0 0.0
      %2283 = vmatpush.msra.mxu0 0.0
      %2284 = vmatpush.msra.mxu0 0.0
      %2285 = vmatpush.msra.mxu0 0.0
      %2286 = vmatpush.msra.mxu0 0.0
      %2287 = vmatpush.msra.mxu0 %v1716
      %2288 = vmatpush.msra.mxu0 %v1700
      %2289 = vmatmul.f32.gmra.mxu0 %v2059
      %v2290 = vpop.f32.mrf.mxu0
      %v2291 = vadd.f32 0.0, %v2290
      %2292 = vmatmul.f32.gmra.mxu0 %v2062
      %v2293 = vpop.f32.mrf.mxu0
      %v2294 = vadd.f32 0.0, %v2293
      %2295 = vmatmul.f32.gmra.mxu0 %v2065
      %v2296 = vpop.f32.mrf.mxu0
      %v2297 = vadd.f32 0.0, %v2296
      %2298 = vmatmul.f32.gmra.mxu0 %v2068
      %v2299 = vpop.f32.mrf.mxu0
      %v2300 = vadd.f32 0.0, %v2299
      %2301 = vdwg.mxu0
      %2302 = vmatpush.msra.mxu0 0.0
      %2303 = vmatpush.msra.mxu0 0.0
      %2304 = vmatpush.msra.mxu0 0.0
      %2305 = vmatpush.msra.mxu0 0.0
      %2306 = vmatpush.msra.mxu0 0.0
      %2307 = vmatpush.msra.mxu0 0.0
      %2308 = vmatpush.msra.mxu0 0.0
      %2309 = vmatpush.msra.mxu0 0.0
      %2310 = vmatpush.msra.mxu0 0.0
      %2311 = vmatpush.msra.mxu0 0.0
      %2312 = vmatpush.msra.mxu0 0.0
      %2313 = vmatpush.msra.mxu0 0.0
      %2314 = vmatpush.msra.mxu0 0.0
      %2315 = vmatpush.msra.mxu0 0.0
      %2316 = vmatpush.msra.mxu0 %v1717
      %2317 = vmatpush.msra.mxu0 %v1701
      %2318 = vmatmul.f32.gmra.mxu0 %v2059
      %v2319 = vpop.f32.mrf.mxu0
      %v2320 = vadd.f32 0.0, %v2319
      %2321 = vmatmul.f32.gmra.mxu0 %v2062
      %v2322 = vpop.f32.mrf.mxu0
      %v2323 = vadd.f32 0.0, %v2322
      %2324 = vmatmul.f32.gmra.mxu0 %v2065
      %v2325 = vpop.f32.mrf.mxu0
      %v2326 = vadd.f32 0.0, %v2325
      %2327 = vmatmul.f32.gmra.mxu0 %v2068
      %v2328 = vpop.f32.mrf.mxu0
      %v2329 = vadd.f32 0.0, %v2328
      %2330 = vdwg.mxu0
      %2331 = vmatpush.msra.mxu0 0.0
      %2332 = vmatpush.msra.mxu0 0.0
      %2333 = vmatpush.msra.mxu0 0.0
      %2334 = vmatpush.msra.mxu0 0.0
      %2335 = vmatpush.msra.mxu0 0.0
      %2336 = vmatpush.msra.mxu0 0.0
      %2337 = vmatpush.msra.mxu0 0.0
      %2338 = vmatpush.msra.mxu0 0.0
      %2339 = vmatpush.msra.mxu0 0.0
      %2340 = vmatpush.msra.mxu0 0.0
      %2341 = vmatpush.msra.mxu0 0.0
      %2342 = vmatpush.msra.mxu0 0.0
      %2343 = vmatpush.msra.mxu0 0.0
      %2344 = vmatpush.msra.mxu0 0.0
      %2345 = vmatpush.msra.mxu0 %v1718
      %2346 = vmatpush.msra.mxu0 %v1702
      %2347 = vmatmul.f32.gmra.mxu0 %v2059
      %v2348 = vpop.f32.mrf.mxu0
      %v2349 = vadd.f32 0.0, %v2348
      %2350 = vmatmul.f32.gmra.mxu0 %v2062
      %v2351 = vpop.f32.mrf.mxu0
      %v2352 = vadd.f32 0.0, %v2351
      %2353 = vmatmul.f32.gmra.mxu0 %v2065
      %v2354 = vpop.f32.mrf.mxu0
      %v2355 = vadd.f32 0.0, %v2354
      %2356 = vmatmul.f32.gmra.mxu0 %v2068
      %v2357 = vpop.f32.mrf.mxu0
      %v2358 = vadd.f32 0.0, %v2357
      %2359 = vdwg.mxu0
      %2360 = vmatpush.msra.mxu0 0.0
      %2361 = vmatpush.msra.mxu0 0.0
      %2362 = vmatpush.msra.mxu0 0.0
      %2363 = vmatpush.msra.mxu0 0.0
      %2364 = vmatpush.msra.mxu0 0.0
      %2365 = vmatpush.msra.mxu0 0.0
      %2366 = vmatpush.msra.mxu0 0.0
      %2367 = vmatpush.msra.mxu0 0.0
      %2368 = vmatpush.msra.mxu0 0.0
      %2369 = vmatpush.msra.mxu0 0.0
      %2370 = vmatpush.msra.mxu0 0.0
      %2371 = vmatpush.msra.mxu0 0.0
      %2372 = vmatpush.msra.mxu0 0.0
      %2373 = vmatpush.msra.mxu0 0.0
      %2374 = vmatpush.msra.mxu0 %v1719
      %2375 = vmatpush.msra.mxu0 %v1703
      %2376 = vmatmul.f32.gmra.mxu0 %v2059
      %v2377 = vpop.f32.mrf.mxu0
      %v2378 = vadd.f32 0.0, %v2377
      %2379 = vmatmul.f32.gmra.mxu0 %v2062
      %v2380 = vpop.f32.mrf.mxu0
      %v2381 = vadd.f32 0.0, %v2380
      %2382 = vmatmul.f32.gmra.mxu0 %v2065
      %v2383 = vpop.f32.mrf.mxu0
      %v2384 = vadd.f32 0.0, %v2383
      %2385 = vmatmul.f32.gmra.mxu0 %v2068
      %v2386 = vpop.f32.mrf.mxu0
      %v2387 = vadd.f32 0.0, %v2386
      %2388 = vdwg.mxu0
      %2389 = vmatpush.msra.mxu0 0.0
      %2390 = vmatpush.msra.mxu0 0.0
      %2391 = vmatpush.msra.mxu0 0.0
      %2392 = vmatpush.msra.mxu0 0.0
      %2393 = vmatpush.msra.mxu0 0.0
      %2394 = vmatpush.msra.mxu0 0.0
      %2395 = vmatpush.msra.mxu0 0.0
      %2396 = vmatpush.msra.mxu0 0.0
      %2397 = vmatpush.msra.mxu0 0.0
      %2398 = vmatpush.msra.mxu0 0.0
      %2399 = vmatpush.msra.mxu0 0.0
      %2400 = vmatpush.msra.mxu0 0.0
      %2401 = vmatpush.msra.mxu0 0.0
      %2402 = vmatpush.msra.mxu0 0.0
      %2403 = vmatpush.msra.mxu0 %v1720
      %2404 = vmatpush.msra.mxu0 %v1704
      %2405 = vmatmul.f32.gmra.mxu0 %v2059
      %v2406 = vpop.f32.mrf.mxu0
      %v2407 = vadd.f32 0.0, %v2406
      %2408 = vmatmul.f32.gmra.mxu0 %v2062
      %v2409 = vpop.f32.mrf.mxu0
      %v2410 = vadd.f32 0.0, %v2409
      %2411 = vmatmul.f32.gmra.mxu0 %v2065
      %v2412 = vpop.f32.mrf.mxu0
      %v2413 = vadd.f32 0.0, %v2412
      %2414 = vmatmul.f32.gmra.mxu0 %v2068
      %v2415 = vpop.f32.mrf.mxu0
      %v2416 = vadd.f32 0.0, %v2415
      %2417 = vdwg.mxu0
      %2418 = vmatpush.msra.mxu0 0.0
      %2419 = vmatpush.msra.mxu0 0.0
      %2420 = vmatpush.msra.mxu0 0.0
      %2421 = vmatpush.msra.mxu0 0.0
      %2422 = vmatpush.msra.mxu0 0.0
      %2423 = vmatpush.msra.mxu0 0.0
      %2424 = vmatpush.msra.mxu0 0.0
      %2425 = vmatpush.msra.mxu0 0.0
      %2426 = vmatpush.msra.mxu0 0.0
      %2427 = vmatpush.msra.mxu0 0.0
      %2428 = vmatpush.msra.mxu0 0.0
      %2429 = vmatpush.msra.mxu0 0.0
      %2430 = vmatpush.msra.mxu0 0.0
      %2431 = vmatpush.msra.mxu0 0.0
      %2432 = vmatpush.msra.mxu0 %v1721
      %2433 = vmatpush.msra.mxu0 %v1705
      %2434 = vmatmul.f32.gmra.mxu0 %v2059
      %v2435 = vpop.f32.mrf.mxu0
      %v2436 = vadd.f32 0.0, %v2435
      %2437 = vmatmul.f32.gmra.mxu0 %v2062
      %v2438 = vpop.f32.mrf.mxu0
      %v2439 = vadd.f32 0.0, %v2438
      %2440 = vmatmul.f32.gmra.mxu0 %v2065
      %v2441 = vpop.f32.mrf.mxu0
      %v2442 = vadd.f32 0.0, %v2441
      %2443 = vmatmul.f32.gmra.mxu0 %v2068
      %v2444 = vpop.f32.mrf.mxu0
      %v2445 = vadd.f32 0.0, %v2444
      %2446 = vdwg.mxu0
      %2447 = vmatpush.msra.mxu0 0.0
      %2448 = vmatpush.msra.mxu0 0.0
      %2449 = vmatpush.msra.mxu0 0.0
      %2450 = vmatpush.msra.mxu0 0.0
      %2451 = vmatpush.msra.mxu0 0.0
      %2452 = vmatpush.msra.mxu0 0.0
      %2453 = vmatpush.msra.mxu0 0.0
      %2454 = vmatpush.msra.mxu0 0.0
      %2455 = vmatpush.msra.mxu0 0.0
      %2456 = vmatpush.msra.mxu0 0.0
      %2457 = vmatpush.msra.mxu0 0.0
      %2458 = vmatpush.msra.mxu0 0.0
      %2459 = vmatpush.msra.mxu0 0.0
      %2460 = vmatpush.msra.mxu0 0.0
      %2461 = vmatpush.msra.mxu0 %v1722
      %2462 = vmatpush.msra.mxu0 %v1706
      %2463 = vmatmul.f32.gmra.mxu0 %v2059
      %v2464 = vpop.f32.mrf.mxu0
      %v2465 = vadd.f32 0.0, %v2464
      %2466 = vmatmul.f32.gmra.mxu0 %v2062
      %v2467 = vpop.f32.mrf.mxu0
      %v2468 = vadd.f32 0.0, %v2467
      %2469 = vmatmul.f32.gmra.mxu0 %v2065
      %v2470 = vpop.f32.mrf.mxu0
      %v2471 = vadd.f32 0.0, %v2470
      %2472 = vmatmul.f32.gmra.mxu0 %v2068
      %v2473 = vpop.f32.mrf.mxu0
      %v2474 = vadd.f32 0.0, %v2473
      %2475 = vdwg.mxu0
      %2476 = vmatpush.msra.mxu0 0.0
      %2477 = vmatpush.msra.mxu0 0.0
      %2478 = vmatpush.msra.mxu0 0.0
      %2479 = vmatpush.msra.mxu0 0.0
      %2480 = vmatpush.msra.mxu0 0.0
      %2481 = vmatpush.msra.mxu0 0.0
      %2482 = vmatpush.msra.mxu0 0.0
      %2483 = vmatpush.msra.mxu0 0.0
      %2484 = vmatpush.msra.mxu0 0.0
      %2485 = vmatpush.msra.mxu0 0.0
      %2486 = vmatpush.msra.mxu0 0.0
      %2487 = vmatpush.msra.mxu0 0.0
      %2488 = vmatpush.msra.mxu0 0.0
      %2489 = vmatpush.msra.mxu0 0.0
      %2490 = vmatpush.msra.mxu0 %v1723
      %2491 = vmatpush.msra.mxu0 %v1707
      %2492 = vmatmul.f32.gmra.mxu0 %v2059
      %v2493 = vpop.f32.mrf.mxu0
      %v2494 = vadd.f32 0.0, %v2493
      %2495 = vmatmul.f32.gmra.mxu0 %v2062
      %v2496 = vpop.f32.mrf.mxu0
      %v2497 = vadd.f32 0.0, %v2496
      %2498 = vmatmul.f32.gmra.mxu0 %v2065
      %v2499 = vpop.f32.mrf.mxu0
      %v2500 = vadd.f32 0.0, %v2499
      %2501 = vmatmul.f32.gmra.mxu0 %v2068
      %v2502 = vpop.f32.mrf.mxu0
      %v2503 = vadd.f32 0.0, %v2502
      %2504 = vdwg.mxu0
      %2505 = vmatpush.msra.mxu0 0.0
      %2506 = vmatpush.msra.mxu0 0.0
      %2507 = vmatpush.msra.mxu0 0.0
      %2508 = vmatpush.msra.mxu0 0.0
      %2509 = vmatpush.msra.mxu0 0.0
      %2510 = vmatpush.msra.mxu0 0.0
      %2511 = vmatpush.msra.mxu0 0.0
      %2512 = vmatpush.msra.mxu0 0.0
      %2513 = vmatpush.msra.mxu0 0.0
      %2514 = vmatpush.msra.mxu0 0.0
      %2515 = vmatpush.msra.mxu0 0.0
      %2516 = vmatpush.msra.mxu0 0.0
      %2517 = vmatpush.msra.mxu0 0.0
      %2518 = vmatpush.msra.mxu0 0.0
      %2519 = vmatpush.msra.mxu0 %v1724
      %2520 = vmatpush.msra.mxu0 %v1708
      %2521 = vmatmul.f32.gmra.mxu0 %v2059
      %v2522 = vpop.f32.mrf.mxu0
      %v2523 = vadd.f32 0.0, %v2522
      %2524 = vmatmul.f32.gmra.mxu0 %v2062
      %v2525 = vpop.f32.mrf.mxu0
      %v2526 = vadd.f32 0.0, %v2525
      %2527 = vmatmul.f32.gmra.mxu0 %v2065
      %v2528 = vpop.f32.mrf.mxu0
      %v2529 = vadd.f32 0.0, %v2528
      %2530 = vmatmul.f32.gmra.mxu0 %v2068
      %v2531 = vpop.f32.mrf.mxu0
      %v2532 = vadd.f32 0.0, %v2531
      %2533 = vdwg.mxu0
      %v2535 = vsel %vm2057, %v2045, 0
      %v2538 = vsel %vm2057, %v2046, 0
      %v2541 = vsel %vm2057, %v2047, 0
      %v2544 = vsel %vm2057, %v2048, 0
      %2546 = vmatpush.msra.mxu0 0.0
      %2547 = vmatpush.msra.mxu0 0.0
      %2548 = vmatpush.msra.mxu0 0.0
      %2549 = vmatpush.msra.mxu0 0.0
      %2550 = vmatpush.msra.mxu0 0.0
      %2551 = vmatpush.msra.mxu0 0.0
      %2552 = vmatpush.msra.mxu0 0.0
      %2553 = vmatpush.msra.mxu0 0.0
      %2554 = vmatpush.msra.mxu0 0.0
      %2555 = vmatpush.msra.mxu0 0.0
      %2556 = vmatpush.msra.mxu0 0.0
      %2557 = vmatpush.msra.mxu0 0.0
      %2558 = vmatpush.msra.mxu0 0.0
      %2559 = vmatpush.msra.mxu0 0.0
      %2560 = vmatpush.msra.mxu0 %v1869
      %2561 = vmatpush.msra.mxu0 %v1853
      %2562 = vmatmul.f32.gmra.mxu0 %v2535
      %v2563 = vpop.f32.mrf.mxu0
      %v2564 = vadd.f32 %v2088, %v2563
      %2565 = vmatmul.f32.gmra.mxu0 %v2538
      %v2566 = vpop.f32.mrf.mxu0
      %v2567 = vadd.f32 %v2091, %v2566
      %2568 = vmatmul.f32.gmra.mxu0 %v2541
      %v2569 = vpop.f32.mrf.mxu0
      %v2570 = vadd.f32 %v2094, %v2569
      %2571 = vmatmul.f32.gmra.mxu0 %v2544
      %v2572 = vpop.f32.mrf.mxu0
      %v2573 = vadd.f32 %v2097, %v2572
      %2574 = vdwg.mxu0
      %2575 = vmatpush.msra.mxu0 0.0
      %2576 = vmatpush.msra.mxu0 0.0
      %2577 = vmatpush.msra.mxu0 0.0
      %2578 = vmatpush.msra.mxu0 0.0
      %2579 = vmatpush.msra.mxu0 0.0
      %2580 = vmatpush.msra.mxu0 0.0
      %2581 = vmatpush.msra.mxu0 0.0
      %2582 = vmatpush.msra.mxu0 0.0
      %2583 = vmatpush.msra.mxu0 0.0
      %2584 = vmatpush.msra.mxu0 0.0
      %2585 = vmatpush.msra.mxu0 0.0
      %2586 = vmatpush.msra.mxu0 0.0
      %2587 = vmatpush.msra.mxu0 0.0
      %2588 = vmatpush.msra.mxu0 0.0
      %2589 = vmatpush.msra.mxu0 %v1870
      %2590 = vmatpush.msra.mxu0 %v1854
      %2591 = vmatmul.f32.gmra.mxu0 %v2535
      %v2592 = vpop.f32.mrf.mxu0
      %v2593 = vadd.f32 %v2117, %v2592
      %2594 = vmatmul.f32.gmra.mxu0 %v2538
      %v2595 = vpop.f32.mrf.mxu0
      %v2596 = vadd.f32 %v2120, %v2595
      %2597 = vmatmul.f32.gmra.mxu0 %v2541
      %v2598 = vpop.f32.mrf.mxu0
      %v2599 = vadd.f32 %v2123, %v2598
      %2600 = vmatmul.f32.gmra.mxu0 %v2544
      %v2601 = vpop.f32.mrf.mxu0
      %v2602 = vadd.f32 %v2126, %v2601
      %2603 = vdwg.mxu0
      %2604 = vmatpush.msra.mxu0 0.0
      %2605 = vmatpush.msra.mxu0 0.0
      %2606 = vmatpush.msra.mxu0 0.0
      %2607 = vmatpush.msra.mxu0 0.0
      %2608 = vmatpush.msra.mxu0 0.0
      %2609 = vmatpush.msra.mxu0 0.0
      %2610 = vmatpush.msra.mxu0 0.0
      %2611 = vmatpush.msra.mxu0 0.0
      %2612 = vmatpush.msra.mxu0 0.0
      %2613 = vmatpush.msra.mxu0 0.0
      %2614 = vmatpush.msra.mxu0 0.0
      %2615 = vmatpush.msra.mxu0 0.0
      %2616 = vmatpush.msra.mxu0 0.0
      %2617 = vmatpush.msra.mxu0 0.0
      %2618 = vmatpush.msra.mxu0 %v1871
      %2619 = vmatpush.msra.mxu0 %v1855
      %2620 = vmatmul.f32.gmra.mxu0 %v2535
      %v2621 = vpop.f32.mrf.mxu0
      %v2622 = vadd.f32 %v2146, %v2621
      %2623 = vmatmul.f32.gmra.mxu0 %v2538
      %v2624 = vpop.f32.mrf.mxu0
      %v2625 = vadd.f32 %v2149, %v2624
      %2626 = vmatmul.f32.gmra.mxu0 %v2541
      %v2627 = vpop.f32.mrf.mxu0
      %v2628 = vadd.f32 %v2152, %v2627
      %2629 = vmatmul.f32.gmra.mxu0 %v2544
      %v2630 = vpop.f32.mrf.mxu0
      %v2631 = vadd.f32 %v2155, %v2630
      %2632 = vdwg.mxu0
      %2633 = vmatpush.msra.mxu0 0.0
      %2634 = vmatpush.msra.mxu0 0.0
      %2635 = vmatpush.msra.mxu0 0.0
      %2636 = vmatpush.msra.mxu0 0.0
      %2637 = vmatpush.msra.mxu0 0.0
      %2638 = vmatpush.msra.mxu0 0.0
      %2639 = vmatpush.msra.mxu0 0.0
      %2640 = vmatpush.msra.mxu0 0.0
      %2641 = vmatpush.msra.mxu0 0.0
      %2642 = vmatpush.msra.mxu0 0.0
      %2643 = vmatpush.msra.mxu0 0.0
      %2644 = vmatpush.msra.mxu0 0.0
      %2645 = vmatpush.msra.mxu0 0.0
      %2646 = vmatpush.msra.mxu0 0.0
      %2647 = vmatpush.msra.mxu0 %v1872
      %2648 = vmatpush.msra.mxu0 %v1856
      %2649 = vmatmul.f32.gmra.mxu0 %v2535
      %v2650 = vpop.f32.mrf.mxu0
      %v2651 = vadd.f32 %v2175, %v2650
      %2652 = vmatmul.f32.gmra.mxu0 %v2538
      %v2653 = vpop.f32.mrf.mxu0
      %v2654 = vadd.f32 %v2178, %v2653
      %2655 = vmatmul.f32.gmra.mxu0 %v2541
      %v2656 = vpop.f32.mrf.mxu0
      %v2657 = vadd.f32 %v2181, %v2656
      %2658 = vmatmul.f32.gmra.mxu0 %v2544
      %v2659 = vpop.f32.mrf.mxu0
      %v2660 = vadd.f32 %v2184, %v2659
      %2661 = vdwg.mxu0
      %2662 = vmatpush.msra.mxu0 0.0
      %2663 = vmatpush.msra.mxu0 0.0
      %2664 = vmatpush.msra.mxu0 0.0
      %2665 = vmatpush.msra.mxu0 0.0
      %2666 = vmatpush.msra.mxu0 0.0
      %2667 = vmatpush.msra.mxu0 0.0
      %2668 = vmatpush.msra.mxu0 0.0
      %2669 = vmatpush.msra.mxu0 0.0
      %2670 = vmatpush.msra.mxu0 0.0
      %2671 = vmatpush.msra.mxu0 0.0
      %2672 = vmatpush.msra.mxu0 0.0
      %2673 = vmatpush.msra.mxu0 0.0
      %2674 = vmatpush.msra.mxu0 0.0
      %2675 = vmatpush.msra.mxu0 0.0
      %2676 = vmatpush.msra.mxu0 %v1873
      %2677 = vmatpush.msra.mxu0 %v1857
      %2678 = vmatmul.f32.gmra.mxu0 %v2535
      %v2679 = vpop.f32.mrf.mxu0
      %v2680 = vadd.f32 %v2204, %v2679
      %2681 = vmatmul.f32.gmra.mxu0 %v2538
      %v2682 = vpop.f32.mrf.mxu0
      %v2683 = vadd.f32 %v2207, %v2682
      %2684 = vmatmul.f32.gmra.mxu0 %v2541
      %v2685 = vpop.f32.mrf.mxu0
      %v2686 = vadd.f32 %v2210, %v2685
      %2687 = vmatmul.f32.gmra.mxu0 %v2544
      %v2688 = vpop.f32.mrf.mxu0
      %v2689 = vadd.f32 %v2213, %v2688
      %2690 = vdwg.mxu0
      %2691 = vmatpush.msra.mxu0 0.0
      %2692 = vmatpush.msra.mxu0 0.0
      %2693 = vmatpush.msra.mxu0 0.0
      %2694 = vmatpush.msra.mxu0 0.0
      %2695 = vmatpush.msra.mxu0 0.0
      %2696 = vmatpush.msra.mxu0 0.0
      %2697 = vmatpush.msra.mxu0 0.0
      %2698 = vmatpush.msra.mxu0 0.0
      %2699 = vmatpush.msra.mxu0 0.0
      %2700 = vmatpush.msra.mxu0 0.0
      %2701 = vmatpush.msra.mxu0 0.0
      %2702 = vmatpush.msra.mxu0 0.0
      %2703 = vmatpush.msra.mxu0 0.0
      %2704 = vmatpush.msra.mxu0 0.0
      %2705 = vmatpush.msra.mxu0 %v1874
      %2706 = vmatpush.msra.mxu0 %v1858
      %2707 = vmatmul.f32.gmra.mxu0 %v2535
      %v2708 = vpop.f32.mrf.mxu0
      %v2709 = vadd.f32 %v2233, %v2708
      %2710 = vmatmul.f32.gmra.mxu0 %v2538
      %v2711 = vpop.f32.mrf.mxu0
      %v2712 = vadd.f32 %v2236, %v2711
      %2713 = vmatmul.f32.gmra.mxu0 %v2541
      %v2714 = vpop.f32.mrf.mxu0
      %v2715 = vadd.f32 %v2239, %v2714
      %2716 = vmatmul.f32.gmra.mxu0 %v2544
      %v2717 = vpop.f32.mrf.mxu0
      %v2718 = vadd.f32 %v2242, %v2717
      %2719 = vdwg.mxu0
      %2720 = vmatpush.msra.mxu0 0.0
      %2721 = vmatpush.msra.mxu0 0.0
      %2722 = vmatpush.msra.mxu0 0.0
      %2723 = vmatpush.msra.mxu0 0.0
      %2724 = vmatpush.msra.mxu0 0.0
      %2725 = vmatpush.msra.mxu0 0.0
      %2726 = vmatpush.msra.mxu0 0.0
      %2727 = vmatpush.msra.mxu0 0.0
      %2728 = vmatpush.msra.mxu0 0.0
      %2729 = vmatpush.msra.mxu0 0.0
      %2730 = vmatpush.msra.mxu0 0.0
      %2731 = vmatpush.msra.mxu0 0.0
      %2732 = vmatpush.msra.mxu0 0.0
      %2733 = vmatpush.msra.mxu0 0.0
      %2734 = vmatpush.msra.mxu0 %v1875
      %2735 = vmatpush.msra.mxu0 %v1859
      %2736 = vmatmul.f32.gmra.mxu0 %v2535
      %v2737 = vpop.f32.mrf.mxu0
      %v2738 = vadd.f32 %v2262, %v2737
      %2739 = vmatmul.f32.gmra.mxu0 %v2538
      %v2740 = vpop.f32.mrf.mxu0
      %v2741 = vadd.f32 %v2265, %v2740
      %2742 = vmatmul.f32.gmra.mxu0 %v2541
      %v2743 = vpop.f32.mrf.mxu0
      %v2744 = vadd.f32 %v2268, %v2743
      %2745 = vmatmul.f32.gmra.mxu0 %v2544
      %v2746 = vpop.f32.mrf.mxu0
      %v2747 = vadd.f32 %v2271, %v2746
      %2748 = vdwg.mxu0
      %2749 = vmatpush.msra.mxu0 0.0
      %2750 = vmatpush.msra.mxu0 0.0
      %2751 = vmatpush.msra.mxu0 0.0
      %2752 = vmatpush.msra.mxu0 0.0
      %2753 = vmatpush.msra.mxu0 0.0
      %2754 = vmatpush.msra.mxu0 0.0
      %2755 = vmatpush.msra.mxu0 0.0
      %2756 = vmatpush.msra.mxu0 0.0
      %2757 = vmatpush.msra.mxu0 0.0
      %2758 = vmatpush.msra.mxu0 0.0
      %2759 = vmatpush.msra.mxu0 0.0
      %2760 = vmatpush.msra.mxu0 0.0
      %2761 = vmatpush.msra.mxu0 0.0
      %2762 = vmatpush.msra.mxu0 0.0
      %2763 = vmatpush.msra.mxu0 %v1876
      %2764 = vmatpush.msra.mxu0 %v1860
      %2765 = vmatmul.f32.gmra.mxu0 %v2535
      %v2766 = vpop.f32.mrf.mxu0
      %v2767 = vadd.f32 %v2291, %v2766
      %2768 = vmatmul.f32.gmra.mxu0 %v2538
      %v2769 = vpop.f32.mrf.mxu0
      %v2770 = vadd.f32 %v2294, %v2769
      %2771 = vmatmul.f32.gmra.mxu0 %v2541
      %v2772 = vpop.f32.mrf.mxu0
      %v2773 = vadd.f32 %v2297, %v2772
      %2774 = vmatmul.f32.gmra.mxu0 %v2544
      %v2775 = vpop.f32.mrf.mxu0
      %v2776 = vadd.f32 %v2300, %v2775
      %2777 = vdwg.mxu0
      %2778 = vmatpush.msra.mxu0 0.0
      %2779 = vmatpush.msra.mxu0 0.0
      %2780 = vmatpush.msra.mxu0 0.0
      %2781 = vmatpush.msra.mxu0 0.0
      %2782 = vmatpush.msra.mxu0 0.0
      %2783 = vmatpush.msra.mxu0 0.0
      %2784 = vmatpush.msra.mxu0 0.0
      %2785 = vmatpush.msra.mxu0 0.0
      %2786 = vmatpush.msra.mxu0 0.0
      %2787 = vmatpush.msra.mxu0 0.0
      %2788 = vmatpush.msra.mxu0 0.0
      %2789 = vmatpush.msra.mxu0 0.0
      %2790 = vmatpush.msra.mxu0 0.0
      %2791 = vmatpush.msra.mxu0 0.0
      %2792 = vmatpush.msra.mxu0 %v1877
      %2793 = vmatpush.msra.mxu0 %v1861
      %2794 = vmatmul.f32.gmra.mxu0 %v2535
      %v2795 = vpop.f32.mrf.mxu0
      %v2796 = vadd.f32 %v2320, %v2795
      %2797 = vmatmul.f32.gmra.mxu0 %v2538
      %v2798 = vpop.f32.mrf.mxu0
      %v2799 = vadd.f32 %v2323, %v2798
      %2800 = vmatmul.f32.gmra.mxu0 %v2541
      %v2801 = vpop.f32.mrf.mxu0
      %v2802 = vadd.f32 %v2326, %v2801
      %2803 = vmatmul.f32.gmra.mxu0 %v2544
      %v2804 = vpop.f32.mrf.mxu0
      %v2805 = vadd.f32 %v2329, %v2804
      %2806 = vdwg.mxu0
      %2807 = vmatpush.msra.mxu0 0.0
      %2808 = vmatpush.msra.mxu0 0.0
      %2809 = vmatpush.msra.mxu0 0.0
      %2810 = vmatpush.msra.mxu0 0.0
      %2811 = vmatpush.msra.mxu0 0.0
      %2812 = vmatpush.msra.mxu0 0.0
      %2813 = vmatpush.msra.mxu0 0.0
      %2814 = vmatpush.msra.mxu0 0.0
      %2815 = vmatpush.msra.mxu0 0.0
      %2816 = vmatpush.msra.mxu0 0.0
      %2817 = vmatpush.msra.mxu0 0.0
      %2818 = vmatpush.msra.mxu0 0.0
      %2819 = vmatpush.msra.mxu0 0.0
      %2820 = vmatpush.msra.mxu0 0.0
      %2821 = vmatpush.msra.mxu0 %v1878
      %2822 = vmatpush.msra.mxu0 %v1862
      %2823 = vmatmul.f32.gmra.mxu0 %v2535
      %v2824 = vpop.f32.mrf.mxu0
      %v2825 = vadd.f32 %v2349, %v2824
      %2826 = vmatmul.f32.gmra.mxu0 %v2538
      %v2827 = vpop.f32.mrf.mxu0
      %v2828 = vadd.f32 %v2352, %v2827
      %2829 = vmatmul.f32.gmra.mxu0 %v2541
      %v2830 = vpop.f32.mrf.mxu0
      %v2831 = vadd.f32 %v2355, %v2830
      %2832 = vmatmul.f32.gmra.mxu0 %v2544
      %v2833 = vpop.f32.mrf.mxu0
      %v2834 = vadd.f32 %v2358, %v2833
      %2835 = vdwg.mxu0
      %2836 = vmatpush.msra.mxu0 0.0
      %2837 = vmatpush.msra.mxu0 0.0
      %2838 = vmatpush.msra.mxu0 0.0
      %2839 = vmatpush.msra.mxu0 0.0
      %2840 = vmatpush.msra.mxu0 0.0
      %2841 = vmatpush.msra.mxu0 0.0
      %2842 = vmatpush.msra.mxu0 0.0
      %2843 = vmatpush.msra.mxu0 0.0
      %2844 = vmatpush.msra.mxu0 0.0
      %2845 = vmatpush.msra.mxu0 0.0
      %2846 = vmatpush.msra.mxu0 0.0
      %2847 = vmatpush.msra.mxu0 0.0
      %2848 = vmatpush.msra.mxu0 0.0
      %2849 = vmatpush.msra.mxu0 0.0
      %2850 = vmatpush.msra.mxu0 %v1879
      %2851 = vmatpush.msra.mxu0 %v1863
      %2852 = vmatmul.f32.gmra.mxu0 %v2535
      %v2853 = vpop.f32.mrf.mxu0
      %v2854 = vadd.f32 %v2378, %v2853
      %2855 = vmatmul.f32.gmra.mxu0 %v2538
      %v2856 = vpop.f32.mrf.mxu0
      %v2857 = vadd.f32 %v2381, %v2856
      %2858 = vmatmul.f32.gmra.mxu0 %v2541
      %v2859 = vpop.f32.mrf.mxu0
      %v2860 = vadd.f32 %v2384, %v2859
      %2861 = vmatmul.f32.gmra.mxu0 %v2544
      %v2862 = vpop.f32.mrf.mxu0
      %v2863 = vadd.f32 %v2387, %v2862
      %2864 = vdwg.mxu0
      %2865 = vmatpush.msra.mxu0 0.0
      %2866 = vmatpush.msra.mxu0 0.0
      %2867 = vmatpush.msra.mxu0 0.0
      %2868 = vmatpush.msra.mxu0 0.0
      %2869 = vmatpush.msra.mxu0 0.0
      %2870 = vmatpush.msra.mxu0 0.0
      %2871 = vmatpush.msra.mxu0 0.0
      %2872 = vmatpush.msra.mxu0 0.0
      %2873 = vmatpush.msra.mxu0 0.0
      %2874 = vmatpush.msra.mxu0 0.0
      %2875 = vmatpush.msra.mxu0 0.0
      %2876 = vmatpush.msra.mxu0 0.0
      %2877 = vmatpush.msra.mxu0 0.0
      %2878 = vmatpush.msra.mxu0 0.0
      %2879 = vmatpush.msra.mxu0 %v1880
      %2880 = vmatpush.msra.mxu0 %v1864
      %2881 = vmatmul.f32.gmra.mxu0 %v2535
      %v2882 = vpop.f32.mrf.mxu0
      %v2883 = vadd.f32 %v2407, %v2882
      %2884 = vmatmul.f32.gmra.mxu0 %v2538
      %v2885 = vpop.f32.mrf.mxu0
      %v2886 = vadd.f32 %v2410, %v2885
      %2887 = vmatmul.f32.gmra.mxu0 %v2541
      %v2888 = vpop.f32.mrf.mxu0
      %v2889 = vadd.f32 %v2413, %v2888
      %2890 = vmatmul.f32.gmra.mxu0 %v2544
      %v2891 = vpop.f32.mrf.mxu0
      %v2892 = vadd.f32 %v2416, %v2891
      %2893 = vdwg.mxu0
      %2894 = vmatpush.msra.mxu0 0.0
      %2895 = vmatpush.msra.mxu0 0.0
      %2896 = vmatpush.msra.mxu0 0.0
      %2897 = vmatpush.msra.mxu0 0.0
      %2898 = vmatpush.msra.mxu0 0.0
      %2899 = vmatpush.msra.mxu0 0.0
      %2900 = vmatpush.msra.mxu0 0.0
      %2901 = vmatpush.msra.mxu0 0.0
      %2902 = vmatpush.msra.mxu0 0.0
      %2903 = vmatpush.msra.mxu0 0.0
      %2904 = vmatpush.msra.mxu0 0.0
      %2905 = vmatpush.msra.mxu0 0.0
      %2906 = vmatpush.msra.mxu0 0.0
      %2907 = vmatpush.msra.mxu0 0.0
      %2908 = vmatpush.msra.mxu0 %v1881
      %2909 = vmatpush.msra.mxu0 %v1865
      %2910 = vmatmul.f32.gmra.mxu0 %v2535
      %v2911 = vpop.f32.mrf.mxu0
      %v2912 = vadd.f32 %v2436, %v2911
      %2913 = vmatmul.f32.gmra.mxu0 %v2538
      %v2914 = vpop.f32.mrf.mxu0
      %v2915 = vadd.f32 %v2439, %v2914
      %2916 = vmatmul.f32.gmra.mxu0 %v2541
      %v2917 = vpop.f32.mrf.mxu0
      %v2918 = vadd.f32 %v2442, %v2917
      %2919 = vmatmul.f32.gmra.mxu0 %v2544
      %v2920 = vpop.f32.mrf.mxu0
      %v2921 = vadd.f32 %v2445, %v2920
      %2922 = vdwg.mxu0
      %2923 = vmatpush.msra.mxu0 0.0
      %2924 = vmatpush.msra.mxu0 0.0
      %2925 = vmatpush.msra.mxu0 0.0
      %2926 = vmatpush.msra.mxu0 0.0
      %2927 = vmatpush.msra.mxu0 0.0
      %2928 = vmatpush.msra.mxu0 0.0
      %2929 = vmatpush.msra.mxu0 0.0
      %2930 = vmatpush.msra.mxu0 0.0
      %2931 = vmatpush.msra.mxu0 0.0
      %2932 = vmatpush.msra.mxu0 0.0
      %2933 = vmatpush.msra.mxu0 0.0
      %2934 = vmatpush.msra.mxu0 0.0
      %2935 = vmatpush.msra.mxu0 0.0
      %2936 = vmatpush.msra.mxu0 0.0
      %2937 = vmatpush.msra.mxu0 %v1882
      %2938 = vmatpush.msra.mxu0 %v1866
      %2939 = vmatmul.f32.gmra.mxu0 %v2535
      %v2940 = vpop.f32.mrf.mxu0
      %v2941 = vadd.f32 %v2465, %v2940
      %2942 = vmatmul.f32.gmra.mxu0 %v2538
      %v2943 = vpop.f32.mrf.mxu0
      %v2944 = vadd.f32 %v2468, %v2943
      %2945 = vmatmul.f32.gmra.mxu0 %v2541
      %v2946 = vpop.f32.mrf.mxu0
      %v2947 = vadd.f32 %v2471, %v2946
      %2948 = vmatmul.f32.gmra.mxu0 %v2544
      %v2949 = vpop.f32.mrf.mxu0
      %v2950 = vadd.f32 %v2474, %v2949
      %2951 = vdwg.mxu0
      %2952 = vmatpush.msra.mxu0 0.0
      %2953 = vmatpush.msra.mxu0 0.0
      %2954 = vmatpush.msra.mxu0 0.0
      %2955 = vmatpush.msra.mxu0 0.0
      %2956 = vmatpush.msra.mxu0 0.0
      %2957 = vmatpush.msra.mxu0 0.0
      %2958 = vmatpush.msra.mxu0 0.0
      %2959 = vmatpush.msra.mxu0 0.0
      %2960 = vmatpush.msra.mxu0 0.0
      %2961 = vmatpush.msra.mxu0 0.0
      %2962 = vmatpush.msra.mxu0 0.0
      %2963 = vmatpush.msra.mxu0 0.0
      %2964 = vmatpush.msra.mxu0 0.0
      %2965 = vmatpush.msra.mxu0 0.0
      %2966 = vmatpush.msra.mxu0 %v1883
      %2967 = vmatpush.msra.mxu0 %v1867
      %2968 = vmatmul.f32.gmra.mxu0 %v2535
      %v2969 = vpop.f32.mrf.mxu0
      %v2970 = vadd.f32 %v2494, %v2969
      %2971 = vmatmul.f32.gmra.mxu0 %v2538
      %v2972 = vpop.f32.mrf.mxu0
      %v2973 = vadd.f32 %v2497, %v2972
      %2974 = vmatmul.f32.gmra.mxu0 %v2541
      %v2975 = vpop.f32.mrf.mxu0
      %v2976 = vadd.f32 %v2500, %v2975
      %2977 = vmatmul.f32.gmra.mxu0 %v2544
      %v2978 = vpop.f32.mrf.mxu0
      %v2979 = vadd.f32 %v2503, %v2978
      %2980 = vdwg.mxu0
      %2981 = vmatpush.msra.mxu0 0.0
      %2982 = vmatpush.msra.mxu0 0.0
      %2983 = vmatpush.msra.mxu0 0.0
      %2984 = vmatpush.msra.mxu0 0.0
      %2985 = vmatpush.msra.mxu0 0.0
      %2986 = vmatpush.msra.mxu0 0.0
      %2987 = vmatpush.msra.mxu0 0.0
      %2988 = vmatpush.msra.mxu0 0.0
      %2989 = vmatpush.msra.mxu0 0.0
      %2990 = vmatpush.msra.mxu0 0.0
      %2991 = vmatpush.msra.mxu0 0.0
      %2992 = vmatpush.msra.mxu0 0.0
      %2993 = vmatpush.msra.mxu0 0.0
      %2994 = vmatpush.msra.mxu0 0.0
      %2995 = vmatpush.msra.mxu0 %v1884
      %2996 = vmatpush.msra.mxu0 %v1868
      %2997 = vmatmul.f32.gmra.mxu0 %v2535
      %v2998 = vpop.f32.mrf.mxu0
      %v2999 = vadd.f32 %v2523, %v2998
      %3000 = vmatmul.f32.gmra.mxu0 %v2538
      %v3001 = vpop.f32.mrf.mxu0
      %v3002 = vadd.f32 %v2526, %v3001
      %3003 = vmatmul.f32.gmra.mxu0 %v2541
      %v3004 = vpop.f32.mrf.mxu0
      %v3005 = vadd.f32 %v2529, %v3004
      %3006 = vmatmul.f32.gmra.mxu0 %v2544
      %v3007 = vpop.f32.mrf.mxu0
      %v3008 = vadd.f32 %v2532, %v3007
      %3009 = vdwg.mxu0
      %v3011 = vsel %vm2057, %v2053, 0
      %v3014 = vsel %vm2057, %v2054, 0
      %v3017 = vsel %vm2057, %v2055, 0
      %v3020 = vsel %vm2057, %v2056, 0
      %3022 = vmatpush.msra.mxu0 0.0
      %3023 = vmatpush.msra.mxu0 0.0
      %3024 = vmatpush.msra.mxu0 0.0
      %3025 = vmatpush.msra.mxu0 0.0
      %3026 = vmatpush.msra.mxu0 0.0
      %3027 = vmatpush.msra.mxu0 0.0
      %3028 = vmatpush.msra.mxu0 0.0
      %3029 = vmatpush.msra.mxu0 0.0
      %3030 = vmatpush.msra.mxu0 0.0
      %3031 = vmatpush.msra.mxu0 0.0
      %3032 = vmatpush.msra.mxu0 0.0
      %3033 = vmatpush.msra.mxu0 0.0
      %3034 = vmatpush.msra.mxu0 0.0
      %3035 = vmatpush.msra.mxu0 0.0
      %3036 = vmatpush.msra.mxu0 %v2029
      %3037 = vmatpush.msra.mxu0 %v2013
      %3038 = vmatmul.f32.gmra.mxu0 %v3011
      %v3039 = vpop.f32.mrf.mxu0
      %v3040 = vadd.f32 0.0, %v3039
      %3041 = vmatmul.f32.gmra.mxu0 %v3014
      %v3042 = vpop.f32.mrf.mxu0
      %v3043 = vadd.f32 0.0, %v3042
      %3044 = vmatmul.f32.gmra.mxu0 %v3017
      %v3045 = vpop.f32.mrf.mxu0
      %v3046 = vadd.f32 0.0, %v3045
      %3047 = vmatmul.f32.gmra.mxu0 %v3020
      %v3048 = vpop.f32.mrf.mxu0
      %v3049 = vadd.f32 0.0, %v3048
      %3050 = vdwg.mxu0
      %3051 = vmatpush.msra.mxu0 0.0
      %3052 = vmatpush.msra.mxu0 0.0
      %3053 = vmatpush.msra.mxu0 0.0
      %3054 = vmatpush.msra.mxu0 0.0
      %3055 = vmatpush.msra.mxu0 0.0
      %3056 = vmatpush.msra.mxu0 0.0
      %3057 = vmatpush.msra.mxu0 0.0
      %3058 = vmatpush.msra.mxu0 0.0
      %3059 = vmatpush.msra.mxu0 0.0
      %3060 = vmatpush.msra.mxu0 0.0
      %3061 = vmatpush.msra.mxu0 0.0
      %3062 = vmatpush.msra.mxu0 0.0
      %3063 = vmatpush.msra.mxu0 0.0
      %3064 = vmatpush.msra.mxu0 0.0
      %3065 = vmatpush.msra.mxu0 %v2030
      %3066 = vmatpush.msra.mxu0 %v2014
      %3067 = vmatmul.f32.gmra.mxu0 %v3011
      %v3068 = vpop.f32.mrf.mxu0
      %v3069 = vadd.f32 0.0, %v3068
      %3070 = vmatmul.f32.gmra.mxu0 %v3014
      %v3071 = vpop.f32.mrf.mxu0
      %v3072 = vadd.f32 0.0, %v3071
      %3073 = vmatmul.f32.gmra.mxu0 %v3017
      %v3074 = vpop.f32.mrf.mxu0
      %v3075 = vadd.f32 0.0, %v3074
      %3076 = vmatmul.f32.gmra.mxu0 %v3020
      %v3077 = vpop.f32.mrf.mxu0
      %v3078 = vadd.f32 0.0, %v3077
      %3079 = vdwg.mxu0
      %3080 = vmatpush.msra.mxu0 0.0
      %3081 = vmatpush.msra.mxu0 0.0
      %3082 = vmatpush.msra.mxu0 0.0
      %3083 = vmatpush.msra.mxu0 0.0
      %3084 = vmatpush.msra.mxu0 0.0
      %3085 = vmatpush.msra.mxu0 0.0
      %3086 = vmatpush.msra.mxu0 0.0
      %3087 = vmatpush.msra.mxu0 0.0
      %3088 = vmatpush.msra.mxu0 0.0
      %3089 = vmatpush.msra.mxu0 0.0
      %3090 = vmatpush.msra.mxu0 0.0
      %3091 = vmatpush.msra.mxu0 0.0
      %3092 = vmatpush.msra.mxu0 0.0
      %3093 = vmatpush.msra.mxu0 0.0
      %3094 = vmatpush.msra.mxu0 %v2031
      %3095 = vmatpush.msra.mxu0 %v2015
      %3096 = vmatmul.f32.gmra.mxu0 %v3011
      %v3097 = vpop.f32.mrf.mxu0
      %v3098 = vadd.f32 0.0, %v3097
      %3099 = vmatmul.f32.gmra.mxu0 %v3014
      %v3100 = vpop.f32.mrf.mxu0
      %v3101 = vadd.f32 0.0, %v3100
      %3102 = vmatmul.f32.gmra.mxu0 %v3017
      %v3103 = vpop.f32.mrf.mxu0
      %v3104 = vadd.f32 0.0, %v3103
      %3105 = vmatmul.f32.gmra.mxu0 %v3020
      %v3106 = vpop.f32.mrf.mxu0
      %v3107 = vadd.f32 0.0, %v3106
      %3108 = vdwg.mxu0
      %3109 = vmatpush.msra.mxu0 0.0
      %3110 = vmatpush.msra.mxu0 0.0
      %3111 = vmatpush.msra.mxu0 0.0
      %3112 = vmatpush.msra.mxu0 0.0
      %3113 = vmatpush.msra.mxu0 0.0
      %3114 = vmatpush.msra.mxu0 0.0
      %3115 = vmatpush.msra.mxu0 0.0
      %3116 = vmatpush.msra.mxu0 0.0
      %3117 = vmatpush.msra.mxu0 0.0
      %3118 = vmatpush.msra.mxu0 0.0
      %3119 = vmatpush.msra.mxu0 0.0
      %3120 = vmatpush.msra.mxu0 0.0
      %3121 = vmatpush.msra.mxu0 0.0
      %3122 = vmatpush.msra.mxu0 0.0
      %3123 = vmatpush.msra.mxu0 %v2032
      %3124 = vmatpush.msra.mxu0 %v2016
      %3125 = vmatmul.f32.gmra.mxu0 %v3011
      %v3126 = vpop.f32.mrf.mxu0
      %v3127 = vadd.f32 0.0, %v3126
      %3128 = vmatmul.f32.gmra.mxu0 %v3014
      %v3129 = vpop.f32.mrf.mxu0
      %v3130 = vadd.f32 0.0, %v3129
      %3131 = vmatmul.f32.gmra.mxu0 %v3017
      %v3132 = vpop.f32.mrf.mxu0
      %v3133 = vadd.f32 0.0, %v3132
      %3134 = vmatmul.f32.gmra.mxu0 %v3020
      %v3135 = vpop.f32.mrf.mxu0
      %v3136 = vadd.f32 0.0, %v3135
      %3137 = vdwg.mxu0
      %3138 = vmatpush.msra.mxu0 0.0
      %3139 = vmatpush.msra.mxu0 0.0
      %3140 = vmatpush.msra.mxu0 0.0
      %3141 = vmatpush.msra.mxu0 0.0
      %3142 = vmatpush.msra.mxu0 0.0
      %3143 = vmatpush.msra.mxu0 0.0
      %3144 = vmatpush.msra.mxu0 0.0
      %3145 = vmatpush.msra.mxu0 0.0
      %3146 = vmatpush.msra.mxu0 0.0
      %3147 = vmatpush.msra.mxu0 0.0
      %3148 = vmatpush.msra.mxu0 0.0
      %3149 = vmatpush.msra.mxu0 0.0
      %3150 = vmatpush.msra.mxu0 0.0
      %3151 = vmatpush.msra.mxu0 0.0
      %3152 = vmatpush.msra.mxu0 %v2033
      %3153 = vmatpush.msra.mxu0 %v2017
      %3154 = vmatmul.f32.gmra.mxu0 %v3011
      %v3155 = vpop.f32.mrf.mxu0
      %v3156 = vadd.f32 0.0, %v3155
      %3157 = vmatmul.f32.gmra.mxu0 %v3014
      %v3158 = vpop.f32.mrf.mxu0
      %v3159 = vadd.f32 0.0, %v3158
      %3160 = vmatmul.f32.gmra.mxu0 %v3017
      %v3161 = vpop.f32.mrf.mxu0
      %v3162 = vadd.f32 0.0, %v3161
      %3163 = vmatmul.f32.gmra.mxu0 %v3020
      %v3164 = vpop.f32.mrf.mxu0
      %v3165 = vadd.f32 0.0, %v3164
      %3166 = vdwg.mxu0
      %3167 = vmatpush.msra.mxu0 0.0
      %3168 = vmatpush.msra.mxu0 0.0
      %3169 = vmatpush.msra.mxu0 0.0
      %3170 = vmatpush.msra.mxu0 0.0
      %3171 = vmatpush.msra.mxu0 0.0
      %3172 = vmatpush.msra.mxu0 0.0
      %3173 = vmatpush.msra.mxu0 0.0
      %3174 = vmatpush.msra.mxu0 0.0
      %3175 = vmatpush.msra.mxu0 0.0
      %3176 = vmatpush.msra.mxu0 0.0
      %3177 = vmatpush.msra.mxu0 0.0
      %3178 = vmatpush.msra.mxu0 0.0
      %3179 = vmatpush.msra.mxu0 0.0
      %3180 = vmatpush.msra.mxu0 0.0
      %3181 = vmatpush.msra.mxu0 %v2034
      %3182 = vmatpush.msra.mxu0 %v2018
      %3183 = vmatmul.f32.gmra.mxu0 %v3011
      %v3184 = vpop.f32.mrf.mxu0
      %v3185 = vadd.f32 0.0, %v3184
      %3186 = vmatmul.f32.gmra.mxu0 %v3014
      %v3187 = vpop.f32.mrf.mxu0
      %v3188 = vadd.f32 0.0, %v3187
      %3189 = vmatmul.f32.gmra.mxu0 %v3017
      %v3190 = vpop.f32.mrf.mxu0
      %v3191 = vadd.f32 0.0, %v3190
      %3192 = vmatmul.f32.gmra.mxu0 %v3020
      %v3193 = vpop.f32.mrf.mxu0
      %v3194 = vadd.f32 0.0, %v3193
      %3195 = vdwg.mxu0
      %3196 = vmatpush.msra.mxu0 0.0
      %3197 = vmatpush.msra.mxu0 0.0
      %3198 = vmatpush.msra.mxu0 0.0
      %3199 = vmatpush.msra.mxu0 0.0
      %3200 = vmatpush.msra.mxu0 0.0
      %3201 = vmatpush.msra.mxu0 0.0
      %3202 = vmatpush.msra.mxu0 0.0
      %3203 = vmatpush.msra.mxu0 0.0
      %3204 = vmatpush.msra.mxu0 0.0
      %3205 = vmatpush.msra.mxu0 0.0
      %3206 = vmatpush.msra.mxu0 0.0
      %3207 = vmatpush.msra.mxu0 0.0
      %3208 = vmatpush.msra.mxu0 0.0
      %3209 = vmatpush.msra.mxu0 0.0
      %3210 = vmatpush.msra.mxu0 %v2035
      %3211 = vmatpush.msra.mxu0 %v2019
      %3212 = vmatmul.f32.gmra.mxu0 %v3011
      %v3213 = vpop.f32.mrf.mxu0
      %v3214 = vadd.f32 0.0, %v3213
      %3215 = vmatmul.f32.gmra.mxu0 %v3014
      %v3216 = vpop.f32.mrf.mxu0
      %v3217 = vadd.f32 0.0, %v3216
      %3218 = vmatmul.f32.gmra.mxu0 %v3017
      %v3219 = vpop.f32.mrf.mxu0
      %v3220 = vadd.f32 0.0, %v3219
      %3221 = vmatmul.f32.gmra.mxu0 %v3020
      %v3222 = vpop.f32.mrf.mxu0
      %v3223 = vadd.f32 0.0, %v3222
      %3224 = vdwg.mxu0
      %3225 = vmatpush.msra.mxu0 0.0
      %3226 = vmatpush.msra.mxu0 0.0
      %3227 = vmatpush.msra.mxu0 0.0
      %3228 = vmatpush.msra.mxu0 0.0
      %3229 = vmatpush.msra.mxu0 0.0
      %3230 = vmatpush.msra.mxu0 0.0
      %3231 = vmatpush.msra.mxu0 0.0
      %3232 = vmatpush.msra.mxu0 0.0
      %3233 = vmatpush.msra.mxu0 0.0
      %3234 = vmatpush.msra.mxu0 0.0
      %3235 = vmatpush.msra.mxu0 0.0
      %3236 = vmatpush.msra.mxu0 0.0
      %3237 = vmatpush.msra.mxu0 0.0
      %3238 = vmatpush.msra.mxu0 0.0
      %3239 = vmatpush.msra.mxu0 %v2036
      %3240 = vmatpush.msra.mxu0 %v2020
      %3241 = vmatmul.f32.gmra.mxu0 %v3011
      %v3242 = vpop.f32.mrf.mxu0
      %v3243 = vadd.f32 0.0, %v3242
      %3244 = vmatmul.f32.gmra.mxu0 %v3014
      %v3245 = vpop.f32.mrf.mxu0
      %v3246 = vadd.f32 0.0, %v3245
      %3247 = vmatmul.f32.gmra.mxu0 %v3017
      %v3248 = vpop.f32.mrf.mxu0
      %v3249 = vadd.f32 0.0, %v3248
      %3250 = vmatmul.f32.gmra.mxu0 %v3020
      %v3251 = vpop.f32.mrf.mxu0
      %v3252 = vadd.f32 0.0, %v3251
      %3253 = vdwg.mxu0
      %3254 = vmatpush.msra.mxu0 0.0
      %3255 = vmatpush.msra.mxu0 0.0
      %3256 = vmatpush.msra.mxu0 0.0
      %3257 = vmatpush.msra.mxu0 0.0
      %3258 = vmatpush.msra.mxu0 0.0
      %3259 = vmatpush.msra.mxu0 0.0
      %3260 = vmatpush.msra.mxu0 0.0
      %3261 = vmatpush.msra.mxu0 0.0
      %3262 = vmatpush.msra.mxu0 0.0
      %3263 = vmatpush.msra.mxu0 0.0
      %3264 = vmatpush.msra.mxu0 0.0
      %3265 = vmatpush.msra.mxu0 0.0
      %3266 = vmatpush.msra.mxu0 0.0
      %3267 = vmatpush.msra.mxu0 0.0
      %3268 = vmatpush.msra.mxu0 %v2037
      %3269 = vmatpush.msra.mxu0 %v2021
      %3270 = vmatmul.f32.gmra.mxu0 %v3011
      %v3271 = vpop.f32.mrf.mxu0
      %v3272 = vadd.f32 0.0, %v3271
      %3273 = vmatmul.f32.gmra.mxu0 %v3014
      %v3274 = vpop.f32.mrf.mxu0
      %v3275 = vadd.f32 0.0, %v3274
      %3276 = vmatmul.f32.gmra.mxu0 %v3017
      %v3277 = vpop.f32.mrf.mxu0
      %v3278 = vadd.f32 0.0, %v3277
      %3279 = vmatmul.f32.gmra.mxu0 %v3020
      %v3280 = vpop.f32.mrf.mxu0
      %v3281 = vadd.f32 0.0, %v3280
      %3282 = vdwg.mxu0
      %3283 = vmatpush.msra.mxu0 0.0
      %3284 = vmatpush.msra.mxu0 0.0
      %3285 = vmatpush.msra.mxu0 0.0
      %3286 = vmatpush.msra.mxu0 0.0
      %3287 = vmatpush.msra.mxu0 0.0
      %3288 = vmatpush.msra.mxu0 0.0
      %3289 = vmatpush.msra.mxu0 0.0
      %3290 = vmatpush.msra.mxu0 0.0
      %3291 = vmatpush.msra.mxu0 0.0
      %3292 = vmatpush.msra.mxu0 0.0
      %3293 = vmatpush.msra.mxu0 0.0
      %3294 = vmatpush.msra.mxu0 0.0
      %3295 = vmatpush.msra.mxu0 0.0
      %3296 = vmatpush.msra.mxu0 0.0
      %3297 = vmatpush.msra.mxu0 %v2038
      %3298 = vmatpush.msra.mxu0 %v2022
      %3299 = vmatmul.f32.gmra.mxu0 %v3011
      %v3300 = vpop.f32.mrf.mxu0
      %v3301 = vadd.f32 0.0, %v3300
      %3302 = vmatmul.f32.gmra.mxu0 %v3014
      %v3303 = vpop.f32.mrf.mxu0
      %v3304 = vadd.f32 0.0, %v3303
      %3305 = vmatmul.f32.gmra.mxu0 %v3017
      %v3306 = vpop.f32.mrf.mxu0
      %v3307 = vadd.f32 0.0, %v3306
      %3308 = vmatmul.f32.gmra.mxu0 %v3020
      %v3309 = vpop.f32.mrf.mxu0
      %v3310 = vadd.f32 0.0, %v3309
      %3311 = vdwg.mxu0
      %3312 = vmatpush.msra.mxu0 0.0
      %3313 = vmatpush.msra.mxu0 0.0
      %3314 = vmatpush.msra.mxu0 0.0
      %3315 = vmatpush.msra.mxu0 0.0
      %3316 = vmatpush.msra.mxu0 0.0
      %3317 = vmatpush.msra.mxu0 0.0
      %3318 = vmatpush.msra.mxu0 0.0
      %3319 = vmatpush.msra.mxu0 0.0
      %3320 = vmatpush.msra.mxu0 0.0
      %3321 = vmatpush.msra.mxu0 0.0
      %3322 = vmatpush.msra.mxu0 0.0
      %3323 = vmatpush.msra.mxu0 0.0
      %3324 = vmatpush.msra.mxu0 0.0
      %3325 = vmatpush.msra.mxu0 0.0
      %3326 = vmatpush.msra.mxu0 %v2039
      %3327 = vmatpush.msra.mxu0 %v2023
      %3328 = vmatmul.f32.gmra.mxu0 %v3011
      %v3329 = vpop.f32.mrf.mxu0
      %v3330 = vadd.f32 0.0, %v3329
      %3331 = vmatmul.f32.gmra.mxu0 %v3014
      %v3332 = vpop.f32.mrf.mxu0
      %v3333 = vadd.f32 0.0, %v3332
      %3334 = vmatmul.f32.gmra.mxu0 %v3017
      %v3335 = vpop.f32.mrf.mxu0
      %v3336 = vadd.f32 0.0, %v3335
      %3337 = vmatmul.f32.gmra.mxu0 %v3020
      %v3338 = vpop.f32.mrf.mxu0
      %v3339 = vadd.f32 0.0, %v3338
      %3340 = vdwg.mxu0
      %3341 = vmatpush.msra.mxu0 0.0
      %3342 = vmatpush.msra.mxu0 0.0
      %3343 = vmatpush.msra.mxu0 0.0
      %3344 = vmatpush.msra.mxu0 0.0
      %3345 = vmatpush.msra.mxu0 0.0
      %3346 = vmatpush.msra.mxu0 0.0
      %3347 = vmatpush.msra.mxu0 0.0
      %3348 = vmatpush.msra.mxu0 0.0
      %3349 = vmatpush.msra.mxu0 0.0
      %3350 = vmatpush.msra.mxu0 0.0
      %3351 = vmatpush.msra.mxu0 0.0
      %3352 = vmatpush.msra.mxu0 0.0
      %3353 = vmatpush.msra.mxu0 0.0
      %3354 = vmatpush.msra.mxu0 0.0
      %3355 = vmatpush.msra.mxu0 %v2040
      %3356 = vmatpush.msra.mxu0 %v2024
      %3357 = vmatmul.f32.gmra.mxu0 %v3011
      %v3358 = vpop.f32.mrf.mxu0
      %v3359 = vadd.f32 0.0, %v3358
      %3360 = vmatmul.f32.gmra.mxu0 %v3014
      %v3361 = vpop.f32.mrf.mxu0
      %v3362 = vadd.f32 0.0, %v3361
      %3363 = vmatmul.f32.gmra.mxu0 %v3017
      %v3364 = vpop.f32.mrf.mxu0
      %v3365 = vadd.f32 0.0, %v3364
      %3366 = vmatmul.f32.gmra.mxu0 %v3020
      %v3367 = vpop.f32.mrf.mxu0
      %v3368 = vadd.f32 0.0, %v3367
      %3369 = vdwg.mxu0
      %3370 = vmatpush.msra.mxu0 0.0
      %3371 = vmatpush.msra.mxu0 0.0
      %3372 = vmatpush.msra.mxu0 0.0
      %3373 = vmatpush.msra.mxu0 0.0
      %3374 = vmatpush.msra.mxu0 0.0
      %3375 = vmatpush.msra.mxu0 0.0
      %3376 = vmatpush.msra.mxu0 0.0
      %3377 = vmatpush.msra.mxu0 0.0
      %3378 = vmatpush.msra.mxu0 0.0
      %3379 = vmatpush.msra.mxu0 0.0
      %3380 = vmatpush.msra.mxu0 0.0
      %3381 = vmatpush.msra.mxu0 0.0
      %3382 = vmatpush.msra.mxu0 0.0
      %3383 = vmatpush.msra.mxu0 0.0
      %3384 = vmatpush.msra.mxu0 %v2041
      %3385 = vmatpush.msra.mxu0 %v2025
      %3386 = vmatmul.f32.gmra.mxu0 %v3011
      %v3387 = vpop.f32.mrf.mxu0
      %v3388 = vadd.f32 0.0, %v3387
      %3389 = vmatmul.f32.gmra.mxu0 %v3014
      %v3390 = vpop.f32.mrf.mxu0
      %v3391 = vadd.f32 0.0, %v3390
      %3392 = vmatmul.f32.gmra.mxu0 %v3017
      %v3393 = vpop.f32.mrf.mxu0
      %v3394 = vadd.f32 0.0, %v3393
      %3395 = vmatmul.f32.gmra.mxu0 %v3020
      %v3396 = vpop.f32.mrf.mxu0
      %v3397 = vadd.f32 0.0, %v3396
      %3398 = vdwg.mxu0
      %3399 = vmatpush.msra.mxu0 0.0
      %3400 = vmatpush.msra.mxu0 0.0
      %3401 = vmatpush.msra.mxu0 0.0
      %3402 = vmatpush.msra.mxu0 0.0
      %3403 = vmatpush.msra.mxu0 0.0
      %3404 = vmatpush.msra.mxu0 0.0
      %3405 = vmatpush.msra.mxu0 0.0
      %3406 = vmatpush.msra.mxu0 0.0
      %3407 = vmatpush.msra.mxu0 0.0
      %3408 = vmatpush.msra.mxu0 0.0
      %3409 = vmatpush.msra.mxu0 0.0
      %3410 = vmatpush.msra.mxu0 0.0
      %3411 = vmatpush.msra.mxu0 0.0
      %3412 = vmatpush.msra.mxu0 0.0
      %3413 = vmatpush.msra.mxu0 %v2042
      %3414 = vmatpush.msra.mxu0 %v2026
      %3415 = vmatmul.f32.gmra.mxu0 %v3011
      %v3416 = vpop.f32.mrf.mxu0
      %v3417 = vadd.f32 0.0, %v3416
      %3418 = vmatmul.f32.gmra.mxu0 %v3014
      %v3419 = vpop.f32.mrf.mxu0
      %v3420 = vadd.f32 0.0, %v3419
      %3421 = vmatmul.f32.gmra.mxu0 %v3017
      %v3422 = vpop.f32.mrf.mxu0
      %v3423 = vadd.f32 0.0, %v3422
      %3424 = vmatmul.f32.gmra.mxu0 %v3020
      %v3425 = vpop.f32.mrf.mxu0
      %v3426 = vadd.f32 0.0, %v3425
      %3427 = vdwg.mxu0
      %3428 = vmatpush.msra.mxu0 0.0
      %3429 = vmatpush.msra.mxu0 0.0
      %3430 = vmatpush.msra.mxu0 0.0
      %3431 = vmatpush.msra.mxu0 0.0
      %3432 = vmatpush.msra.mxu0 0.0
      %3433 = vmatpush.msra.mxu0 0.0
      %3434 = vmatpush.msra.mxu0 0.0
      %3435 = vmatpush.msra.mxu0 0.0
      %3436 = vmatpush.msra.mxu0 0.0
      %3437 = vmatpush.msra.mxu0 0.0
      %3438 = vmatpush.msra.mxu0 0.0
      %3439 = vmatpush.msra.mxu0 0.0
      %3440 = vmatpush.msra.mxu0 0.0
      %3441 = vmatpush.msra.mxu0 0.0
      %3442 = vmatpush.msra.mxu0 %v2043
      %3443 = vmatpush.msra.mxu0 %v2027
      %3444 = vmatmul.f32.gmra.mxu0 %v3011
      %v3445 = vpop.f32.mrf.mxu0
      %v3446 = vadd.f32 0.0, %v3445
      %3447 = vmatmul.f32.gmra.mxu0 %v3014
      %v3448 = vpop.f32.mrf.mxu0
      %v3449 = vadd.f32 0.0, %v3448
      %3450 = vmatmul.f32.gmra.mxu0 %v3017
      %v3451 = vpop.f32.mrf.mxu0
      %v3452 = vadd.f32 0.0, %v3451
      %3453 = vmatmul.f32.gmra.mxu0 %v3020
      %v3454 = vpop.f32.mrf.mxu0
      %v3455 = vadd.f32 0.0, %v3454
      %3456 = vdwg.mxu0
      %3457 = vmatpush.msra.mxu0 0.0
      %3458 = vmatpush.msra.mxu0 0.0
      %3459 = vmatpush.msra.mxu0 0.0
      %3460 = vmatpush.msra.mxu0 0.0
      %3461 = vmatpush.msra.mxu0 0.0
      %3462 = vmatpush.msra.mxu0 0.0
      %3463 = vmatpush.msra.mxu0 0.0
      %3464 = vmatpush.msra.mxu0 0.0
      %3465 = vmatpush.msra.mxu0 0.0
      %3466 = vmatpush.msra.mxu0 0.0
      %3467 = vmatpush.msra.mxu0 0.0
      %3468 = vmatpush.msra.mxu0 0.0
      %3469 = vmatpush.msra.mxu0 0.0
      %3470 = vmatpush.msra.mxu0 0.0
      %3471 = vmatpush.msra.mxu0 %v2044
      %3472 = vmatpush.msra.mxu0 %v2028
      %3473 = vmatmul.f32.gmra.mxu0 %v3011
      %v3474 = vpop.f32.mrf.mxu0
      %v3475 = vadd.f32 0.0, %v3474
      %3476 = vmatmul.f32.gmra.mxu0 %v3014
      %v3477 = vpop.f32.mrf.mxu0
      %v3478 = vadd.f32 0.0, %v3477
      %3479 = vmatmul.f32.gmra.mxu0 %v3017
      %v3480 = vpop.f32.mrf.mxu0
      %v3481 = vadd.f32 0.0, %v3480
      %3482 = vmatmul.f32.gmra.mxu0 %v3020
      %v3483 = vpop.f32.mrf.mxu0
      %v3484 = vadd.f32 0.0, %v3483
      %3485 = vdwg.mxu0
      %v3486 = vadd.f32 %v2564, %v3040
      %v3487 = vadd.f32 %v2593, %v3069
      %v3488 = vadd.f32 %v2622, %v3098
      %v3489 = vadd.f32 %v2651, %v3127
      %v3490 = vadd.f32 %v2680, %v3156
      %v3491 = vadd.f32 %v2709, %v3185
      %v3492 = vadd.f32 %v2738, %v3214
      %v3493 = vadd.f32 %v2767, %v3243
      %v3494 = vadd.f32 %v2796, %v3272
      %v3495 = vadd.f32 %v2825, %v3301
      %v3496 = vadd.f32 %v2854, %v3330
      %v3497 = vadd.f32 %v2883, %v3359
      %v3498 = vadd.f32 %v2912, %v3388
      %v3499 = vadd.f32 %v2941, %v3417
      %v3500 = vadd.f32 %v2970, %v3446
      %v3501 = vadd.f32 %v2999, %v3475
      %v3502 = vadd.f32 %v2567, %v3043
      %v3503 = vadd.f32 %v2596, %v3072
      %v3504 = vadd.f32 %v2625, %v3101
      %v3505 = vadd.f32 %v2654, %v3130
      %v3506 = vadd.f32 %v2683, %v3159
      %v3507 = vadd.f32 %v2712, %v3188
      %v3508 = vadd.f32 %v2741, %v3217
      %v3509 = vadd.f32 %v2770, %v3246
      %v3510 = vadd.f32 %v2799, %v3275
      %v3511 = vadd.f32 %v2828, %v3304
      %v3512 = vadd.f32 %v2857, %v3333
      %v3513 = vadd.f32 %v2886, %v3362
      %v3514 = vadd.f32 %v2915, %v3391
      %v3515 = vadd.f32 %v2944, %v3420
      %v3516 = vadd.f32 %v2973, %v3449
      %v3517 = vadd.f32 %v3002, %v3478
      %v3518 = vadd.f32 %v2570, %v3046
      %v3519 = vadd.f32 %v2599, %v3075
      %v3520 = vadd.f32 %v2628, %v3104
      %v3521 = vadd.f32 %v2657, %v3133
      %v3522 = vadd.f32 %v2686, %v3162
      %v3523 = vadd.f32 %v2715, %v3191
      %v3524 = vadd.f32 %v2744, %v3220
      %v3525 = vadd.f32 %v2773, %v3249
      %v3526 = vadd.f32 %v2802, %v3278
      %v3527 = vadd.f32 %v2831, %v3307
      %v3528 = vadd.f32 %v2860, %v3336
      %v3529 = vadd.f32 %v2889, %v3365
      %v3530 = vadd.f32 %v2918, %v3394
      %v3531 = vadd.f32 %v2947, %v3423
      %v3532 = vadd.f32 %v2976, %v3452
      %v3533 = vadd.f32 %v3005, %v3481
      %v3534 = vadd.f32 %v2573, %v3049
      %v3535 = vadd.f32 %v2602, %v3078
      %v3536 = vadd.f32 %v2631, %v3107
      %v3537 = vadd.f32 %v2660, %v3136
      %v3538 = vadd.f32 %v2689, %v3165
      %v3539 = vadd.f32 %v2718, %v3194
      %v3540 = vadd.f32 %v2747, %v3223
      %v3541 = vadd.f32 %v2776, %v3252
      %v3542 = vadd.f32 %v2805, %v3281
      %v3543 = vadd.f32 %v2834, %v3310
      %v3544 = vadd.f32 %v2863, %v3339
      %v3545 = vadd.f32 %v2892, %v3368
      %v3546 = vadd.f32 %v2921, %v3397
      %v3547 = vadd.f32 %v2950, %v3426
      %v3548 = vadd.f32 %v2979, %v3455
      %v3549 = vadd.f32 %v3008, %v3484
      %v3550 = vld [vmem:[%s4] sm:$0xff]
      %v3551 = vld [vmem:[%s4 + $0x8] sm:$0xff]
      %v3552 = vld [vmem:[%s4 + $0x10] sm:$0xff]
      %v3553 = vld [vmem:[%s4 + $0x18] sm:$0xff]
      %3555 = vset.pattern.permute.xlu0 0
      %3556 = vperm.xlu0 %3555, %v3550
      %v3557 = vpop.permute.xlu0 %3556
      %3560 = vset.pattern.permute.xlu0 0
      %3561 = vperm.xlu0 %3560, %v3551
      %v3562 = vpop.permute.xlu0 %3561
      %3565 = vset.pattern.permute.xlu0 0
      %3566 = vperm.xlu0 %3565, %v3552
      %v3567 = vpop.permute.xlu0 %3566
      %3570 = vset.pattern.permute.xlu0 0
      %3571 = vperm.xlu0 %3570, %v3553
      %v3572 = vpop.permute.xlu0 %3571
      %v3574 = vadd.f32 %v3486, %v3557
      %v3575 = vadd.f32 %v3487, %v3557
      %v3576 = vadd.f32 %v3488, %v3557
      %v3577 = vadd.f32 %v3489, %v3557
      %v3578 = vadd.f32 %v3490, %v3557
      %v3579 = vadd.f32 %v3491, %v3557
      %v3580 = vadd.f32 %v3492, %v3557
      %v3581 = vadd.f32 %v3493, %v3557
      %v3582 = vadd.f32 %v3494, %v3557
      %v3583 = vadd.f32 %v3495, %v3557
      %v3584 = vadd.f32 %v3496, %v3557
      %v3585 = vadd.f32 %v3497, %v3557
      %v3586 = vadd.f32 %v3498, %v3557
      %v3587 = vadd.f32 %v3499, %v3557
      %v3588 = vadd.f32 %v3500, %v3557
      %v3589 = vadd.f32 %v3501, %v3557
      %v3590 = vadd.f32 %v3502, %v3562
      %v3591 = vadd.f32 %v3503, %v3562
      %v3592 = vadd.f32 %v3504, %v3562
      %v3593 = vadd.f32 %v3505, %v3562
      %v3594 = vadd.f32 %v3506, %v3562
      %v3595 = vadd.f32 %v3507, %v3562
      %v3596 = vadd.f32 %v3508, %v3562
      %v3597 = vadd.f32 %v3509, %v3562
      %v3598 = vadd.f32 %v3510, %v3562
      %v3599 = vadd.f32 %v3511, %v3562
      %v3600 = vadd.f32 %v3512, %v3562
      %v3601 = vadd.f32 %v3513, %v3562
      %v3602 = vadd.f32 %v3514, %v3562
      %v3603 = vadd.f32 %v3515, %v3562
      %v3604 = vadd.f32 %v3516, %v3562
      %v3605 = vadd.f32 %v3517, %v3562
      %v3606 = vadd.f32 %v3518, %v3567
      %v3607 = vadd.f32 %v3519, %v3567
      %v3608 = vadd.f32 %v3520, %v3567
      %v3609 = vadd.f32 %v3521, %v3567
      %v3610 = vadd.f32 %v3522, %v3567
      %v3611 = vadd.f32 %v3523, %v3567
      %v3612 = vadd.f32 %v3524, %v3567
      %v3613 = vadd.f32 %v3525, %v3567
      %v3614 = vadd.f32 %v3526, %v3567
      %v3615 = vadd.f32 %v3527, %v3567
      %v3616 = vadd.f32 %v3528, %v3567
      %v3617 = vadd.f32 %v3529, %v3567
      %v3618 = vadd.f32 %v3530, %v3567
      %v3619 = vadd.f32 %v3531, %v3567
      %v3620 = vadd.f32 %v3532, %v3567
      %v3621 = vadd.f32 %v3533, %v3567
      %v3622 = vadd.f32 %v3534, %v3572
      %v3623 = vadd.f32 %v3535, %v3572
      %v3624 = vadd.f32 %v3536, %v3572
      %v3625 = vadd.f32 %v3537, %v3572
      %v3626 = vadd.f32 %v3538, %v3572
      %v3627 = vadd.f32 %v3539, %v3572
      %v3628 = vadd.f32 %v3540, %v3572
      %v3629 = vadd.f32 %v3541, %v3572
      %v3630 = vadd.f32 %v3542, %v3572
      %v3631 = vadd.f32 %v3543, %v3572
      %v3632 = vadd.f32 %v3544, %v3572
      %v3633 = vadd.f32 %v3545, %v3572
      %v3634 = vadd.f32 %v3546, %v3572
      %v3635 = vadd.f32 %v3547, %v3572
      %v3636 = vadd.f32 %v3548, %v3572
      %v3637 = vadd.f32 %v3549, %v3572
      %v3638 = vmax.f32 %v3574, 0.0
      %v3639 = vmax.f32 %v3575, 0.0
      %v3640 = vmax.f32 %v3576, 0.0
      %v3641 = vmax.f32 %v3577, 0.0
      %v3642 = vmax.f32 %v3578, 0.0
      %v3643 = vmax.f32 %v3579, 0.0
      %v3644 = vmax.f32 %v3580, 0.0
      %v3645 = vmax.f32 %v3581, 0.0
      %v3646 = vmax.f32 %v3582, 0.0
      %v3647 = vmax.f32 %v3583, 0.0
      %v3648 = vmax.f32 %v3584, 0.0
      %v3649 = vmax.f32 %v3585, 0.0
      %v3650 = vmax.f32 %v3586, 0.0
      %v3651 = vmax.f32 %v3587, 0.0
      %v3652 = vmax.f32 %v3588, 0.0
      %v3653 = vmax.f32 %v3589, 0.0
      %v3654 = vmax.f32 %v3590, 0.0
      %v3655 = vmax.f32 %v3591, 0.0
      %v3656 = vmax.f32 %v3592, 0.0
      %v3657 = vmax.f32 %v3593, 0.0
      %v3658 = vmax.f32 %v3594, 0.0
      %v3659 = vmax.f32 %v3595, 0.0
      %v3660 = vmax.f32 %v3596, 0.0
      %v3661 = vmax.f32 %v3597, 0.0
      %v3662 = vmax.f32 %v3598, 0.0
      %v3663 = vmax.f32 %v3599, 0.0
      %v3664 = vmax.f32 %v3600, 0.0
      %v3665 = vmax.f32 %v3601, 0.0
      %v3666 = vmax.f32 %v3602, 0.0
      %v3667 = vmax.f32 %v3603, 0.0
      %v3668 = vmax.f32 %v3604, 0.0
      %v3669 = vmax.f32 %v3605, 0.0
      %v3670 = vmax.f32 %v3606, 0.0
      %v3671 = vmax.f32 %v3607, 0.0
      %v3672 = vmax.f32 %v3608, 0.0
      %v3673 = vmax.f32 %v3609, 0.0
      %v3674 = vmax.f32 %v3610, 0.0
      %v3675 = vmax.f32 %v3611, 0.0
      %v3676 = vmax.f32 %v3612, 0.0
      %v3677 = vmax.f32 %v3613, 0.0
      %v3678 = vmax.f32 %v3614, 0.0
      %v3679 = vmax.f32 %v3615, 0.0
      %v3680 = vmax.f32 %v3616, 0.0
      %v3681 = vmax.f32 %v3617, 0.0
      %v3682 = vmax.f32 %v3618, 0.0
      %v3683 = vmax.f32 %v3619, 0.0
      %v3684 = vmax.f32 %v3620, 0.0
      %v3685 = vmax.f32 %v3621, 0.0
      %v3686 = vmax.f32 %v3622, 0.0
      %v3687 = vmax.f32 %v3623, 0.0
      %v3688 = vmax.f32 %v3624, 0.0
      %v3689 = vmax.f32 %v3625, 0.0
      %v3690 = vmax.f32 %v3626, 0.0
      %v3691 = vmax.f32 %v3627, 0.0
      %v3692 = vmax.f32 %v3628, 0.0
      %v3693 = vmax.f32 %v3629, 0.0
      %v3694 = vmax.f32 %v3630, 0.0
      %v3695 = vmax.f32 %v3631, 0.0
      %v3696 = vmax.f32 %v3632, 0.0
      %v3697 = vmax.f32 %v3633, 0.0
      %v3698 = vmax.f32 %v3634, 0.0
      %v3699 = vmax.f32 %v3635, 0.0
      %v3700 = vmax.f32 %v3636, 0.0
      %v3701 = vmax.f32 %v3637, 0.0
      %v3702 = vpack.c.bf16 %v3654, %v3638
      %v3703 = vpack.c.bf16 %v3655, %v3639
      %v3704 = vpack.c.bf16 %v3656, %v3640
      %v3705 = vpack.c.bf16 %v3657, %v3641
      %v3706 = vpack.c.bf16 %v3658, %v3642
      %v3707 = vpack.c.bf16 %v3659, %v3643
      %v3708 = vpack.c.bf16 %v3660, %v3644
      %v3709 = vpack.c.bf16 %v3661, %v3645
      %v3710 = vpack.c.bf16 %v3662, %v3646
      %v3711 = vpack.c.bf16 %v3663, %v3647
      %v3712 = vpack.c.bf16 %v3664, %v3648
      %v3713 = vpack.c.bf16 %v3665, %v3649
      %v3714 = vpack.c.bf16 %v3666, %v3650
      %v3715 = vpack.c.bf16 %v3667, %v3651
      %v3716 = vpack.c.bf16 %v3668, %v3652
      %v3717 = vpack.c.bf16 %v3669, %v3653
      %v3718 = vpack.c.bf16 %v3686, %v3670
      %v3719 = vpack.c.bf16 %v3687, %v3671
      %v3720 = vpack.c.bf16 %v3688, %v3672
      %v3721 = vpack.c.bf16 %v3689, %v3673
      %v3722 = vpack.c.bf16 %v3690, %v3674
      %v3723 = vpack.c.bf16 %v3691, %v3675
      %v3724 = vpack.c.bf16 %v3692, %v3676
      %v3725 = vpack.c.bf16 %v3693, %v3677
      %v3726 = vpack.c.bf16 %v3694, %v3678
      %v3727 = vpack.c.bf16 %v3695, %v3679
      %v3728 = vpack.c.bf16 %v3696, %v3680
      %v3729 = vpack.c.bf16 %v3697, %v3681
      %v3730 = vpack.c.bf16 %v3698, %v3682
      %v3731 = vpack.c.bf16 %v3699, %v3683
      %v3732 = vpack.c.bf16 %v3700, %v3684
      %v3733 = vpack.c.bf16 %v3701, %v3685
      %v3734 = vld [vmem:[%s9] sm:$0xf]
      %v3735 = vld [vmem:[%s9 + $0x4] sm:$0xf]
      %v3736 = vld [vmem:[%s9 + $0x8] sm:$0xf]
      %v3737 = vld [vmem:[%s9 + $0xc] sm:$0xf]
      %v3738 = vld [vmem:[%s9 + $0x10] sm:$0xf]
      %v3739 = vld [vmem:[%s9 + $0x14] sm:$0xf]
      %v3740 = vld [vmem:[%s9 + $0x18] sm:$0xf]
      %v3741 = vld [vmem:[%s9 + $0x1c] sm:$0xf]
      %v3742 = vld [vmem:[%s9 + $0x20] sm:$0xf]
      %v3743 = vld [vmem:[%s9 + $0x24] sm:$0xf]
      %v3744 = vld [vmem:[%s9 + $0x28] sm:$0xf]
      %v3745 = vld [vmem:[%s9 + $0x2c] sm:$0xf]
      %v3746 = vld [vmem:[%s9 + $0x30] sm:$0xf]
      %v3747 = vld [vmem:[%s9 + $0x34] sm:$0xf]
      %v3748 = vld [vmem:[%s9 + $0x38] sm:$0xf]
      %v3749 = vld [vmem:[%s9 + $0x3c] sm:$0xf]
      %v3750 = vld [vmem:[%s9 + $0x40] sm:$0xf]
      %v3751 = vld [vmem:[%s9 + $0x44] sm:$0xf]
      %v3752 = vld [vmem:[%s9 + $0x48] sm:$0xf]
      %v3753 = vld [vmem:[%s9 + $0x4c] sm:$0xf]
      %v3754 = vld [vmem:[%s9 + $0x50] sm:$0xf]
      %v3755 = vld [vmem:[%s9 + $0x54] sm:$0xf]
      %v3756 = vld [vmem:[%s9 + $0x58] sm:$0xf]
      %v3757 = vld [vmem:[%s9 + $0x5c] sm:$0xf]
      %v3758 = vld [vmem:[%s9 + $0x60] sm:$0xf]
      %v3759 = vld [vmem:[%s9 + $0x64] sm:$0xf]
      %v3760 = vld [vmem:[%s9 + $0x68] sm:$0xf]
      %v3761 = vld [vmem:[%s9 + $0x6c] sm:$0xf]
      %v3762 = vld [vmem:[%s9 + $0x70] sm:$0xf]
      %v3763 = vld [vmem:[%s9 + $0x74] sm:$0xf]
      %v3764 = vld [vmem:[%s9 + $0x78] sm:$0xf]
      %v3765 = vld [vmem:[%s9 + $0x7c] sm:$0xf]
      %v3766 = vld [vmem:[%s9 + $0x80] sm:$0xf]
      %v3767 = vld [vmem:[%s9 + $0x84] sm:$0xf]
      %v3768 = vld [vmem:[%s9 + $0x88] sm:$0xf]
      %v3769 = vld [vmem:[%s9 + $0x8c] sm:$0xf]
      %v3770 = vld [vmem:[%s9 + $0x90] sm:$0xf]
      %v3771 = vld [vmem:[%s9 + $0x94] sm:$0xf]
      %v3772 = vld [vmem:[%s9 + $0x98] sm:$0xf]
      %v3773 = vld [vmem:[%s9 + $0x9c] sm:$0xf]
      %v3774 = vld [vmem:[%s9 + $0xa0] sm:$0xf]
      %v3775 = vld [vmem:[%s9 + $0xa4] sm:$0xf]
      %v3776 = vld [vmem:[%s9 + $0xa8] sm:$0xf]
      %v3777 = vld [vmem:[%s9 + $0xac] sm:$0xf]
      %v3778 = vld [vmem:[%s9 + $0xb0] sm:$0xf]
      %v3779 = vld [vmem:[%s9 + $0xb4] sm:$0xf]
      %v3780 = vld [vmem:[%s9 + $0xb8] sm:$0xf]
      %v3781 = vld [vmem:[%s9 + $0xbc] sm:$0xf]
      %v3782 = vld [vmem:[%s9 + $0xc0] sm:$0xf]
      %v3783 = vld [vmem:[%s9 + $0xc4] sm:$0xf]
      %v3784 = vld [vmem:[%s9 + $0xc8] sm:$0xf]
      %v3785 = vld [vmem:[%s9 + $0xcc] sm:$0xf]
      %v3786 = vld [vmem:[%s9 + $0xd0] sm:$0xf]
      %v3787 = vld [vmem:[%s9 + $0xd4] sm:$0xf]
      %v3788 = vld [vmem:[%s9 + $0xd8] sm:$0xf]
      %v3789 = vld [vmem:[%s9 + $0xdc] sm:$0xf]
      %v3790 = vld [vmem:[%s9 + $0xe0] sm:$0xf]
      %v3791 = vld [vmem:[%s9 + $0xe4] sm:$0xf]
      %v3792 = vld [vmem:[%s9 + $0xe8] sm:$0xf]
      %v3793 = vld [vmem:[%s9 + $0xec] sm:$0xf]
      %v3794 = vld [vmem:[%s9 + $0xf0] sm:$0xf]
      %v3795 = vld [vmem:[%s9 + $0xf4] sm:$0xf]
      %v3796 = vld [vmem:[%s9 + $0xf8] sm:$0xf]
      %v3797 = vld [vmem:[%s9 + $0xfc] sm:$0xf]
      %v3798 = vld [vmem:[%s9 + $0x100] sm:$0xf]
      %v3799 = vld [vmem:[%s9 + $0x104] sm:$0xf]
      %v3800 = vld [vmem:[%s9 + $0x108] sm:$0xf]
      %v3801 = vld [vmem:[%s9 + $0x10c] sm:$0xf]
      %v3802 = vld [vmem:[%s9 + $0x110] sm:$0xf]
      %v3803 = vld [vmem:[%s9 + $0x114] sm:$0xf]
      %v3804 = vld [vmem:[%s9 + $0x118] sm:$0xf]
      %v3805 = vld [vmem:[%s9 + $0x11c] sm:$0xf]
      %v3806 = vld [vmem:[%s9 + $0x120] sm:$0xf]
      %v3807 = vld [vmem:[%s9 + $0x124] sm:$0xf]
      %v3808 = vld [vmem:[%s9 + $0x128] sm:$0xf]
      %v3809 = vld [vmem:[%s9 + $0x12c] sm:$0xf]
      %v3810 = vld [vmem:[%s9 + $0x130] sm:$0xf]
      %v3811 = vld [vmem:[%s9 + $0x134] sm:$0xf]
      %v3812 = vld [vmem:[%s9 + $0x138] sm:$0xf]
      %v3813 = vld [vmem:[%s9 + $0x13c] sm:$0xf]
      %v3814 = vld [vmem:[%s9 + $0x140] sm:$0xf]
      %v3815 = vld [vmem:[%s9 + $0x144] sm:$0xf]
      %v3816 = vld [vmem:[%s9 + $0x148] sm:$0xf]
      %v3817 = vld [vmem:[%s9 + $0x14c] sm:$0xf]
      %v3818 = vld [vmem:[%s9 + $0x150] sm:$0xf]
      %v3819 = vld [vmem:[%s9 + $0x154] sm:$0xf]
      %v3820 = vld [vmem:[%s9 + $0x158] sm:$0xf]
      %v3821 = vld [vmem:[%s9 + $0x15c] sm:$0xf]
      %v3822 = vld [vmem:[%s9 + $0x160] sm:$0xf]
      %v3823 = vld [vmem:[%s9 + $0x164] sm:$0xf]
      %v3824 = vld [vmem:[%s9 + $0x168] sm:$0xf]
      %v3825 = vld [vmem:[%s9 + $0x16c] sm:$0xf]
      %v3826 = vld [vmem:[%s9 + $0x170] sm:$0xf]
      %v3827 = vld [vmem:[%s9 + $0x174] sm:$0xf]
      %v3828 = vld [vmem:[%s9 + $0x178] sm:$0xf]
      %v3829 = vld [vmem:[%s9 + $0x17c] sm:$0xf]
      %v3830 = vld [vmem:[%s9 + $0x180] sm:$0xf]
      %v3831 = vld [vmem:[%s9 + $0x184] sm:$0xf]
      %v3832 = vld [vmem:[%s9 + $0x188] sm:$0xf]
      %v3833 = vld [vmem:[%s9 + $0x18c] sm:$0xf]
      %v3834 = vld [vmem:[%s9 + $0x190] sm:$0xf]
      %v3835 = vld [vmem:[%s9 + $0x194] sm:$0xf]
      %v3836 = vld [vmem:[%s9 + $0x198] sm:$0xf]
      %v3837 = vld [vmem:[%s9 + $0x19c] sm:$0xf]
      %v3838 = vld [vmem:[%s9 + $0x1a0] sm:$0xf]
      %v3839 = vld [vmem:[%s9 + $0x1a4] sm:$0xf]
      %v3840 = vld [vmem:[%s9 + $0x1a8] sm:$0xf]
      %v3841 = vld [vmem:[%s9 + $0x1ac] sm:$0xf]
      %v3842 = vld [vmem:[%s9 + $0x1b0] sm:$0xf]
      %v3843 = vld [vmem:[%s9 + $0x1b4] sm:$0xf]
      %v3844 = vld [vmem:[%s9 + $0x1b8] sm:$0xf]
      %v3845 = vld [vmem:[%s9 + $0x1bc] sm:$0xf]
      %v3846 = vld [vmem:[%s9 + $0x1c0] sm:$0xf]
      %v3847 = vld [vmem:[%s9 + $0x1c4] sm:$0xf]
      %v3848 = vld [vmem:[%s9 + $0x1c8] sm:$0xf]
      %v3849 = vld [vmem:[%s9 + $0x1cc] sm:$0xf]
      %v3850 = vld [vmem:[%s9 + $0x1d0] sm:$0xf]
      %v3851 = vld [vmem:[%s9 + $0x1d4] sm:$0xf]
      %v3852 = vld [vmem:[%s9 + $0x1d8] sm:$0xf]
      %v3853 = vld [vmem:[%s9 + $0x1dc] sm:$0xf]
      %v3854 = vld [vmem:[%s9 + $0x1e0] sm:$0xf]
      %v3855 = vld [vmem:[%s9 + $0x1e4] sm:$0xf]
      %v3856 = vld [vmem:[%s9 + $0x1e8] sm:$0xf]
      %v3857 = vld [vmem:[%s9 + $0x1ec] sm:$0xf]
      %v3858 = vld [vmem:[%s9 + $0x1f0] sm:$0xf]
      %v3859 = vld [vmem:[%s9 + $0x1f4] sm:$0xf]
      %v3860 = vld [vmem:[%s9 + $0x1f8] sm:$0xf]
      %v3861 = vld [vmem:[%s9 + $0x1fc] sm:$0xf]
      %v3862 = vld [vmem:[%s9 + $0x200] sm:$0xf]
      %v3863 = vld [vmem:[%s9 + $0x204] sm:$0xf]
      %v3864 = vld [vmem:[%s9 + $0x208] sm:$0xf]
      %v3865 = vld [vmem:[%s9 + $0x20c] sm:$0xf]
      %v3866 = vld [vmem:[%s9 + $0x210] sm:$0xf]
      %v3867 = vld [vmem:[%s9 + $0x214] sm:$0xf]
      %v3868 = vld [vmem:[%s9 + $0x218] sm:$0xf]
      %v3869 = vld [vmem:[%s9 + $0x21c] sm:$0xf]
      %v3870 = vld [vmem:[%s9 + $0x220] sm:$0xf]
      %v3871 = vld [vmem:[%s9 + $0x224] sm:$0xf]
      %v3872 = vld [vmem:[%s9 + $0x228] sm:$0xf]
      %v3873 = vld [vmem:[%s9 + $0x22c] sm:$0xf]
      %v3874 = vld [vmem:[%s9 + $0x230] sm:$0xf]
      %v3875 = vld [vmem:[%s9 + $0x234] sm:$0xf]
      %v3876 = vld [vmem:[%s9 + $0x238] sm:$0xf]
      %v3877 = vld [vmem:[%s9 + $0x23c] sm:$0xf]
      %v3878 = vld [vmem:[%s9 + $0x240] sm:$0xf]
      %v3879 = vld [vmem:[%s9 + $0x244] sm:$0xf]
      %v3880 = vld [vmem:[%s9 + $0x248] sm:$0xf]
      %v3881 = vld [vmem:[%s9 + $0x24c] sm:$0xf]
      %v3882 = vld [vmem:[%s9 + $0x250] sm:$0xf]
      %v3883 = vld [vmem:[%s9 + $0x254] sm:$0xf]
      %v3884 = vld [vmem:[%s9 + $0x258] sm:$0xf]
      %v3885 = vld [vmem:[%s9 + $0x25c] sm:$0xf]
      %v3886 = vld [vmem:[%s9 + $0x260] sm:$0xf]
      %v3887 = vld [vmem:[%s9 + $0x264] sm:$0xf]
      %v3888 = vld [vmem:[%s9 + $0x268] sm:$0xf]
      %v3889 = vld [vmem:[%s9 + $0x26c] sm:$0xf]
      %v3890 = vld [vmem:[%s9 + $0x270] sm:$0xf]
      %v3891 = vld [vmem:[%s9 + $0x274] sm:$0xf]
      %v3892 = vld [vmem:[%s9 + $0x278] sm:$0xf]
      %v3893 = vld [vmem:[%s9 + $0x27c] sm:$0xf]
      %v3894 = vld [vmem:[%s9 + $0x280] sm:$0xf]
      %v3895 = vld [vmem:[%s9 + $0x284] sm:$0xf]
      %v3896 = vld [vmem:[%s9 + $0x288] sm:$0xf]
      %v3897 = vld [vmem:[%s9 + $0x28c] sm:$0xf]
      %v3898 = vld [vmem:[%s9 + $0x290] sm:$0xf]
      %v3899 = vld [vmem:[%s9 + $0x294] sm:$0xf]
      %v3900 = vld [vmem:[%s9 + $0x298] sm:$0xf]
      %v3901 = vld [vmem:[%s9 + $0x29c] sm:$0xf]
      %v3902 = vld [vmem:[%s9 + $0x2a0] sm:$0xf]
      %v3903 = vld [vmem:[%s9 + $0x2a4] sm:$0xf]
      %v3904 = vld [vmem:[%s9 + $0x2a8] sm:$0xf]
      %v3905 = vld [vmem:[%s9 + $0x2ac] sm:$0xf]
      %v3906 = vld [vmem:[%s9 + $0x2b0] sm:$0xf]
      %v3907 = vld [vmem:[%s9 + $0x2b4] sm:$0xf]
      %v3908 = vld [vmem:[%s9 + $0x2b8] sm:$0xf]
      %v3909 = vld [vmem:[%s9 + $0x2bc] sm:$0xf]
      %v3910 = vld [vmem:[%s9 + $0x2c0] sm:$0xf]
      %v3911 = vld [vmem:[%s9 + $0x2c4] sm:$0xf]
      %v3912 = vld [vmem:[%s9 + $0x2c8] sm:$0xf]
      %v3913 = vld [vmem:[%s9 + $0x2cc] sm:$0xf]
      %v3914 = vld [vmem:[%s9 + $0x2d0] sm:$0xf]
      %v3915 = vld [vmem:[%s9 + $0x2d4] sm:$0xf]
      %v3916 = vld [vmem:[%s9 + $0x2d8] sm:$0xf]
      %v3917 = vld [vmem:[%s9 + $0x2dc] sm:$0xf]
      %v3918 = vld [vmem:[%s9 + $0x2e0] sm:$0xf]
      %v3919 = vld [vmem:[%s9 + $0x2e4] sm:$0xf]
      %v3920 = vld [vmem:[%s9 + $0x2e8] sm:$0xf]
      %v3921 = vld [vmem:[%s9 + $0x2ec] sm:$0xf]
      %v3922 = vld [vmem:[%s9 + $0x2f0] sm:$0xf]
      %v3923 = vld [vmem:[%s9 + $0x2f4] sm:$0xf]
      %v3924 = vld [vmem:[%s9 + $0x2f8] sm:$0xf]
      %v3925 = vld [vmem:[%s9 + $0x2fc] sm:$0xf]
      %v3926 = vld [vmem:[%s9 + $0x300] sm:$0xf]
      %v3927 = vld [vmem:[%s9 + $0x304] sm:$0xf]
      %v3928 = vld [vmem:[%s9 + $0x308] sm:$0xf]
      %v3929 = vld [vmem:[%s9 + $0x30c] sm:$0xf]
      %v3930 = vld [vmem:[%s9 + $0x310] sm:$0xf]
      %v3931 = vld [vmem:[%s9 + $0x314] sm:$0xf]
      %v3932 = vld [vmem:[%s9 + $0x318] sm:$0xf]
      %v3933 = vld [vmem:[%s9 + $0x31c] sm:$0xf]
      %v3934 = vld [vmem:[%s9 + $0x320] sm:$0xf]
      %v3935 = vld [vmem:[%s9 + $0x324] sm:$0xf]
      %v3936 = vld [vmem:[%s9 + $0x328] sm:$0xf]
      %v3937 = vld [vmem:[%s9 + $0x32c] sm:$0xf]
      %v3938 = vld [vmem:[%s9 + $0x330] sm:$0xf]
      %v3939 = vld [vmem:[%s9 + $0x334] sm:$0xf]
      %v3940 = vld [vmem:[%s9 + $0x338] sm:$0xf]
      %v3941 = vld [vmem:[%s9 + $0x33c] sm:$0xf]
      %v3942 = vld [vmem:[%s9 + $0x340] sm:$0xf]
      %v3943 = vld [vmem:[%s9 + $0x344] sm:$0xf]
      %v3944 = vld [vmem:[%s9 + $0x348] sm:$0xf]
      %v3945 = vld [vmem:[%s9 + $0x34c] sm:$0xf]
      %v3946 = vld [vmem:[%s9 + $0x350] sm:$0xf]
      %v3947 = vld [vmem:[%s9 + $0x354] sm:$0xf]
      %v3948 = vld [vmem:[%s9 + $0x358] sm:$0xf]
      %v3949 = vld [vmem:[%s9 + $0x35c] sm:$0xf]
      %v3950 = vld [vmem:[%s9 + $0x360] sm:$0xf]
      %v3951 = vld [vmem:[%s9 + $0x364] sm:$0xf]
      %v3952 = vld [vmem:[%s9 + $0x368] sm:$0xf]
      %v3953 = vld [vmem:[%s9 + $0x36c] sm:$0xf]
      %v3954 = vld [vmem:[%s9 + $0x370] sm:$0xf]
      %v3955 = vld [vmem:[%s9 + $0x374] sm:$0xf]
      %v3956 = vld [vmem:[%s9 + $0x378] sm:$0xf]
      %v3957 = vld [vmem:[%s9 + $0x37c] sm:$0xf]
      %v3958 = vld [vmem:[%s9 + $0x380] sm:$0xf]
      %v3959 = vld [vmem:[%s9 + $0x384] sm:$0xf]
      %v3960 = vld [vmem:[%s9 + $0x388] sm:$0xf]
      %v3961 = vld [vmem:[%s9 + $0x38c] sm:$0xf]
      %v3962 = vld [vmem:[%s9 + $0x390] sm:$0xf]
      %v3963 = vld [vmem:[%s9 + $0x394] sm:$0xf]
      %v3964 = vld [vmem:[%s9 + $0x398] sm:$0xf]
      %v3965 = vld [vmem:[%s9 + $0x39c] sm:$0xf]
      %v3966 = vld [vmem:[%s9 + $0x3a0] sm:$0xf]
      %v3967 = vld [vmem:[%s9 + $0x3a4] sm:$0xf]
      %v3968 = vld [vmem:[%s9 + $0x3a8] sm:$0xf]
      %v3969 = vld [vmem:[%s9 + $0x3ac] sm:$0xf]
      %v3970 = vld [vmem:[%s9 + $0x3b0] sm:$0xf]
      %v3971 = vld [vmem:[%s9 + $0x3b4] sm:$0xf]
      %v3972 = vld [vmem:[%s9 + $0x3b8] sm:$0xf]
      %v3973 = vld [vmem:[%s9 + $0x3bc] sm:$0xf]
      %v3974 = vld [vmem:[%s9 + $0x3c0] sm:$0xf]
      %v3975 = vld [vmem:[%s9 + $0x3c4] sm:$0xf]
      %v3976 = vld [vmem:[%s9 + $0x3c8] sm:$0xf]
      %v3977 = vld [vmem:[%s9 + $0x3cc] sm:$0xf]
      %v3978 = vld [vmem:[%s9 + $0x3d0] sm:$0xf]
      %v3979 = vld [vmem:[%s9 + $0x3d4] sm:$0xf]
      %v3980 = vld [vmem:[%s9 + $0x3d8] sm:$0xf]
      %v3981 = vld [vmem:[%s9 + $0x3dc] sm:$0xf]
      %v3982 = vld [vmem:[%s9 + $0x3e0] sm:$0xf]
      %v3983 = vld [vmem:[%s9 + $0x3e4] sm:$0xf]
      %v3984 = vld [vmem:[%s9 + $0x3e8] sm:$0xf]
      %v3985 = vld [vmem:[%s9 + $0x3ec] sm:$0xf]
      %v3986 = vld [vmem:[%s9 + $0x3f0] sm:$0xf]
      %v3987 = vld [vmem:[%s9 + $0x3f4] sm:$0xf]
      %v3988 = vld [vmem:[%s9 + $0x3f8] sm:$0xf]
      %v3989 = vld [vmem:[%s9 + $0x3fc] sm:$0xf]
      %v4246 = vunpack.c.l.b16 %v3734
      %v4247 = vunpack.c.l.b16 %v3735
      %v4248 = vunpack.c.l.b16 %v3736
      %v4249 = vunpack.c.l.b16 %v3737
      %v4250 = vunpack.c.l.b16 %v3738
      %v4251 = vunpack.c.l.b16 %v3739
      %v4252 = vunpack.c.l.b16 %v3740
      %v4253 = vunpack.c.l.b16 %v3741
      %v4254 = vunpack.c.l.b16 %v3742
      %v4255 = vunpack.c.l.b16 %v3743
      %v4256 = vunpack.c.l.b16 %v3744
      %v4257 = vunpack.c.l.b16 %v3745
      %v4258 = vunpack.c.l.b16 %v3746
      %v4259 = vunpack.c.l.b16 %v3747
      %v4260 = vunpack.c.l.b16 %v3748
      %v4261 = vunpack.c.l.b16 %v3749
      %v4262 = vunpack.c.l.b16 %v3750
      %v4263 = vunpack.c.l.b16 %v3751
      %v4264 = vunpack.c.l.b16 %v3752
      %v4265 = vunpack.c.l.b16 %v3753
      %v4266 = vunpack.c.l.b16 %v3754
      %v4267 = vunpack.c.l.b16 %v3755
      %v4268 = vunpack.c.l.b16 %v3756
      %v4269 = vunpack.c.l.b16 %v3757
      %v4270 = vunpack.c.l.b16 %v3758
      %v4271 = vunpack.c.l.b16 %v3759
      %v4272 = vunpack.c.l.b16 %v3760
      %v4273 = vunpack.c.l.b16 %v3761
      %v4274 = vunpack.c.l.b16 %v3762
      %v4275 = vunpack.c.l.b16 %v3763
      %v4276 = vunpack.c.l.b16 %v3764
      %v4277 = vunpack.c.l.b16 %v3765
      %v4278 = vunpack.c.l.b16 %v3766
      %v4279 = vunpack.c.l.b16 %v3767
      %v4280 = vunpack.c.l.b16 %v3768
      %v4281 = vunpack.c.l.b16 %v3769
      %v4282 = vunpack.c.l.b16 %v3770
      %v4283 = vunpack.c.l.b16 %v3771
      %v4284 = vunpack.c.l.b16 %v3772
      %v4285 = vunpack.c.l.b16 %v3773
      %v4286 = vunpack.c.l.b16 %v3774
      %v4287 = vunpack.c.l.b16 %v3775
      %v4288 = vunpack.c.l.b16 %v3776
      %v4289 = vunpack.c.l.b16 %v3777
      %v4290 = vunpack.c.l.b16 %v3778
      %v4291 = vunpack.c.l.b16 %v3779
      %v4292 = vunpack.c.l.b16 %v3780
      %v4293 = vunpack.c.l.b16 %v3781
      %v4294 = vunpack.c.l.b16 %v3782
      %v4295 = vunpack.c.l.b16 %v3783
      %v4296 = vunpack.c.l.b16 %v3784
      %v4297 = vunpack.c.l.b16 %v3785
      %v4298 = vunpack.c.l.b16 %v3786
      %v4299 = vunpack.c.l.b16 %v3787
      %v4300 = vunpack.c.l.b16 %v3788
      %v4301 = vunpack.c.l.b16 %v3789
      %v4302 = vunpack.c.l.b16 %v3790
      %v4303 = vunpack.c.l.b16 %v3791
      %v4304 = vunpack.c.l.b16 %v3792
      %v4305 = vunpack.c.l.b16 %v3793
      %v4306 = vunpack.c.l.b16 %v3794
      %v4307 = vunpack.c.l.b16 %v3795
      %v4308 = vunpack.c.l.b16 %v3796
      %v4309 = vunpack.c.l.b16 %v3797
      %v4310 = vunpack.c.l.b16 %v3798
      %v4311 = vunpack.c.l.b16 %v3799
      %v4312 = vunpack.c.l.b16 %v3800
      %v4313 = vunpack.c.l.b16 %v3801
      %v4314 = vunpack.c.l.b16 %v3802
      %v4315 = vunpack.c.l.b16 %v3803
      %v4316 = vunpack.c.l.b16 %v3804
      %v4317 = vunpack.c.l.b16 %v3805
      %v4318 = vunpack.c.l.b16 %v3806
      %v4319 = vunpack.c.l.b16 %v3807
      %v4320 = vunpack.c.l.b16 %v3808
      %v4321 = vunpack.c.l.b16 %v3809
      %v4322 = vunpack.c.l.b16 %v3810
      %v4323 = vunpack.c.l.b16 %v3811
      %v4324 = vunpack.c.l.b16 %v3812
      %v4325 = vunpack.c.l.b16 %v3813
      %v4326 = vunpack.c.l.b16 %v3814
      %v4327 = vunpack.c.l.b16 %v3815
      %v4328 = vunpack.c.l.b16 %v3816
      %v4329 = vunpack.c.l.b16 %v3817
      %v4330 = vunpack.c.l.b16 %v3818
      %v4331 = vunpack.c.l.b16 %v3819
      %v4332 = vunpack.c.l.b16 %v3820
      %v4333 = vunpack.c.l.b16 %v3821
      %v4334 = vunpack.c.l.b16 %v3822
      %v4335 = vunpack.c.l.b16 %v3823
      %v4336 = vunpack.c.l.b16 %v3824
      %v4337 = vunpack.c.l.b16 %v3825
      %v4338 = vunpack.c.l.b16 %v3826
      %v4339 = vunpack.c.l.b16 %v3827
      %v4340 = vunpack.c.l.b16 %v3828
      %v4341 = vunpack.c.l.b16 %v3829
      %v4342 = vunpack.c.l.b16 %v3830
      %v4343 = vunpack.c.l.b16 %v3831
      %v4344 = vunpack.c.l.b16 %v3832
      %v4345 = vunpack.c.l.b16 %v3833
      %v4346 = vunpack.c.l.b16 %v3834
      %v4347 = vunpack.c.l.b16 %v3835
      %v4348 = vunpack.c.l.b16 %v3836
      %v4349 = vunpack.c.l.b16 %v3837
      %v4350 = vunpack.c.l.b16 %v3838
      %v4351 = vunpack.c.l.b16 %v3839
      %v4352 = vunpack.c.l.b16 %v3840
      %v4353 = vunpack.c.l.b16 %v3841
      %v4354 = vunpack.c.l.b16 %v3842
      %v4355 = vunpack.c.l.b16 %v3843
      %v4356 = vunpack.c.l.b16 %v3844
      %v4357 = vunpack.c.l.b16 %v3845
      %v4358 = vunpack.c.l.b16 %v3846
      %v4359 = vunpack.c.l.b16 %v3847
      %v4360 = vunpack.c.l.b16 %v3848
      %v4361 = vunpack.c.l.b16 %v3849
      %v4362 = vunpack.c.l.b16 %v3850
      %v4363 = vunpack.c.l.b16 %v3851
      %v4364 = vunpack.c.l.b16 %v3852
      %v4365 = vunpack.c.l.b16 %v3853
      %v4366 = vunpack.c.l.b16 %v3854
      %v4367 = vunpack.c.l.b16 %v3855
      %v4368 = vunpack.c.l.b16 %v3856
      %v4369 = vunpack.c.l.b16 %v3857
      %v4370 = vunpack.c.l.b16 %v3858
      %v4371 = vunpack.c.l.b16 %v3859
      %v4372 = vunpack.c.l.b16 %v3860
      %v4373 = vunpack.c.l.b16 %v3861
      %v4374 = vunpack.c.l.b16 %v3862
      %v4375 = vunpack.c.l.b16 %v3863
      %v4376 = vunpack.c.l.b16 %v3864
      %v4377 = vunpack.c.l.b16 %v3865
      %v4378 = vunpack.c.l.b16 %v3866
      %v4379 = vunpack.c.l.b16 %v3867
      %v4380 = vunpack.c.l.b16 %v3868
      %v4381 = vunpack.c.l.b16 %v3869
      %v4382 = vunpack.c.l.b16 %v3870
      %v4383 = vunpack.c.l.b16 %v3871
      %v4384 = vunpack.c.l.b16 %v3872
      %v4385 = vunpack.c.l.b16 %v3873
      %v4386 = vunpack.c.l.b16 %v3874
      %v4387 = vunpack.c.l.b16 %v3875
      %v4388 = vunpack.c.l.b16 %v3876
      %v4389 = vunpack.c.l.b16 %v3877
      %v4390 = vunpack.c.l.b16 %v3878
      %v4391 = vunpack.c.l.b16 %v3879
      %v4392 = vunpack.c.l.b16 %v3880
      %v4393 = vunpack.c.l.b16 %v3881
      %v4394 = vunpack.c.l.b16 %v3882
      %v4395 = vunpack.c.l.b16 %v3883
      %v4396 = vunpack.c.l.b16 %v3884
      %v4397 = vunpack.c.l.b16 %v3885
      %v4398 = vunpack.c.l.b16 %v3886
      %v4399 = vunpack.c.l.b16 %v3887
      %v4400 = vunpack.c.l.b16 %v3888
      %v4401 = vunpack.c.l.b16 %v3889
      %v4402 = vunpack.c.l.b16 %v3890
      %v4403 = vunpack.c.l.b16 %v3891
      %v4404 = vunpack.c.l.b16 %v3892
      %v4405 = vunpack.c.l.b16 %v3893
      %v4406 = vunpack.c.l.b16 %v3894
      %v4407 = vunpack.c.l.b16 %v3895
      %v4408 = vunpack.c.l.b16 %v3896
      %v4409 = vunpack.c.l.b16 %v3897
      %v4410 = vunpack.c.l.b16 %v3898
      %v4411 = vunpack.c.l.b16 %v3899
      %v4412 = vunpack.c.l.b16 %v3900
      %v4413 = vunpack.c.l.b16 %v3901
      %v4414 = vunpack.c.l.b16 %v3902
      %v4415 = vunpack.c.l.b16 %v3903
      %v4416 = vunpack.c.l.b16 %v3904
      %v4417 = vunpack.c.l.b16 %v3905
      %v4418 = vunpack.c.l.b16 %v3906
      %v4419 = vunpack.c.l.b16 %v3907
      %v4420 = vunpack.c.l.b16 %v3908
      %v4421 = vunpack.c.l.b16 %v3909
      %v4422 = vunpack.c.l.b16 %v3910
      %v4423 = vunpack.c.l.b16 %v3911
      %v4424 = vunpack.c.l.b16 %v3912
      %v4425 = vunpack.c.l.b16 %v3913
      %v4426 = vunpack.c.l.b16 %v3914
      %v4427 = vunpack.c.l.b16 %v3915
      %v4428 = vunpack.c.l.b16 %v3916
      %v4429 = vunpack.c.l.b16 %v3917
      %v4430 = vunpack.c.l.b16 %v3918
      %v4431 = vunpack.c.l.b16 %v3919
      %v4432 = vunpack.c.l.b16 %v3920
      %v4433 = vunpack.c.l.b16 %v3921
      %v4434 = vunpack.c.l.b16 %v3922
      %v4435 = vunpack.c.l.b16 %v3923
      %v4436 = vunpack.c.l.b16 %v3924
      %v4437 = vunpack.c.l.b16 %v3925
      %v4438 = vunpack.c.l.b16 %v3926
      %v4439 = vunpack.c.l.b16 %v3927
      %v4440 = vunpack.c.l.b16 %v3928
      %v4441 = vunpack.c.l.b16 %v3929
      %v4442 = vunpack.c.l.b16 %v3930
      %v4443 = vunpack.c.l.b16 %v3931
      %v4444 = vunpack.c.l.b16 %v3932
      %v4445 = vunpack.c.l.b16 %v3933
      %v4446 = vunpack.c.l.b16 %v3934
      %v4447 = vunpack.c.l.b16 %v3935
      %v4448 = vunpack.c.l.b16 %v3936
      %v4449 = vunpack.c.l.b16 %v3937
      %v4450 = vunpack.c.l.b16 %v3938
      %v4451 = vunpack.c.l.b16 %v3939
      %v4452 = vunpack.c.l.b16 %v3940
      %v4453 = vunpack.c.l.b16 %v3941
      %v4454 = vunpack.c.l.b16 %v3942
      %v4455 = vunpack.c.l.b16 %v3943
      %v4456 = vunpack.c.l.b16 %v3944
      %v4457 = vunpack.c.l.b16 %v3945
      %v4458 = vunpack.c.l.b16 %v3946
      %v4459 = vunpack.c.l.b16 %v3947
      %v4460 = vunpack.c.l.b16 %v3948
      %v4461 = vunpack.c.l.b16 %v3949
      %v4462 = vunpack.c.l.b16 %v3950
      %v4463 = vunpack.c.l.b16 %v3951
      %v4464 = vunpack.c.l.b16 %v3952
      %v4465 = vunpack.c.l.b16 %v3953
      %v4466 = vunpack.c.l.b16 %v3954
      %v4467 = vunpack.c.l.b16 %v3955
      %v4468 = vunpack.c.l.b16 %v3956
      %v4469 = vunpack.c.l.b16 %v3957
      %v4470 = vunpack.c.l.b16 %v3958
      %v4471 = vunpack.c.l.b16 %v3959
      %v4472 = vunpack.c.l.b16 %v3960
      %v4473 = vunpack.c.l.b16 %v3961
      %v4474 = vunpack.c.l.b16 %v3962
      %v4475 = vunpack.c.l.b16 %v3963
      %v4476 = vunpack.c.l.b16 %v3964
      %v4477 = vunpack.c.l.b16 %v3965
      %v4478 = vunpack.c.l.b16 %v3966
      %v4479 = vunpack.c.l.b16 %v3967
      %v4480 = vunpack.c.l.b16 %v3968
      %v4481 = vunpack.c.l.b16 %v3969
      %v4482 = vunpack.c.l.b16 %v3970
      %v4483 = vunpack.c.l.b16 %v3971
      %v4484 = vunpack.c.l.b16 %v3972
      %v4485 = vunpack.c.l.b16 %v3973
      %v4486 = vunpack.c.l.b16 %v3974
      %v4487 = vunpack.c.l.b16 %v3975
      %v4488 = vunpack.c.l.b16 %v3976
      %v4489 = vunpack.c.l.b16 %v3977
      %v4490 = vunpack.c.l.b16 %v3978
      %v4491 = vunpack.c.l.b16 %v3979
      %v4492 = vunpack.c.l.b16 %v3980
      %v4493 = vunpack.c.l.b16 %v3981
      %v4494 = vunpack.c.l.b16 %v3982
      %v4495 = vunpack.c.l.b16 %v3983
      %v4496 = vunpack.c.l.b16 %v3984
      %v4497 = vunpack.c.l.b16 %v3985
      %v4498 = vunpack.c.l.b16 %v3986
      %v4499 = vunpack.c.l.b16 %v3987
      %v4500 = vunpack.c.l.b16 %v3988
      %v4501 = vunpack.c.l.b16 %v3989
      %v4502 = vpack.c.b16 %v4247, %v4246
      %v4503 = vpack.c.b16 %v4249, %v4248
      %v4504 = vpack.c.b16 %v4251, %v4250
      %v4505 = vpack.c.b16 %v4253, %v4252
      %v4506 = vpack.c.b16 %v4255, %v4254
      %v4507 = vpack.c.b16 %v4257, %v4256
      %v4508 = vpack.c.b16 %v4259, %v4258
      %v4509 = vpack.c.b16 %v4261, %v4260
      %v4510 = vpack.c.b16 %v4263, %v4262
      %v4511 = vpack.c.b16 %v4265, %v4264
      %v4512 = vpack.c.b16 %v4267, %v4266
      %v4513 = vpack.c.b16 %v4269, %v4268
      %v4514 = vpack.c.b16 %v4271, %v4270
      %v4515 = vpack.c.b16 %v4273, %v4272
      %v4516 = vpack.c.b16 %v4275, %v4274
      %v4517 = vpack.c.b16 %v4277, %v4276
      %v4518 = vpack.c.b16 %v4279, %v4278
      %v4519 = vpack.c.b16 %v4281, %v4280
      %v4520 = vpack.c.b16 %v4283, %v4282
      %v4521 = vpack.c.b16 %v4285, %v4284
      %v4522 = vpack.c.b16 %v4287, %v4286
      %v4523 = vpack.c.b16 %v4289, %v4288
      %v4524 = vpack.c.b16 %v4291, %v4290
      %v4525 = vpack.c.b16 %v4293, %v4292
      %v4526 = vpack.c.b16 %v4295, %v4294
      %v4527 = vpack.c.b16 %v4297, %v4296
      %v4528 = vpack.c.b16 %v4299, %v4298
      %v4529 = vpack.c.b16 %v4301, %v4300
      %v4530 = vpack.c.b16 %v4303, %v4302
      %v4531 = vpack.c.b16 %v4305, %v4304
      %v4532 = vpack.c.b16 %v4307, %v4306
      %v4533 = vpack.c.b16 %v4309, %v4308
      %v4534 = vpack.c.b16 %v4311, %v4310
      %v4535 = vpack.c.b16 %v4313, %v4312
      %v4536 = vpack.c.b16 %v4315, %v4314
      %v4537 = vpack.c.b16 %v4317, %v4316
      %v4538 = vpack.c.b16 %v4319, %v4318
      %v4539 = vpack.c.b16 %v4321, %v4320
      %v4540 = vpack.c.b16 %v4323, %v4322
      %v4541 = vpack.c.b16 %v4325, %v4324
      %v4542 = vpack.c.b16 %v4327, %v4326
      %v4543 = vpack.c.b16 %v4329, %v4328
      %v4544 = vpack.c.b16 %v4331, %v4330
      %v4545 = vpack.c.b16 %v4333, %v4332
      %v4546 = vpack.c.b16 %v4335, %v4334
      %v4547 = vpack.c.b16 %v4337, %v4336
      %v4548 = vpack.c.b16 %v4339, %v4338
      %v4549 = vpack.c.b16 %v4341, %v4340
      %v4550 = vpack.c.b16 %v4343, %v4342
      %v4551 = vpack.c.b16 %v4345, %v4344
      %v4552 = vpack.c.b16 %v4347, %v4346
      %v4553 = vpack.c.b16 %v4349, %v4348
      %v4554 = vpack.c.b16 %v4351, %v4350
      %v4555 = vpack.c.b16 %v4353, %v4352
      %v4556 = vpack.c.b16 %v4355, %v4354
      %v4557 = vpack.c.b16 %v4357, %v4356
      %v4558 = vpack.c.b16 %v4359, %v4358
      %v4559 = vpack.c.b16 %v4361, %v4360
      %v4560 = vpack.c.b16 %v4363, %v4362
      %v4561 = vpack.c.b16 %v4365, %v4364
      %v4562 = vpack.c.b16 %v4367, %v4366
      %v4563 = vpack.c.b16 %v4369, %v4368
      %v4564 = vpack.c.b16 %v4371, %v4370
      %v4565 = vpack.c.b16 %v4373, %v4372
      %v4566 = vpack.c.b16 %v4375, %v4374
      %v4567 = vpack.c.b16 %v4377, %v4376
      %v4568 = vpack.c.b16 %v4379, %v4378
      %v4569 = vpack.c.b16 %v4381, %v4380
      %v4570 = vpack.c.b16 %v4383, %v4382
      %v4571 = vpack.c.b16 %v4385, %v4384
      %v4572 = vpack.c.b16 %v4387, %v4386
      %v4573 = vpack.c.b16 %v4389, %v4388
      %v4574 = vpack.c.b16 %v4391, %v4390
      %v4575 = vpack.c.b16 %v4393, %v4392
      %v4576 = vpack.c.b16 %v4395, %v4394
      %v4577 = vpack.c.b16 %v4397, %v4396
      %v4578 = vpack.c.b16 %v4399, %v4398
      %v4579 = vpack.c.b16 %v4401, %v4400
      %v4580 = vpack.c.b16 %v4403, %v4402
      %v4581 = vpack.c.b16 %v4405, %v4404
      %v4582 = vpack.c.b16 %v4407, %v4406
      %v4583 = vpack.c.b16 %v4409, %v4408
      %v4584 = vpack.c.b16 %v4411, %v4410
      %v4585 = vpack.c.b16 %v4413, %v4412
      %v4586 = vpack.c.b16 %v4415, %v4414
      %v4587 = vpack.c.b16 %v4417, %v4416
      %v4588 = vpack.c.b16 %v4419, %v4418
      %v4589 = vpack.c.b16 %v4421, %v4420
      %v4590 = vpack.c.b16 %v4423, %v4422
      %v4591 = vpack.c.b16 %v4425, %v4424
      %v4592 = vpack.c.b16 %v4427, %v4426
      %v4593 = vpack.c.b16 %v4429, %v4428
      %v4594 = vpack.c.b16 %v4431, %v4430
      %v4595 = vpack.c.b16 %v4433, %v4432
      %v4596 = vpack.c.b16 %v4435, %v4434
      %v4597 = vpack.c.b16 %v4437, %v4436
      %v4598 = vpack.c.b16 %v4439, %v4438
      %v4599 = vpack.c.b16 %v4441, %v4440
      %v4600 = vpack.c.b16 %v4443, %v4442
      %v4601 = vpack.c.b16 %v4445, %v4444
      %v4602 = vpack.c.b16 %v4447, %v4446
      %v4603 = vpack.c.b16 %v4449, %v4448
      %v4604 = vpack.c.b16 %v4451, %v4450
      %v4605 = vpack.c.b16 %v4453, %v4452
      %v4606 = vpack.c.b16 %v4455, %v4454
      %v4607 = vpack.c.b16 %v4457, %v4456
      %v4608 = vpack.c.b16 %v4459, %v4458
      %v4609 = vpack.c.b16 %v4461, %v4460
      %v4610 = vpack.c.b16 %v4463, %v4462
      %v4611 = vpack.c.b16 %v4465, %v4464
      %v4612 = vpack.c.b16 %v4467, %v4466
      %v4613 = vpack.c.b16 %v4469, %v4468
      %v4614 = vpack.c.b16 %v4471, %v4470
      %v4615 = vpack.c.b16 %v4473, %v4472
      %v4616 = vpack.c.b16 %v4475, %v4474
      %v4617 = vpack.c.b16 %v4477, %v4476
      %v4618 = vpack.c.b16 %v4479, %v4478
      %v4619 = vpack.c.b16 %v4481, %v4480
      %v4620 = vpack.c.b16 %v4483, %v4482
      %v4621 = vpack.c.b16 %v4485, %v4484
      %v4622 = vpack.c.b16 %v4487, %v4486
      %v4623 = vpack.c.b16 %v4489, %v4488
      %v4624 = vpack.c.b16 %v4491, %v4490
      %v4625 = vpack.c.b16 %v4493, %v4492
      %v4626 = vpack.c.b16 %v4495, %v4494
      %v4627 = vpack.c.b16 %v4497, %v4496
      %v4628 = vpack.c.b16 %v4499, %v4498
      %v4629 = vpack.c.b16 %v4501, %v4500
      %4758 = vmatpush.bf16.msra.mxu0 %v4509
      %4759 = vmatpush.bf16.msra.mxu0 %v4508
      %4760 = vmatpush.bf16.msra.mxu0 %v4507
      %4761 = vmatpush.bf16.msra.mxu0 %v4506
      %4762 = vmatpush.bf16.msra.mxu0 %v4505
      %4763 = vmatpush.bf16.msra.mxu0 %v4504
      %4764 = vmatpush.bf16.msra.mxu0 %v4503
      %4765 = vmatpush.bf16.msra.mxu0 %v4502
      %4766 = vmatmul.bf16.gmra.mxu0 %v3702
      %v4767 = vpop.f32.mrf.mxu0
      %v4768 = vadd.f32 0.0, %v4767
      %v4769 = vpop.f32.mrf.mxu0
      %v4770 = vadd.f32 0.0, %v4769
      %4771 = vmatmul.bf16.gmra.mxu0 %v3718
      %v4772 = vpop.f32.mrf.mxu0
      %v4773 = vadd.f32 0.0, %v4772
      %v4774 = vpop.f32.mrf.mxu0
      %v4775 = vadd.f32 0.0, %v4774
      %4776 = vdwg.mxu0
      %4777 = vmatpush.bf16.msra.mxu0 %v4517
      %4778 = vmatpush.bf16.msra.mxu0 %v4516
      %4779 = vmatpush.bf16.msra.mxu0 %v4515
      %4780 = vmatpush.bf16.msra.mxu0 %v4514
      %4781 = vmatpush.bf16.msra.mxu0 %v4513
      %4782 = vmatpush.bf16.msra.mxu0 %v4512
      %4783 = vmatpush.bf16.msra.mxu0 %v4511
      %4784 = vmatpush.bf16.msra.mxu0 %v4510
      %4785 = vmatmul.bf16.gmra.mxu0 %v3703
      %v4786 = vpop.f32.mrf.mxu0
      %v4787 = vadd.f32 %v4768, %v4786
      %v4788 = vpop.f32.mrf.mxu0
      %v4789 = vadd.f32 %v4770, %v4788
      %4790 = vmatmul.bf16.gmra.mxu0 %v3719
      %v4791 = vpop.f32.mrf.mxu0
      %v4792 = vadd.f32 %v4773, %v4791
      %v4793 = vpop.f32.mrf.mxu0
      %v4794 = vadd.f32 %v4775, %v4793
      %4795 = vdwg.mxu0
      %4796 = vmatpush.bf16.msra.mxu0 %v4525
      %4797 = vmatpush.bf16.msra.mxu0 %v4524
      %4798 = vmatpush.bf16.msra.mxu0 %v4523
      %4799 = vmatpush.bf16.msra.mxu0 %v4522
      %4800 = vmatpush.bf16.msra.mxu0 %v4521
      %4801 = vmatpush.bf16.msra.mxu0 %v4520
      %4802 = vmatpush.bf16.msra.mxu0 %v4519
      %4803 = vmatpush.bf16.msra.mxu0 %v4518
      %4804 = vmatmul.bf16.gmra.mxu0 %v3704
      %v4805 = vpop.f32.mrf.mxu0
      %v4806 = vadd.f32 %v4787, %v4805
      %v4807 = vpop.f32.mrf.mxu0
      %v4808 = vadd.f32 %v4789, %v4807
      %4809 = vmatmul.bf16.gmra.mxu0 %v3720
      %v4810 = vpop.f32.mrf.mxu0
      %v4811 = vadd.f32 %v4792, %v4810
      %v4812 = vpop.f32.mrf.mxu0
      %v4813 = vadd.f32 %v4794, %v4812
      %4814 = vdwg.mxu0
      %4815 = vmatpush.bf16.msra.mxu0 %v4533
      %4816 = vmatpush.bf16.msra.mxu0 %v4532
      %4817 = vmatpush.bf16.msra.mxu0 %v4531
      %4818 = vmatpush.bf16.msra.mxu0 %v4530
      %4819 = vmatpush.bf16.msra.mxu0 %v4529
      %4820 = vmatpush.bf16.msra.mxu0 %v4528
      %4821 = vmatpush.bf16.msra.mxu0 %v4527
      %4822 = vmatpush.bf16.msra.mxu0 %v4526
      %4823 = vmatmul.bf16.gmra.mxu0 %v3705
      %v4824 = vpop.f32.mrf.mxu0
      %v4825 = vadd.f32 %v4806, %v4824
      %v4826 = vpop.f32.mrf.mxu0
      %v4827 = vadd.f32 %v4808, %v4826
      %4828 = vmatmul.bf16.gmra.mxu0 %v3721
      %v4829 = vpop.f32.mrf.mxu0
      %v4830 = vadd.f32 %v4811, %v4829
      %v4831 = vpop.f32.mrf.mxu0
      %v4832 = vadd.f32 %v4813, %v4831
      %4833 = vdwg.mxu0
      %4834 = vmatpush.bf16.msra.mxu0 %v4541
      %4835 = vmatpush.bf16.msra.mxu0 %v4540
      %4836 = vmatpush.bf16.msra.mxu0 %v4539
      %4837 = vmatpush.bf16.msra.mxu0 %v4538
      %4838 = vmatpush.bf16.msra.mxu0 %v4537
      %4839 = vmatpush.bf16.msra.mxu0 %v4536
      %4840 = vmatpush.bf16.msra.mxu0 %v4535
      %4841 = vmatpush.bf16.msra.mxu0 %v4534
      %4842 = vmatmul.bf16.gmra.mxu0 %v3706
      %v4843 = vpop.f32.mrf.mxu0
      %v4844 = vadd.f32 %v4825, %v4843
      %v4845 = vpop.f32.mrf.mxu0
      %v4846 = vadd.f32 %v4827, %v4845
      %4847 = vmatmul.bf16.gmra.mxu0 %v3722
      %v4848 = vpop.f32.mrf.mxu0
      %v4849 = vadd.f32 %v4830, %v4848
      %v4850 = vpop.f32.mrf.mxu0
      %v4851 = vadd.f32 %v4832, %v4850
      %4852 = vdwg.mxu0
      %4853 = vmatpush.bf16.msra.mxu0 %v4549
      %4854 = vmatpush.bf16.msra.mxu0 %v4548
      %4855 = vmatpush.bf16.msra.mxu0 %v4547
      %4856 = vmatpush.bf16.msra.mxu0 %v4546
      %4857 = vmatpush.bf16.msra.mxu0 %v4545
      %4858 = vmatpush.bf16.msra.mxu0 %v4544
      %4859 = vmatpush.bf16.msra.mxu0 %v4543
      %4860 = vmatpush.bf16.msra.mxu0 %v4542
      %4861 = vmatmul.bf16.gmra.mxu0 %v3707
      %v4862 = vpop.f32.mrf.mxu0
      %v4863 = vadd.f32 %v4844, %v4862
      %v4864 = vpop.f32.mrf.mxu0
      %v4865 = vadd.f32 %v4846, %v4864
      %4866 = vmatmul.bf16.gmra.mxu0 %v3723
      %v4867 = vpop.f32.mrf.mxu0
      %v4868 = vadd.f32 %v4849, %v4867
      %v4869 = vpop.f32.mrf.mxu0
      %v4870 = vadd.f32 %v4851, %v4869
      %4871 = vdwg.mxu0
      %4872 = vmatpush.bf16.msra.mxu0 %v4557
      %4873 = vmatpush.bf16.msra.mxu0 %v4556
      %4874 = vmatpush.bf16.msra.mxu0 %v4555
      %4875 = vmatpush.bf16.msra.mxu0 %v4554
      %4876 = vmatpush.bf16.msra.mxu0 %v4553
      %4877 = vmatpush.bf16.msra.mxu0 %v4552
      %4878 = vmatpush.bf16.msra.mxu0 %v4551
      %4879 = vmatpush.bf16.msra.mxu0 %v4550
      %4880 = vmatmul.bf16.gmra.mxu0 %v3708
      %v4881 = vpop.f32.mrf.mxu0
      %v4882 = vadd.f32 %v4863, %v4881
      %v4883 = vpop.f32.mrf.mxu0
      %v4884 = vadd.f32 %v4865, %v4883
      %4885 = vmatmul.bf16.gmra.mxu0 %v3724
      %v4886 = vpop.f32.mrf.mxu0
      %v4887 = vadd.f32 %v4868, %v4886
      %v4888 = vpop.f32.mrf.mxu0
      %v4889 = vadd.f32 %v4870, %v4888
      %4890 = vdwg.mxu0
      %4891 = vmatpush.bf16.msra.mxu0 %v4565
      %4892 = vmatpush.bf16.msra.mxu0 %v4564
      %4893 = vmatpush.bf16.msra.mxu0 %v4563
      %4894 = vmatpush.bf16.msra.mxu0 %v4562
      %4895 = vmatpush.bf16.msra.mxu0 %v4561
      %4896 = vmatpush.bf16.msra.mxu0 %v4560
      %4897 = vmatpush.bf16.msra.mxu0 %v4559
      %4898 = vmatpush.bf16.msra.mxu0 %v4558
      %4899 = vmatmul.bf16.gmra.mxu0 %v3709
      %v4900 = vpop.f32.mrf.mxu0
      %v4901 = vadd.f32 %v4882, %v4900
      %v4902 = vpop.f32.mrf.mxu0
      %v4903 = vadd.f32 %v4884, %v4902
      %4904 = vmatmul.bf16.gmra.mxu0 %v3725
      %v4905 = vpop.f32.mrf.mxu0
      %v4906 = vadd.f32 %v4887, %v4905
      %v4907 = vpop.f32.mrf.mxu0
      %v4908 = vadd.f32 %v4889, %v4907
      %4909 = vdwg.mxu0
      %4910 = vmatpush.bf16.msra.mxu0 %v4573
      %4911 = vmatpush.bf16.msra.mxu0 %v4572
      %4912 = vmatpush.bf16.msra.mxu0 %v4571
      %4913 = vmatpush.bf16.msra.mxu0 %v4570
      %4914 = vmatpush.bf16.msra.mxu0 %v4569
      %4915 = vmatpush.bf16.msra.mxu0 %v4568
      %4916 = vmatpush.bf16.msra.mxu0 %v4567
      %4917 = vmatpush.bf16.msra.mxu0 %v4566
      %4918 = vmatmul.bf16.gmra.mxu0 %v3710
      %v4919 = vpop.f32.mrf.mxu0
      %v4920 = vadd.f32 %v4901, %v4919
      %v4921 = vpop.f32.mrf.mxu0
      %v4922 = vadd.f32 %v4903, %v4921
      %4923 = vmatmul.bf16.gmra.mxu0 %v3726
      %v4924 = vpop.f32.mrf.mxu0
      %v4925 = vadd.f32 %v4906, %v4924
      %v4926 = vpop.f32.mrf.mxu0
      %v4927 = vadd.f32 %v4908, %v4926
      %4928 = vdwg.mxu0
      %4929 = vmatpush.bf16.msra.mxu0 %v4581
      %4930 = vmatpush.bf16.msra.mxu0 %v4580
      %4931 = vmatpush.bf16.msra.mxu0 %v4579
      %4932 = vmatpush.bf16.msra.mxu0 %v4578
      %4933 = vmatpush.bf16.msra.mxu0 %v4577
      %4934 = vmatpush.bf16.msra.mxu0 %v4576
      %4935 = vmatpush.bf16.msra.mxu0 %v4575
      %4936 = vmatpush.bf16.msra.mxu0 %v4574
      %4937 = vmatmul.bf16.gmra.mxu0 %v3711
      %v4938 = vpop.f32.mrf.mxu0
      %v4939 = vadd.f32 %v4920, %v4938
      %v4940 = vpop.f32.mrf.mxu0
      %v4941 = vadd.f32 %v4922, %v4940
      %4942 = vmatmul.bf16.gmra.mxu0 %v3727
      %v4943 = vpop.f32.mrf.mxu0
      %v4944 = vadd.f32 %v4925, %v4943
      %v4945 = vpop.f32.mrf.mxu0
      %v4946 = vadd.f32 %v4927, %v4945
      %4947 = vdwg.mxu0
      %4948 = vmatpush.bf16.msra.mxu0 %v4589
      %4949 = vmatpush.bf16.msra.mxu0 %v4588
      %4950 = vmatpush.bf16.msra.mxu0 %v4587
      %4951 = vmatpush.bf16.msra.mxu0 %v4586
      %4952 = vmatpush.bf16.msra.mxu0 %v4585
      %4953 = vmatpush.bf16.msra.mxu0 %v4584
      %4954 = vmatpush.bf16.msra.mxu0 %v4583
      %4955 = vmatpush.bf16.msra.mxu0 %v4582
      %4956 = vmatmul.bf16.gmra.mxu0 %v3712
      %v4957 = vpop.f32.mrf.mxu0
      %v4958 = vadd.f32 %v4939, %v4957
      %v4959 = vpop.f32.mrf.mxu0
      %v4960 = vadd.f32 %v4941, %v4959
      %4961 = vmatmul.bf16.gmra.mxu0 %v3728
      %v4962 = vpop.f32.mrf.mxu0
      %v4963 = vadd.f32 %v4944, %v4962
      %v4964 = vpop.f32.mrf.mxu0
      %v4965 = vadd.f32 %v4946, %v4964
      %4966 = vdwg.mxu0
      %4967 = vmatpush.bf16.msra.mxu0 %v4597
      %4968 = vmatpush.bf16.msra.mxu0 %v4596
      %4969 = vmatpush.bf16.msra.mxu0 %v4595
      %4970 = vmatpush.bf16.msra.mxu0 %v4594
      %4971 = vmatpush.bf16.msra.mxu0 %v4593
      %4972 = vmatpush.bf16.msra.mxu0 %v4592
      %4973 = vmatpush.bf16.msra.mxu0 %v4591
      %4974 = vmatpush.bf16.msra.mxu0 %v4590
      %4975 = vmatmul.bf16.gmra.mxu0 %v3713
      %v4976 = vpop.f32.mrf.mxu0
      %v4977 = vadd.f32 %v4958, %v4976
      %v4978 = vpop.f32.mrf.mxu0
      %v4979 = vadd.f32 %v4960, %v4978
      %4980 = vmatmul.bf16.gmra.mxu0 %v3729
      %v4981 = vpop.f32.mrf.mxu0
      %v4982 = vadd.f32 %v4963, %v4981
      %v4983 = vpop.f32.mrf.mxu0
      %v4984 = vadd.f32 %v4965, %v4983
      %4985 = vdwg.mxu0
      %4986 = vmatpush.bf16.msra.mxu0 %v4605
      %4987 = vmatpush.bf16.msra.mxu0 %v4604
      %4988 = vmatpush.bf16.msra.mxu0 %v4603
      %4989 = vmatpush.bf16.msra.mxu0 %v4602
      %4990 = vmatpush.bf16.msra.mxu0 %v4601
      %4991 = vmatpush.bf16.msra.mxu0 %v4600
      %4992 = vmatpush.bf16.msra.mxu0 %v4599
      %4993 = vmatpush.bf16.msra.mxu0 %v4598
      %4994 = vmatmul.bf16.gmra.mxu0 %v3714
      %v4995 = vpop.f32.mrf.mxu0
      %v4996 = vadd.f32 %v4977, %v4995
      %v4997 = vpop.f32.mrf.mxu0
      %v4998 = vadd.f32 %v4979, %v4997
      %4999 = vmatmul.bf16.gmra.mxu0 %v3730
      %v5000 = vpop.f32.mrf.mxu0
      %v5001 = vadd.f32 %v4982, %v5000
      %v5002 = vpop.f32.mrf.mxu0
      %v5003 = vadd.f32 %v4984, %v5002
      %5004 = vdwg.mxu0
      %5005 = vmatpush.bf16.msra.mxu0 %v4613
      %5006 = vmatpush.bf16.msra.mxu0 %v4612
      %5007 = vmatpush.bf16.msra.mxu0 %v4611
      %5008 = vmatpush.bf16.msra.mxu0 %v4610
      %5009 = vmatpush.bf16.msra.mxu0 %v4609
      %5010 = vmatpush.bf16.msra.mxu0 %v4608
      %5011 = vmatpush.bf16.msra.mxu0 %v4607
      %5012 = vmatpush.bf16.msra.mxu0 %v4606
      %5013 = vmatmul.bf16.gmra.mxu0 %v3715
      %v5014 = vpop.f32.mrf.mxu0
      %v5015 = vadd.f32 %v4996, %v5014
      %v5016 = vpop.f32.mrf.mxu0
      %v5017 = vadd.f32 %v4998, %v5016
      %5018 = vmatmul.bf16.gmra.mxu0 %v3731
      %v5019 = vpop.f32.mrf.mxu0
      %v5020 = vadd.f32 %v5001, %v5019
      %v5021 = vpop.f32.mrf.mxu0
      %v5022 = vadd.f32 %v5003, %v5021
      %5023 = vdwg.mxu0
      %5024 = vmatpush.bf16.msra.mxu0 %v4621
      %5025 = vmatpush.bf16.msra.mxu0 %v4620
      %5026 = vmatpush.bf16.msra.mxu0 %v4619
      %5027 = vmatpush.bf16.msra.mxu0 %v4618
      %5028 = vmatpush.bf16.msra.mxu0 %v4617
      %5029 = vmatpush.bf16.msra.mxu0 %v4616
      %5030 = vmatpush.bf16.msra.mxu0 %v4615
      %5031 = vmatpush.bf16.msra.mxu0 %v4614
      %5032 = vmatmul.bf16.gmra.mxu0 %v3716
      %v5033 = vpop.f32.mrf.mxu0
      %v5034 = vadd.f32 %v5015, %v5033
      %v5035 = vpop.f32.mrf.mxu0
      %v5036 = vadd.f32 %v5017, %v5035
      %5037 = vmatmul.bf16.gmra.mxu0 %v3732
      %v5038 = vpop.f32.mrf.mxu0
      %v5039 = vadd.f32 %v5020, %v5038
      %v5040 = vpop.f32.mrf.mxu0
      %v5041 = vadd.f32 %v5022, %v5040
      %5042 = vdwg.mxu0
      %5043 = vmatpush.bf16.msra.mxu0 %v4629
      %5044 = vmatpush.bf16.msra.mxu0 %v4628
      %5045 = vmatpush.bf16.msra.mxu0 %v4627
      %5046 = vmatpush.bf16.msra.mxu0 %v4626
      %5047 = vmatpush.bf16.msra.mxu0 %v4625
      %5048 = vmatpush.bf16.msra.mxu0 %v4624
      %5049 = vmatpush.bf16.msra.mxu0 %v4623
      %5050 = vmatpush.bf16.msra.mxu0 %v4622
      %5051 = vmatmul.bf16.gmra.mxu0 %v3717
      %v5052 = vpop.f32.mrf.mxu0
      %v5053 = vadd.f32 %v5034, %v5052
      %v5054 = vpop.f32.mrf.mxu0
      %v5055 = vadd.f32 %v5036, %v5054
      %5056 = vmatmul.bf16.gmra.mxu0 %v3733
      %v5057 = vpop.f32.mrf.mxu0
      %v5058 = vadd.f32 %v5039, %v5057
      %v5059 = vpop.f32.mrf.mxu0
      %v5060 = vadd.f32 %v5041, %v5059
      %5061 = vdwg.mxu0
      %v5062 = vmul.f32 %v5053, 0.015625
      %v5063 = vmul.f32 %v5055, 0.015625
      %v5064 = vmul.f32 %v5058, 0.015625
      %v5065 = vmul.f32 %v5060, 0.015625
      %v5066 = vld [vmem:[%s5] sm:$0xff]
      %v5067 = vld [vmem:[%s5 + $0x8] sm:$0xff]
      %v5068 = vld [vmem:[%s5 + $0x10] sm:$0xff]
      %v5069 = vld [vmem:[%s5 + $0x18] sm:$0xff]
      %v5070 = vld [vmem:[%s5 + $0x20] sm:$0xff]
      %v5071 = vld [vmem:[%s5 + $0x28] sm:$0xff]
      %v5072 = vld [vmem:[%s5 + $0x30] sm:$0xff]
      %v5073 = vld [vmem:[%s5 + $0x38] sm:$0xff]
      %v5074 = vld [vmem:[%s6] sm:$0xff]
      %v5075 = vld [vmem:[%s6 + $0x8] sm:$0xff]
      %v5076 = vld [vmem:[%s6 + $0x10] sm:$0xff]
      %v5077 = vld [vmem:[%s6 + $0x18] sm:$0xff]
      %v5078 = vld [vmem:[%s6 + $0x20] sm:$0xff]
      %v5079 = vld [vmem:[%s6 + $0x28] sm:$0xff]
      %v5080 = vld [vmem:[%s6 + $0x30] sm:$0xff]
      %v5081 = vld [vmem:[%s6 + $0x38] sm:$0xff]
      %5083 = vset.pattern.permute.xlu0 0
      %5084 = vperm.xlu0 %5083, %v5074
      %v5085 = vpop.permute.xlu0 %5084
      %5088 = vset.pattern.permute.xlu0 0
      %5089 = vperm.xlu0 %5088, %v5075
      %v5090 = vpop.permute.xlu0 %5089
      %5093 = vset.pattern.permute.xlu0 0
      %5094 = vperm.xlu0 %5093, %v5076
      %v5095 = vpop.permute.xlu0 %5094
      %5098 = vset.pattern.permute.xlu0 0
      %5099 = vperm.xlu0 %5098, %v5077
      %v5100 = vpop.permute.xlu0 %5099
      %5103 = vset.pattern.permute.xlu0 0
      %5104 = vperm.xlu0 %5103, %v5078
      %v5105 = vpop.permute.xlu0 %5104
      %5108 = vset.pattern.permute.xlu0 0
      %5109 = vperm.xlu0 %5108, %v5079
      %v5110 = vpop.permute.xlu0 %5109
      %5113 = vset.pattern.permute.xlu0 0
      %5114 = vperm.xlu0 %5113, %v5080
      %v5115 = vpop.permute.xlu0 %5114
      %5118 = vset.pattern.permute.xlu0 0
      %5119 = vperm.xlu0 %5118, %v5081
      %v5120 = vpop.permute.xlu0 %5119
      %vm5122 = vcmask 261120
      %v5124 = vsel %vm5122, %v5066, 0
      %v5127 = vsel %vm5122, %v5067, 0
      %v5130 = vsel %vm5122, %v5068, 0
      %v5133 = vsel %vm5122, %v5069, 0
      %v5136 = vsel %vm5122, %v5070, 0
      %v5139 = vsel %vm5122, %v5071, 0
      %v5142 = vsel %vm5122, %v5072, 0
      %v5145 = vsel %vm5122, %v5073, 0
      %5147 = vmatpush.msra.mxu0 0.0
      %5148 = vmatpush.msra.mxu0 0.0
      %5149 = vmatpush.msra.mxu0 0.0
      %5150 = vmatpush.msra.mxu0 0.0
      %5151 = vmatpush.msra.mxu0 0.0
      %5152 = vmatpush.msra.mxu0 0.0
      %5153 = vmatpush.msra.mxu0 0.0
      %5154 = vmatpush.msra.mxu0 0.0
      %5155 = vmatpush.msra.mxu0 0.0
      %5156 = vmatpush.msra.mxu0 0.0
      %5157 = vmatpush.msra.mxu0 0.0
      %5158 = vmatpush.msra.mxu0 0.0
      %5159 = vmatpush.msra.mxu0 %v5065
      %5160 = vmatpush.msra.mxu0 %v5064
      %5161 = vmatpush.msra.mxu0 %v5063
      %5162 = vmatpush.msra.mxu0 %v5062
      %5163 = vmatmul.f32.gmra.mxu0 %v5124
      %v5164 = vpop.f32.mrf.mxu0
      %v5165 = vadd.f32 %v5085, %v5164
      %5166 = vmatmul.f32.gmra.mxu0 %v5127
      %v5167 = vpop.f32.mrf.mxu0
      %v5168 = vadd.f32 %v5090, %v5167
      %5169 = vmatmul.f32.gmra.mxu0 %v5130
      %v5170 = vpop.f32.mrf.mxu0
      %v5171 = vadd.f32 %v5095, %v5170
      %5172 = vmatmul.f32.gmra.mxu0 %v5133
      %v5173 = vpop.f32.mrf.mxu0
      %v5174 = vadd.f32 %v5100, %v5173
      %5175 = vmatmul.f32.gmra.mxu0 %v5136
      %v5176 = vpop.f32.mrf.mxu0
      %v5177 = vadd.f32 %v5105, %v5176
      %5178 = vmatmul.f32.gmra.mxu0 %v5139
      %v5179 = vpop.f32.mrf.mxu0
      %v5180 = vadd.f32 %v5110, %v5179
      %5181 = vmatmul.f32.gmra.mxu0 %v5142
      %v5182 = vpop.f32.mrf.mxu0
      %v5183 = vadd.f32 %v5115, %v5182
      %5184 = vmatmul.f32.gmra.mxu0 %v5145
      %v5185 = vpop.f32.mrf.mxu0
      %v5186 = vadd.f32 %v5120, %v5185
      %5187 = vdwg.mxu0
      %v5188 = vmax.f32 %v5165, 0.0
      %v5189 = vmax.f32 %v5168, 0.0
      %v5190 = vmax.f32 %v5171, 0.0
      %v5191 = vmax.f32 %v5174, 0.0
      %v5192 = vmax.f32 %v5177, 0.0
      %v5193 = vmax.f32 %v5180, 0.0
      %v5194 = vmax.f32 %v5183, 0.0
      %v5195 = vmax.f32 %v5186, 0.0
      %v5196 = vld [vmem:[%s7] sm:$0x1]
      %v5197 = vld [vmem:[#allocation3] sm:$0x1]
      %5199 = vset.pattern.permute.xlu0 0
      %5200 = vperm.xlu0 %5199, %v5197
      %v5201 = vpop.permute.xlu0 %5200
      %v5203 = vperm.slane %v5201, 0
      %vm5204 = vcmask 523264
      %v5206 = vsel %vm5204, %v5196, 0
      %5208 = vmatpush.msra.mxu0 0.0
      %5209 = vmatpush.msra.mxu0 0.0
      %5210 = vmatpush.msra.mxu0 0.0
      %5211 = vmatpush.msra.mxu0 0.0
      %5212 = vmatpush.msra.mxu0 0.0
      %5213 = vmatpush.msra.mxu0 0.0
      %5214 = vmatpush.msra.mxu0 0.0
      %5215 = vmatpush.msra.mxu0 0.0
      %5216 = vmatpush.msra.mxu0 %v5195
      %5217 = vmatpush.msra.mxu0 %v5194
      %5218 = vmatpush.msra.mxu0 %v5193
      %5219 = vmatpush.msra.mxu0 %v5192
      %5220 = vmatpush.msra.mxu0 %v5191
      %5221 = vmatpush.msra.mxu0 %v5190
      %5222 = vmatpush.msra.mxu0 %v5189
      %5223 = vmatpush.msra.mxu0 %v5188
      %5224 = vmatmul.f32.gmra.mxu0 %v5206
      %v5225 = vpop.f32.mrf.mxu0
      %v5226 = vadd.f32 %v5203, %v5225
      %5227 = vdwg.mxu0
      %v5228 = vxor.u32 %v5226, 2147483648
      %v5229 = vmul.f32 %v5228, 1.442695
      %v5230 = vpow.pop %v5229
      %v5231 = vadd.f32 %v5230, 1.0
      %v5232 = vrcp.pop %v5231
      %v5233 = vmul.f32 %v5231, %v5232
      %v5234 = vsub.f32 1.0, %v5233
      %v5235 = vmul.f32 %v5232, %v5234
      %v5236 = vadd.f32 %v5232, %v5235
      %vm5237 = vweird.f32 %v5231
      %vm5238 = vweird.f32 %v5232
      %vm5239 = vmor %vm5237, %vm5238
      %v5240 = vsel %vm5239, %v5232, %v5236
      %v5241 = vand.u32 2147483647, %v5231
      %vm5242 = vcmp.eq.f32.partialorder %v5241, 8.507059e+37
      %v5243 = vand.u32 %v5231, 2147483648
      %v5244 = vor.u32 1.1754944e-38, %v5243
      %v5245 = vsel %vm5242, %v5244, %v5240
      %v5246 = vmul.f32 1.0, %v5245
      %vm5247 = vcmask 122880
      %5248 = vst.msk [vmem:[%s354] sm:$0x1] %vm5247, %v5246
      %p5249 = scmp.lt.s32.totalorder %s23, 1
      %s5250 = scalar_select %p5249, %s23, 1
      %s5251 = scalar_lea.vmem %s10, %s5250
      // Predicated region
      $region61: #{_ecg_forward_impl.1} parent=59 // pred_check
        %p5252 = pneg %p256
      $region62: #{_ecg_forward_impl.1} parent=59 // pred_check_branch
        %5254 = sbr.rel (%p5252) target = $region64
      $region63: #{_ecg_forward_impl.1} parent=59 // pred_region
        _
      $region64: #{_ecg_forward_impl.1} parent=59 // pred_fallthru
        _
    $region60: #{_ecg_forward_impl.1} parent=5 // pred_fallthru
      _
    %p5255 = scmp.le.s32.totalorder 2, %s18
    // Predicated region
    $region65: #{_ecg_forward_impl.1} parent=5 // pred_check
      %p5256 = pneg %p5255
    $region66: #{_ecg_forward_impl.1} parent=5 // pred_check_branch
      %5258 = sbr.rel (%p5256) target = $region68
    $region67: #{_ecg_forward_impl.1} parent=5 // pred_region
      %s5259 = ssub.s32 %s18, 2
      // Predicated region
      $region69: #{_ecg_forward_impl.1} parent=67 // pred_check
        %p5260 = pneg %p262
      $region70: #{_ecg_forward_impl.1} parent=67 // pred_check_branch
        %5262 = sbr.rel (%p5260) target = $region72
      $region71: #{_ecg_forward_impl.1} parent=67 // pred_region
        %p5263 = scmp.lt.s32.totalorder %s24, 1
        %s5264 = scalar_select %p5263, %s24, 1
        %s5265 = scalar_lea.vmem %s10, %s5264
      $region72: #{_ecg_forward_impl.1} parent=67 // pred_fallthru
        _
    $region68: #{_ecg_forward_impl.1} parent=5 // pred_fallthru
      _
  $region6: #{_ecg_forward_impl.1} parent=0 // loop_footer
    %s22 = sadd.s32 1, %s18
  $region7: #{_ecg_forward_impl.1} parent=0 // loop_footer_branch
    %17 = sbr.rel target = $region3
  $region8: #{_ecg_forward_impl.1} parent=0 // loop_exit
    _

</llo_original>
